<compile_context>
chip_gen: v7x
topology: tpu7x:2x2x1
jax: 0.10.0
libtpu: 0.0.40
codegen_flags: <defaults>
</compile_context>

<pallas_src>
import jax
import jax.numpy as jnp
import numpy as np
from jax.experimental import pallas as pl
from jax.experimental.pallas import tpu as pltpu

LANES = 128
SUBLANES = 8


def classifier_head_kernel(feat_ref, w_ref, b_ref, out_ref):
    # feat_ref: (TN, C, HW)   backbone-native NCHW feature tile (f32 or bf16)
    # w_ref:    (C, C_PAD)    fused (hidden @ classifier) weight * (1/HW), f32
    # b_ref:    (1, C_PAD)    fused bias, f32
    # out_ref:  (TN, C_PAD)   f32 logits (lane-dense, padded)
    #
    # AdaptiveAvgPool2d(1) + flatten: sum over the spatial (lane) axis with f32
    # accumulation; the 1/HW scale is pre-folded into w_ref.
    pooled = jnp.sum(feat_ref[...], axis=-1, dtype=jnp.float32)          # (TN, C)
    # Fused hidden+classifier Linear: logits = mean_pool @ (W1 @ W2) + (b1 @ W2 + b2).
    out_ref[...] = (
        jnp.dot(pooled, w_ref[...], preferred_element_type=jnp.float32)
        + b_ref[...]
    )


def _pick_batch_tile(n, c, hw, feat_itemsize, batch_tile=None):
    """Batch rows per grid step.

    Auto mode targets ~10 MiB of features per pipeline buffer (so per-step DMA
    amortizes the ~0.35 us grid-step overhead), caps at 64 rows (v7x VMEM-safe even
    for f32 features), and at large N keeps >=4 grid steps so v7x's two TensorCores
    each get >=2 pipelined tiles.  `batch_tile` overrides (per-generation knob)."""
    if batch_tile is None:
        per_row = c * hw * feat_itemsize
        tn = int((10 * 1024 * 1024) // max(per_row, 1))
        tn = min(64, tn)
        tn = min(tn, max(16, -(-n // 4)))      # keep >=4 steps when batch allows
    else:
        tn = batch_tile
    tn = max(1, min(tn, n))
    if tn < n:
        # out BlockSpec needs the batch block to be a multiple of 8 (sublane tiling)
        tn = max(SUBLANES, (tn // SUBLANES) * SUBLANES)
    return tn


def _vmem_limit_bytes(tn, c, hw, feat_itemsize, c_pad):
    """Explicit VMEM limit derived from actual tile sizes, capped v7x-safe (<=48 MiB)."""
    feat = 2 * tn * c * hw * feat_itemsize      # double-buffered feature tiles
    wgt = 2 * (c * c_pad + c_pad) * 4           # fused weight + bias (double-buffered)
    outb = 2 * tn * c_pad * 4                   # double-buffered output tiles
    need = feat + wgt + outb + (8 << 20)        # + pooled / compiler scratch margin
    return int(min(48 * 1024 * 1024, max(24 * 1024 * 1024, need)))


def efficientnet_classifier_head(features_nchw, w1, b1, w2, b2, *, batch_tile=None):
    """features_nchw: (N, 1280, H, W) backbone feature map (f32 or bf16), NCHW.
    w1:(1280,512) b1:(512,)  -> self.hidden;  w2:(512,K) b2:(K,) -> self.classifier.

    Linear weights are stored transposed as (in_features, out_features) so the math
    y = x @ W + b is numerically identical to PyTorch's x @ W.T + b.
    Returns (N, K) f32 logits.
    """
    n, c, h, w = features_nchw.shape
    hw = h * w
    num_classes = w2.shape[1]

    # NCHW -> (N, C, HW): contiguous reshape only, NO transpose/cast HBM pass.
    # TODO(synk): a bf16-emitting backbone would halve the feature DMA; the kernel
    # already accepts bf16 features as-is (f32 accumulation inside).
    feat = features_nchw.reshape(n, c, hw)

    # Fold hidden + classifier (valid: no activation, dropout disabled on this path)
    # and the 1/HW average-pool scale, all in f32.
    hi = jax.lax.Precision.HIGHEST
    w1f, b1f = w1.astype(jnp.float32), b1.astype(jnp.float32)
    w2f, b2f = w2.astype(jnp.float32), b2.astype(jnp.float32)
    w_fused = jnp.dot(w1f, w2f, precision=hi) * (1.0 / hw)       # (1280, K), incl. 1/HW
    b_fused = jnp.dot(b1f, w2f, precision=hi) + b2f              # (K,)

    # Pad the class dim to a full 128-lane group -> unmasked lane-dense stores.
    c_pad = LANES * pl.cdiv(num_classes, LANES)
    w_pad = jnp.zeros((c, c_pad), jnp.float32).at[:, :num_classes].set(w_fused)
    b_pad = jnp.zeros((1, c_pad), jnp.float32).at[:, :num_classes].set(b_fused)

    feat_itemsize = jnp.dtype(feat.dtype).itemsize
    tn = _pick_batch_tile(n, c, hw, feat_itemsize, batch_tile)
    vmem_limit = _vmem_limit_bytes(tn, c, hw, feat_itemsize, c_pad)
    grid = (pl.cdiv(n, tn),)

    # Advisory cost: the kernel is feature-DMA bound.
    cost = pl.CostEstimate(
        flops=2 * n * c * c_pad + n * c * hw,
        transcendentals=0,
        bytes_accessed=(n * c * hw * feat_itemsize
                        + c * c_pad * 4 + c_pad * 4 + n * c_pad * 4),
    )

    out = pl.pallas_call(
        classifier_head_kernel,
        out_shape=jax.ShapeDtypeStruct((n, c_pad), jnp.float32),
        grid_spec=pltpu.PrefetchScalarGridSpec(
            num_scalar_prefetch=0,
            grid=grid,
            in_specs=[
                pl.BlockSpec((tn, c, hw), lambda i: (i, 0, 0)),   # per-step feature tile
                pl.BlockSpec((c, c_pad), lambda i: (0, 0)),       # fused weight, resident
                pl.BlockSpec((1, c_pad), lambda i: (0, 0)),       # fused bias, resident
            ],
            out_specs=pl.BlockSpec((tn, c_pad), lambda i: (i, 0)),
        ),
        compiler_params=pltpu.CompilerParams(
            dimension_semantics=("parallel",),     # batch tiles -> both TCs on v7x
            vmem_limit_bytes=vmem_limit,           # derived, capped at 48 MiB (v7x-safe)
        ),
        cost_estimate=cost,
    )(feat, w_pad, b_pad)
    return out[:, :num_classes]


def init_linear_params(key, in_features, out_features):
    """Deterministic PyTorch-style nn.Linear init (uniform +/- 1/sqrt(fan_in)).

    Returns W already transposed to (in_features, out_features)."""
    kw, kb = jax.random.split(key)
    bound = 1.0 / jnp.sqrt(jnp.float32(in_features))
    w = jax.random.uniform(kw, (in_features, out_features), jnp.float32, -bound, bound)
    b = jax.random.uniform(kb, (out_features,), jnp.float32, -bound, bound)
    return w, b


def reference_head(features_nchw, w1, b1, w2, b2):
    """Pure-numpy f32 reference mirroring the PyTorch forward (two separate Linears)."""
    f = np.asarray(features_nchw, np.float32)
    n, c, h, w = f.shape
    pooled = f.reshape(n, c, h * w).mean(axis=-1)
    hid = pooled @ np.asarray(w1, np.float32) + np.asarray(b1, np.float32)
    return hid @ np.asarray(w2, np.float32) + np.asarray(b2, np.float32)


if __name__ == "__main__":
    # Small, module-consistent shapes: batch=2, encoder feature channels=1280
    # (required by hidden = Linear(1280, 512)), spatial 8x8, num_classes=2.
    N, C, H, W = 2, 1280, 8, 8
    NUM_CLASSES = 2

    root = jax.random.PRNGKey(0)
    k_feat, k_h, k_c = jax.random.split(root, 3)

    features = jax.random.normal(k_feat, (N, C, H, W), jnp.float32)
    w1, b1 = init_linear_params(k_h, 1280, 512)          # self.hidden
    w2, b2 = init_linear_params(k_c, 512, NUM_CLASSES)   # self.classifier

    ref = reference_head(features, w1, b1, w2, b2)

    # Default path: backbone-native f32 NCHW features, no transpose/cast HBM pass.
    logits = jax.block_until_ready(
        efficientnet_classifier_head(features, w1, b1, w2, b2))
    assert logits.shape == (N, NUM_CLASSES)
    assert np.allclose(np.asarray(logits), ref, rtol=1e-3, atol=1e-4)

    # bf16-feature path (what a bf16-emitting backbone would hand us): only the
    # feature tensor is bf16; fused weight, bias and accumulation stay f32.
    logits_bf16 = jax.block_until_ready(
        efficientnet_classifier_head(features.astype(jnp.bfloat16), w1, b1, w2, b2))
    assert logits_bf16.shape == (N, NUM_CLASSES)
    assert np.allclose(np.asarray(logits_bf16), ref, rtol=1e-2, atol=1e-2)

    print("KERNEL_OK")
</pallas_src>

<mosaic_0001>
module attributes {stable_mosaic.version = 11 : i64} {
  func.func @classifier_head_kernel(%arg0: i32, %arg1: memref<2x1280x64xf32, #tpu.memory_space<vmem>>, %arg2: memref<1280x128xf32, #tpu.memory_space<vmem>>, %arg3: memref<1x128xf32, #tpu.memory_space<vmem>>, %arg4: memref<2x128xf32, #tpu.memory_space<vmem>>) attributes {dimension_semantics = [#tpu.dimension_semantics<parallel>], iteration_bounds = array<i64: 1>, scalar_prefetch = 0 : i64, scratch_operands = 0 : i64, tpu.core_type = #tpu.core_type<tc>, window_params = [{transform_indices = @transform_0, window_bounds = array<i64: 2, 1280, 64>}, {pipeline_mode = #tpu.pipeline_mode<synchronous>, transform_indices = @transform_1, window_bounds = array<i64: 1280, 128>}, {pipeline_mode = #tpu.pipeline_mode<synchronous>, transform_indices = @transform_2, window_bounds = array<i64: 1, 128>}, {transform_indices = @transform_3, window_bounds = array<i64: 2, 128>}]} {
    %c0 = arith.constant 0 : index
    %c0_0 = arith.constant 0 : index
    %c0_1 = arith.constant 0 : index
    %0 = vector.load %arg1[%c0, %c0_0, %c0_1] : memref<2x1280x64xf32, #tpu.memory_space<vmem>>, vector<2x1280x64xf32>
    %cst = arith.constant dense<0.000000e+00> : vector<2x1280xf32>
    %1 = vector.multi_reduction <add>, %0, %cst [2] : vector<2x1280x64xf32> to vector<2x1280xf32>
    %c0_2 = arith.constant 0 : index
    %c0_3 = arith.constant 0 : index
    %2 = vector.load %arg2[%c0_2, %c0_3] : memref<1280x128xf32, #tpu.memory_space<vmem>>, vector<1280x128xf32>
    %cst_4 = arith.constant dense<0.000000e+00> : vector<2x128xf32>
    %3 = tpu.matmul %1, %2, %cst_4 {dimension_numbers = #tpu.dot_dimension_numbers<[1], [0], [0], [1], [0, 0, 1, 1], [], []>} : vector<2x1280xf32>, vector<1280x128xf32>, vector<2x128xf32> -> vector<2x128xf32>
    %c0_5 = arith.constant 0 : index
    %c0_6 = arith.constant 0 : index
    %4 = vector.load %arg3[%c0_5, %c0_6] : memref<1x128xf32, #tpu.memory_space<vmem>>, vector<1x128xf32>
    %5 = vector.broadcast %4 : vector<1x128xf32> to vector<2x128xf32>
    %6 = arith.addf %3, %5 : vector<2x128xf32>
    %c0_7 = arith.constant 0 : index
    %c0_8 = arith.constant 0 : index
    %7 = vector.load %arg4[%c0_7, %c0_8] : memref<2x128xf32, #tpu.memory_space<vmem>>, vector<2x128xf32>
    tpu.vector_store %arg4[%c0_7, %c0_8], %6 {strides = array<i32>} : memref<2x128xf32, #tpu.memory_space<vmem>>, vector<2x128xf32>,
    return
  }
  func.func @transform_0(%arg0: i32) -> (i32, i32, i32) {
    %c0_i32 = arith.constant 0 : i32
    %c0_i32_0 = arith.constant 0 : i32
    %c0_i32_1 = arith.constant 0 : i32
    return %arg0, %c0_i32, %c0_i32_0 : i32, i32, i32
  }
  func.func @transform_1(%arg0: i32) -> (i32, i32) {
    %c0_i32 = arith.constant 0 : i32
    %c0_i32_0 = arith.constant 0 : i32
    %c0_i32_1 = arith.constant 0 : i32
    return %c0_i32, %c0_i32_0 : i32, i32
  }
  func.func @transform_2(%arg0: i32) -> (i32, i32) {
    %c0_i32 = arith.constant 0 : i32
    %c0_i32_0 = arith.constant 0 : i32
    %c0_i32_1 = arith.constant 0 : i32
    return %c0_i32, %c0_i32_0 : i32, i32
  }
  func.func @transform_3(%arg0: i32) -> (i32, i32) {
    %c0_i32 = arith.constant 0 : i32
    %c0_i32_0 = arith.constant 0 : i32
    return %arg0, %c0_i32 : i32, i32
  }
}

</mosaic_0001>

<llo_original>
// kernel: tpu_custom_call.1
$region0: #{tpu_custom_call.1}
  #allocation0 [shape = 'u32[]', space=smem, size = 0x4, offset = 0x4, fixed_abs, tag = 'smem constant byte address 0x4 - core index']
  #allocation1 [shape = 'u32[144,128]{1,0:T(1,128)}', space=vmem, size = 0x12000, scoped, tag = 'internal scratch']
  %s0 = inlined_call_operand.vmem [shape: f32[2,1280,64], index: 0, kind: input, shape index: {}]
  %s1 = inlined_call_operand.vmem [shape: f32[1280,128], index: 1, kind: input, shape index: {}]
  %s2 = inlined_call_operand.vmem [shape: f32[1,128], index: 2, kind: input, shape index: {}]
  %s3 = inlined_call_operand.hbm [shape: f32[2,128], index: 3, kind: output, shape index: {}]
  %s4 = sld [smem:[#allocation0]]
  $region22: #{tpu_custom_call.1} parent=0
    _
  %s6 = ssub.s32 1, %s4
  %s7 = scalar_select 0, %s6, %s4
  $region1: #{tpu_custom_call.1} parent=0
    #allocation2 [shape = 'u8[1024]{0}', space=vmem, size = 0x400, scoped, tag = 'output window, operand 0, single buffered']
    #allocation3 [shape = 's32[1]{0}', space=sflag, size = 0x4, scoped, tag = 'scoped memory for tpu_custom_call.1']
    %8 = vsyncpa [#allocation3], 0
    // Predicated region
    $region2: #{tpu_custom_call.1} parent=1 // pred_check
      _
    $region3: #{tpu_custom_call.1} parent=1 // pred_check_branch
      %10 = sbr.rel (0) target = $region5
    $region4: #{tpu_custom_call.1} parent=1 // pred_region
      _
    $region5: #{tpu_custom_call.1} parent=1 // pred_fallthru
      _
    // Predicated region
    $region6: #{tpu_custom_call.1} parent=1 // pred_check
      _
    $region7: #{tpu_custom_call.1} parent=1 // pred_check_branch
      %12 = sbr.rel (0) target = $region9
    $region8: #{tpu_custom_call.1} parent=1 // pred_region
      _
    $region9: #{tpu_custom_call.1} parent=1 // pred_fallthru
      _
    // Predicated region
    $region10: #{tpu_custom_call.1} parent=1 // pred_check
      _
    $region11: #{tpu_custom_call.1} parent=1 // pred_check_branch
      %14 = sbr.rel (0) target = $region13
    $region12: #{tpu_custom_call.1} parent=1 // pred_region
      _
    $region13: #{tpu_custom_call.1} parent=1 // pred_fallthru
      _
    %v15 = vld [vmem:[%s0] sm:$0xff]
    %v16 = vld [vmem:[%s0 + $0x8] sm:$0xff]
    %v17 = vld [vmem:[%s0 + $0x10] sm:$0xff]
    %v18 = vld [vmem:[%s0 + $0x18] sm:$0xff]
    %v19 = vld [vmem:[%s0 + $0x20] sm:$0xff]
    %v20 = vld [vmem:[%s0 + $0x28] sm:$0xff]
    %v21 = vld [vmem:[%s0 + $0x30] sm:$0xff]
    %v22 = vld [vmem:[%s0 + $0x38] sm:$0xff]
    %v23 = vld [vmem:[%s0 + $0x40] sm:$0xff]
    %v24 = vld [vmem:[%s0 + $0x48] sm:$0xff]
    %v25 = vld [vmem:[%s0 + $0x50] sm:$0xff]
    %v26 = vld [vmem:[%s0 + $0x58] sm:$0xff]
    %v27 = vld [vmem:[%s0 + $0x60] sm:$0xff]
    %v28 = vld [vmem:[%s0 + $0x68] sm:$0xff]
    %v29 = vld [vmem:[%s0 + $0x70] sm:$0xff]
    %v30 = vld [vmem:[%s0 + $0x78] sm:$0xff]
    %v31 = vld [vmem:[%s0 + $0x80] sm:$0xff]
    %v32 = vld [vmem:[%s0 + $0x88] sm:$0xff]
    %v33 = vld [vmem:[%s0 + $0x90] sm:$0xff]
    %v34 = vld [vmem:[%s0 + $0x98] sm:$0xff]
    %v35 = vld [vmem:[%s0 + $0xa0] sm:$0xff]
    %v36 = vld [vmem:[%s0 + $0xa8] sm:$0xff]
    %v37 = vld [vmem:[%s0 + $0xb0] sm:$0xff]
    %v38 = vld [vmem:[%s0 + $0xb8] sm:$0xff]
    %v39 = vld [vmem:[%s0 + $0xc0] sm:$0xff]
    %v40 = vld [vmem:[%s0 + $0xc8] sm:$0xff]
    %v41 = vld [vmem:[%s0 + $0xd0] sm:$0xff]
    %v42 = vld [vmem:[%s0 + $0xd8] sm:$0xff]
    %v43 = vld [vmem:[%s0 + $0xe0] sm:$0xff]
    %v44 = vld [vmem:[%s0 + $0xe8] sm:$0xff]
    %v45 = vld [vmem:[%s0 + $0xf0] sm:$0xff]
    %v46 = vld [vmem:[%s0 + $0xf8] sm:$0xff]
    %v47 = vld [vmem:[%s0 + $0x100] sm:$0xff]
    %v48 = vld [vmem:[%s0 + $0x108] sm:$0xff]
    %v49 = vld [vmem:[%s0 + $0x110] sm:$0xff]
    %v50 = vld [vmem:[%s0 + $0x118] sm:$0xff]
    %v51 = vld [vmem:[%s0 + $0x120] sm:$0xff]
    %v52 = vld [vmem:[%s0 + $0x128] sm:$0xff]
    %v53 = vld [vmem:[%s0 + $0x130] sm:$0xff]
    %v54 = vld [vmem:[%s0 + $0x138] sm:$0xff]
    %v55 = vld [vmem:[%s0 + $0x140] sm:$0xff]
    %v56 = vld [vmem:[%s0 + $0x148] sm:$0xff]
    %v57 = vld [vmem:[%s0 + $0x150] sm:$0xff]
    %v58 = vld [vmem:[%s0 + $0x158] sm:$0xff]
    %v59 = vld [vmem:[%s0 + $0x160] sm:$0xff]
    %v60 = vld [vmem:[%s0 + $0x168] sm:$0xff]
    %v61 = vld [vmem:[%s0 + $0x170] sm:$0xff]
    %v62 = vld [vmem:[%s0 + $0x178] sm:$0xff]
    %v63 = vld [vmem:[%s0 + $0x180] sm:$0xff]
    %v64 = vld [vmem:[%s0 + $0x188] sm:$0xff]
    %v65 = vld [vmem:[%s0 + $0x190] sm:$0xff]
    %v66 = vld [vmem:[%s0 + $0x198] sm:$0xff]
    %v67 = vld [vmem:[%s0 + $0x1a0] sm:$0xff]
    %v68 = vld [vmem:[%s0 + $0x1a8] sm:$0xff]
    %v69 = vld [vmem:[%s0 + $0x1b0] sm:$0xff]
    %v70 = vld [vmem:[%s0 + $0x1b8] sm:$0xff]
    %v71 = vld [vmem:[%s0 + $0x1c0] sm:$0xff]
    %v72 = vld [vmem:[%s0 + $0x1c8] sm:$0xff]
    %v73 = vld [vmem:[%s0 + $0x1d0] sm:$0xff]
    %v74 = vld [vmem:[%s0 + $0x1d8] sm:$0xff]
    %v75 = vld [vmem:[%s0 + $0x1e0] sm:$0xff]
    %v76 = vld [vmem:[%s0 + $0x1e8] sm:$0xff]
    %v77 = vld [vmem:[%s0 + $0x1f0] sm:$0xff]
    %v78 = vld [vmem:[%s0 + $0x1f8] sm:$0xff]
    %v79 = vld [vmem:[%s0 + $0x200] sm:$0xff]
    %v80 = vld [vmem:[%s0 + $0x208] sm:$0xff]
    %v81 = vld [vmem:[%s0 + $0x210] sm:$0xff]
    %v82 = vld [vmem:[%s0 + $0x218] sm:$0xff]
    %v83 = vld [vmem:[%s0 + $0x220] sm:$0xff]
    %v84 = vld [vmem:[%s0 + $0x228] sm:$0xff]
    %v85 = vld [vmem:[%s0 + $0x230] sm:$0xff]
    %v86 = vld [vmem:[%s0 + $0x238] sm:$0xff]
    %v87 = vld [vmem:[%s0 + $0x240] sm:$0xff]
    %v88 = vld [vmem:[%s0 + $0x248] sm:$0xff]
    %v89 = vld [vmem:[%s0 + $0x250] sm:$0xff]
    %v90 = vld [vmem:[%s0 + $0x258] sm:$0xff]
    %v91 = vld [vmem:[%s0 + $0x260] sm:$0xff]
    %v92 = vld [vmem:[%s0 + $0x268] sm:$0xff]
    %v93 = vld [vmem:[%s0 + $0x270] sm:$0xff]
    %v94 = vld [vmem:[%s0 + $0x278] sm:$0xff]
    %v95 = vld [vmem:[%s0 + $0x280] sm:$0xff]
    %v96 = vld [vmem:[%s0 + $0x288] sm:$0xff]
    %v97 = vld [vmem:[%s0 + $0x290] sm:$0xff]
    %v98 = vld [vmem:[%s0 + $0x298] sm:$0xff]
    %v99 = vld [vmem:[%s0 + $0x2a0] sm:$0xff]
    %v100 = vld [vmem:[%s0 + $0x2a8] sm:$0xff]
    %v101 = vld [vmem:[%s0 + $0x2b0] sm:$0xff]
    %v102 = vld [vmem:[%s0 + $0x2b8] sm:$0xff]
    %v103 = vld [vmem:[%s0 + $0x2c0] sm:$0xff]
    %v104 = vld [vmem:[%s0 + $0x2c8] sm:$0xff]
    %v105 = vld [vmem:[%s0 + $0x2d0] sm:$0xff]
    %v106 = vld [vmem:[%s0 + $0x2d8] sm:$0xff]
    %v107 = vld [vmem:[%s0 + $0x2e0] sm:$0xff]
    %v108 = vld [vmem:[%s0 + $0x2e8] sm:$0xff]
    %v109 = vld [vmem:[%s0 + $0x2f0] sm:$0xff]
    %v110 = vld [vmem:[%s0 + $0x2f8] sm:$0xff]
    %v111 = vld [vmem:[%s0 + $0x300] sm:$0xff]
    %v112 = vld [vmem:[%s0 + $0x308] sm:$0xff]
    %v113 = vld [vmem:[%s0 + $0x310] sm:$0xff]
    %v114 = vld [vmem:[%s0 + $0x318] sm:$0xff]
    %v115 = vld [vmem:[%s0 + $0x320] sm:$0xff]
    %v116 = vld [vmem:[%s0 + $0x328] sm:$0xff]
    %v117 = vld [vmem:[%s0 + $0x330] sm:$0xff]
    %v118 = vld [vmem:[%s0 + $0x338] sm:$0xff]
    %v119 = vld [vmem:[%s0 + $0x340] sm:$0xff]
    %v120 = vld [vmem:[%s0 + $0x348] sm:$0xff]
    %v121 = vld [vmem:[%s0 + $0x350] sm:$0xff]
    %v122 = vld [vmem:[%s0 + $0x358] sm:$0xff]
    %v123 = vld [vmem:[%s0 + $0x360] sm:$0xff]
    %v124 = vld [vmem:[%s0 + $0x368] sm:$0xff]
    %v125 = vld [vmem:[%s0 + $0x370] sm:$0xff]
    %v126 = vld [vmem:[%s0 + $0x378] sm:$0xff]
    %v127 = vld [vmem:[%s0 + $0x380] sm:$0xff]
    %v128 = vld [vmem:[%s0 + $0x388] sm:$0xff]
    %v129 = vld [vmem:[%s0 + $0x390] sm:$0xff]
    %v130 = vld [vmem:[%s0 + $0x398] sm:$0xff]
    %v131 = vld [vmem:[%s0 + $0x3a0] sm:$0xff]
    %v132 = vld [vmem:[%s0 + $0x3a8] sm:$0xff]
    %v133 = vld [vmem:[%s0 + $0x3b0] sm:$0xff]
    %v134 = vld [vmem:[%s0 + $0x3b8] sm:$0xff]
    %v135 = vld [vmem:[%s0 + $0x3c0] sm:$0xff]
    %v136 = vld [vmem:[%s0 + $0x3c8] sm:$0xff]
    %v137 = vld [vmem:[%s0 + $0x3d0] sm:$0xff]
    %v138 = vld [vmem:[%s0 + $0x3d8] sm:$0xff]
    %v139 = vld [vmem:[%s0 + $0x3e0] sm:$0xff]
    %v140 = vld [vmem:[%s0 + $0x3e8] sm:$0xff]
    %v141 = vld [vmem:[%s0 + $0x3f0] sm:$0xff]
    %v142 = vld [vmem:[%s0 + $0x3f8] sm:$0xff]
    %v143 = vld [vmem:[%s0 + $0x400] sm:$0xff]
    %v144 = vld [vmem:[%s0 + $0x408] sm:$0xff]
    %v145 = vld [vmem:[%s0 + $0x410] sm:$0xff]
    %v146 = vld [vmem:[%s0 + $0x418] sm:$0xff]
    %v147 = vld [vmem:[%s0 + $0x420] sm:$0xff]
    %v148 = vld [vmem:[%s0 + $0x428] sm:$0xff]
    %v149 = vld [vmem:[%s0 + $0x430] sm:$0xff]
    %v150 = vld [vmem:[%s0 + $0x438] sm:$0xff]
    %v151 = vld [vmem:[%s0 + $0x440] sm:$0xff]
    %v152 = vld [vmem:[%s0 + $0x448] sm:$0xff]
    %v153 = vld [vmem:[%s0 + $0x450] sm:$0xff]
    %v154 = vld [vmem:[%s0 + $0x458] sm:$0xff]
    %v155 = vld [vmem:[%s0 + $0x460] sm:$0xff]
    %v156 = vld [vmem:[%s0 + $0x468] sm:$0xff]
    %v157 = vld [vmem:[%s0 + $0x470] sm:$0xff]
    %v158 = vld [vmem:[%s0 + $0x478] sm:$0xff]
    %v159 = vld [vmem:[%s0 + $0x480] sm:$0xff]
    %v160 = vld [vmem:[%s0 + $0x488] sm:$0xff]
    %v161 = vld [vmem:[%s0 + $0x490] sm:$0xff]
    %v162 = vld [vmem:[%s0 + $0x498] sm:$0xff]
    %v163 = vld [vmem:[%s0 + $0x4a0] sm:$0xff]
    %v164 = vld [vmem:[%s0 + $0x4a8] sm:$0xff]
    %v165 = vld [vmem:[%s0 + $0x4b0] sm:$0xff]
    %v166 = vld [vmem:[%s0 + $0x4b8] sm:$0xff]
    %v167 = vld [vmem:[%s0 + $0x4c0] sm:$0xff]
    %v168 = vld [vmem:[%s0 + $0x4c8] sm:$0xff]
    %v169 = vld [vmem:[%s0 + $0x4d0] sm:$0xff]
    %v170 = vld [vmem:[%s0 + $0x4d8] sm:$0xff]
    %v171 = vld [vmem:[%s0 + $0x4e0] sm:$0xff]
    %v172 = vld [vmem:[%s0 + $0x4e8] sm:$0xff]
    %v173 = vld [vmem:[%s0 + $0x4f0] sm:$0xff]
    %v174 = vld [vmem:[%s0 + $0x4f8] sm:$0xff]
    %v175 = vld [vmem:[%s0 + $0x500] sm:$0xff]
    %v176 = vld [vmem:[%s0 + $0x508] sm:$0xff]
    %v177 = vld [vmem:[%s0 + $0x510] sm:$0xff]
    %v178 = vld [vmem:[%s0 + $0x518] sm:$0xff]
    %v179 = vld [vmem:[%s0 + $0x520] sm:$0xff]
    %v180 = vld [vmem:[%s0 + $0x528] sm:$0xff]
    %v181 = vld [vmem:[%s0 + $0x530] sm:$0xff]
    %v182 = vld [vmem:[%s0 + $0x538] sm:$0xff]
    %v183 = vld [vmem:[%s0 + $0x540] sm:$0xff]
    %v184 = vld [vmem:[%s0 + $0x548] sm:$0xff]
    %v185 = vld [vmem:[%s0 + $0x550] sm:$0xff]
    %v186 = vld [vmem:[%s0 + $0x558] sm:$0xff]
    %v187 = vld [vmem:[%s0 + $0x560] sm:$0xff]
    %v188 = vld [vmem:[%s0 + $0x568] sm:$0xff]
    %v189 = vld [vmem:[%s0 + $0x570] sm:$0xff]
    %v190 = vld [vmem:[%s0 + $0x578] sm:$0xff]
    %v191 = vld [vmem:[%s0 + $0x580] sm:$0xff]
    %v192 = vld [vmem:[%s0 + $0x588] sm:$0xff]
    %v193 = vld [vmem:[%s0 + $0x590] sm:$0xff]
    %v194 = vld [vmem:[%s0 + $0x598] sm:$0xff]
    %v195 = vld [vmem:[%s0 + $0x5a0] sm:$0xff]
    %v196 = vld [vmem:[%s0 + $0x5a8] sm:$0xff]
    %v197 = vld [vmem:[%s0 + $0x5b0] sm:$0xff]
    %v198 = vld [vmem:[%s0 + $0x5b8] sm:$0xff]
    %v199 = vld [vmem:[%s0 + $0x5c0] sm:$0xff]
    %v200 = vld [vmem:[%s0 + $0x5c8] sm:$0xff]
    %v201 = vld [vmem:[%s0 + $0x5d0] sm:$0xff]
    %v202 = vld [vmem:[%s0 + $0x5d8] sm:$0xff]
    %v203 = vld [vmem:[%s0 + $0x5e0] sm:$0xff]
    %v204 = vld [vmem:[%s0 + $0x5e8] sm:$0xff]
    %v205 = vld [vmem:[%s0 + $0x5f0] sm:$0xff]
    %v206 = vld [vmem:[%s0 + $0x5f8] sm:$0xff]
    %v207 = vld [vmem:[%s0 + $0x600] sm:$0xff]
    %v208 = vld [vmem:[%s0 + $0x608] sm:$0xff]
    %v209 = vld [vmem:[%s0 + $0x610] sm:$0xff]
    %v210 = vld [vmem:[%s0 + $0x618] sm:$0xff]
    %v211 = vld [vmem:[%s0 + $0x620] sm:$0xff]
    %v212 = vld [vmem:[%s0 + $0x628] sm:$0xff]
    %v213 = vld [vmem:[%s0 + $0x630] sm:$0xff]
    %v214 = vld [vmem:[%s0 + $0x638] sm:$0xff]
    %v215 = vld [vmem:[%s0 + $0x640] sm:$0xff]
    %v216 = vld [vmem:[%s0 + $0x648] sm:$0xff]
    %v217 = vld [vmem:[%s0 + $0x650] sm:$0xff]
    %v218 = vld [vmem:[%s0 + $0x658] sm:$0xff]
    %v219 = vld [vmem:[%s0 + $0x660] sm:$0xff]
    %v220 = vld [vmem:[%s0 + $0x668] sm:$0xff]
    %v221 = vld [vmem:[%s0 + $0x670] sm:$0xff]
    %v222 = vld [vmem:[%s0 + $0x678] sm:$0xff]
    %v223 = vld [vmem:[%s0 + $0x680] sm:$0xff]
    %v224 = vld [vmem:[%s0 + $0x688] sm:$0xff]
    %v225 = vld [vmem:[%s0 + $0x690] sm:$0xff]
    %v226 = vld [vmem:[%s0 + $0x698] sm:$0xff]
    %v227 = vld [vmem:[%s0 + $0x6a0] sm:$0xff]
    %v228 = vld [vmem:[%s0 + $0x6a8] sm:$0xff]
    %v229 = vld [vmem:[%s0 + $0x6b0] sm:$0xff]
    %v230 = vld [vmem:[%s0 + $0x6b8] sm:$0xff]
    %v231 = vld [vmem:[%s0 + $0x6c0] sm:$0xff]
    %v232 = vld [vmem:[%s0 + $0x6c8] sm:$0xff]
    %v233 = vld [vmem:[%s0 + $0x6d0] sm:$0xff]
    %v234 = vld [vmem:[%s0 + $0x6d8] sm:$0xff]
    %v235 = vld [vmem:[%s0 + $0x6e0] sm:$0xff]
    %v236 = vld [vmem:[%s0 + $0x6e8] sm:$0xff]
    %v237 = vld [vmem:[%s0 + $0x6f0] sm:$0xff]
    %v238 = vld [vmem:[%s0 + $0x6f8] sm:$0xff]
    %v239 = vld [vmem:[%s0 + $0x700] sm:$0xff]
    %v240 = vld [vmem:[%s0 + $0x708] sm:$0xff]
    %v241 = vld [vmem:[%s0 + $0x710] sm:$0xff]
    %v242 = vld [vmem:[%s0 + $0x718] sm:$0xff]
    %v243 = vld [vmem:[%s0 + $0x720] sm:$0xff]
    %v244 = vld [vmem:[%s0 + $0x728] sm:$0xff]
    %v245 = vld [vmem:[%s0 + $0x730] sm:$0xff]
    %v246 = vld [vmem:[%s0 + $0x738] sm:$0xff]
    %v247 = vld [vmem:[%s0 + $0x740] sm:$0xff]
    %v248 = vld [vmem:[%s0 + $0x748] sm:$0xff]
    %v249 = vld [vmem:[%s0 + $0x750] sm:$0xff]
    %v250 = vld [vmem:[%s0 + $0x758] sm:$0xff]
    %v251 = vld [vmem:[%s0 + $0x760] sm:$0xff]
    %v252 = vld [vmem:[%s0 + $0x768] sm:$0xff]
    %v253 = vld [vmem:[%s0 + $0x770] sm:$0xff]
    %v254 = vld [vmem:[%s0 + $0x778] sm:$0xff]
    %v255 = vld [vmem:[%s0 + $0x780] sm:$0xff]
    %v256 = vld [vmem:[%s0 + $0x788] sm:$0xff]
    %v257 = vld [vmem:[%s0 + $0x790] sm:$0xff]
    %v258 = vld [vmem:[%s0 + $0x798] sm:$0xff]
    %v259 = vld [vmem:[%s0 + $0x7a0] sm:$0xff]
    %v260 = vld [vmem:[%s0 + $0x7a8] sm:$0xff]
    %v261 = vld [vmem:[%s0 + $0x7b0] sm:$0xff]
    %v262 = vld [vmem:[%s0 + $0x7b8] sm:$0xff]
    %v263 = vld [vmem:[%s0 + $0x7c0] sm:$0xff]
    %v264 = vld [vmem:[%s0 + $0x7c8] sm:$0xff]
    %v265 = vld [vmem:[%s0 + $0x7d0] sm:$0xff]
    %v266 = vld [vmem:[%s0 + $0x7d8] sm:$0xff]
    %v267 = vld [vmem:[%s0 + $0x7e0] sm:$0xff]
    %v268 = vld [vmem:[%s0 + $0x7e8] sm:$0xff]
    %v269 = vld [vmem:[%s0 + $0x7f0] sm:$0xff]
    %v270 = vld [vmem:[%s0 + $0x7f8] sm:$0xff]
    %v271 = vld [vmem:[%s0 + $0x800] sm:$0xff]
    %v272 = vld [vmem:[%s0 + $0x808] sm:$0xff]
    %v273 = vld [vmem:[%s0 + $0x810] sm:$0xff]
    %v274 = vld [vmem:[%s0 + $0x818] sm:$0xff]
    %v275 = vld [vmem:[%s0 + $0x820] sm:$0xff]
    %v276 = vld [vmem:[%s0 + $0x828] sm:$0xff]
    %v277 = vld [vmem:[%s0 + $0x830] sm:$0xff]
    %v278 = vld [vmem:[%s0 + $0x838] sm:$0xff]
    %v279 = vld [vmem:[%s0 + $0x840] sm:$0xff]
    %v280 = vld [vmem:[%s0 + $0x848] sm:$0xff]
    %v281 = vld [vmem:[%s0 + $0x850] sm:$0xff]
    %v282 = vld [vmem:[%s0 + $0x858] sm:$0xff]
    %v283 = vld [vmem:[%s0 + $0x860] sm:$0xff]
    %v284 = vld [vmem:[%s0 + $0x868] sm:$0xff]
    %v285 = vld [vmem:[%s0 + $0x870] sm:$0xff]
    %v286 = vld [vmem:[%s0 + $0x878] sm:$0xff]
    %v287 = vld [vmem:[%s0 + $0x880] sm:$0xff]
    %v288 = vld [vmem:[%s0 + $0x888] sm:$0xff]
    %v289 = vld [vmem:[%s0 + $0x890] sm:$0xff]
    %v290 = vld [vmem:[%s0 + $0x898] sm:$0xff]
    %v291 = vld [vmem:[%s0 + $0x8a0] sm:$0xff]
    %v292 = vld [vmem:[%s0 + $0x8a8] sm:$0xff]
    %v293 = vld [vmem:[%s0 + $0x8b0] sm:$0xff]
    %v294 = vld [vmem:[%s0 + $0x8b8] sm:$0xff]
    %v295 = vld [vmem:[%s0 + $0x8c0] sm:$0xff]
    %v296 = vld [vmem:[%s0 + $0x8c8] sm:$0xff]
    %v297 = vld [vmem:[%s0 + $0x8d0] sm:$0xff]
    %v298 = vld [vmem:[%s0 + $0x8d8] sm:$0xff]
    %v299 = vld [vmem:[%s0 + $0x8e0] sm:$0xff]
    %v300 = vld [vmem:[%s0 + $0x8e8] sm:$0xff]
    %v301 = vld [vmem:[%s0 + $0x8f0] sm:$0xff]
    %v302 = vld [vmem:[%s0 + $0x8f8] sm:$0xff]
    %v303 = vld [vmem:[%s0 + $0x900] sm:$0xff]
    %v304 = vld [vmem:[%s0 + $0x908] sm:$0xff]
    %v305 = vld [vmem:[%s0 + $0x910] sm:$0xff]
    %v306 = vld [vmem:[%s0 + $0x918] sm:$0xff]
    %v307 = vld [vmem:[%s0 + $0x920] sm:$0xff]
    %v308 = vld [vmem:[%s0 + $0x928] sm:$0xff]
    %v309 = vld [vmem:[%s0 + $0x930] sm:$0xff]
    %v310 = vld [vmem:[%s0 + $0x938] sm:$0xff]
    %v311 = vld [vmem:[%s0 + $0x940] sm:$0xff]
    %v312 = vld [vmem:[%s0 + $0x948] sm:$0xff]
    %v313 = vld [vmem:[%s0 + $0x950] sm:$0xff]
    %v314 = vld [vmem:[%s0 + $0x958] sm:$0xff]
    %v315 = vld [vmem:[%s0 + $0x960] sm:$0xff]
    %v316 = vld [vmem:[%s0 + $0x968] sm:$0xff]
    %v317 = vld [vmem:[%s0 + $0x970] sm:$0xff]
    %v318 = vld [vmem:[%s0 + $0x978] sm:$0xff]
    %v319 = vld [vmem:[%s0 + $0x980] sm:$0xff]
    %v320 = vld [vmem:[%s0 + $0x988] sm:$0xff]
    %v321 = vld [vmem:[%s0 + $0x990] sm:$0xff]
    %v322 = vld [vmem:[%s0 + $0x998] sm:$0xff]
    %v323 = vld [vmem:[%s0 + $0x9a0] sm:$0xff]
    %v324 = vld [vmem:[%s0 + $0x9a8] sm:$0xff]
    %v325 = vld [vmem:[%s0 + $0x9b0] sm:$0xff]
    %v326 = vld [vmem:[%s0 + $0x9b8] sm:$0xff]
    %v327 = vld [vmem:[%s0 + $0x9c0] sm:$0xff]
    %v328 = vld [vmem:[%s0 + $0x9c8] sm:$0xff]
    %v329 = vld [vmem:[%s0 + $0x9d0] sm:$0xff]
    %v330 = vld [vmem:[%s0 + $0x9d8] sm:$0xff]
    %v331 = vld [vmem:[%s0 + $0x9e0] sm:$0xff]
    %v332 = vld [vmem:[%s0 + $0x9e8] sm:$0xff]
    %v333 = vld [vmem:[%s0 + $0x9f0] sm:$0xff]
    %v334 = vld [vmem:[%s0 + $0x9f8] sm:$0xff]
    %vm335 = vcmask 523264
    %v336 = vsel %vm335, %v15, 0.0
    %337 = vadd.xlane.f32.xlu0 %v336
    %v338 = vpop.xlane.xlu0 %337
    %v339 = vsel %vm335, %v16, 0.0
    %340 = vadd.xlane.f32.xlu0 %v339
    %v341 = vpop.xlane.xlu0 %340
    %v342 = vsel %vm335, %v17, 0.0
    %343 = vadd.xlane.f32.xlu0 %v342
    %v344 = vpop.xlane.xlu0 %343
    %v345 = vsel %vm335, %v18, 0.0
    %346 = vadd.xlane.f32.xlu0 %v345
    %v347 = vpop.xlane.xlu0 %346
    %v348 = vsel %vm335, %v19, 0.0
    %349 = vadd.xlane.f32.xlu0 %v348
    %v350 = vpop.xlane.xlu0 %349
    %v351 = vsel %vm335, %v20, 0.0
    %352 = vadd.xlane.f32.xlu0 %v351
    %v353 = vpop.xlane.xlu0 %352
    %v354 = vsel %vm335, %v21, 0.0
    %355 = vadd.xlane.f32.xlu0 %v354
    %v356 = vpop.xlane.xlu0 %355
    %v357 = vsel %vm335, %v22, 0.0
    %358 = vadd.xlane.f32.xlu0 %v357
    %v359 = vpop.xlane.xlu0 %358
    %v360 = vsel %vm335, %v23, 0.0
    %361 = vadd.xlane.f32.xlu0 %v360
    %v362 = vpop.xlane.xlu0 %361
    %v363 = vsel %vm335, %v24, 0.0
    %364 = vadd.xlane.f32.xlu0 %v363
    %v365 = vpop.xlane.xlu0 %364
    %v366 = vsel %vm335, %v25, 0.0
    %367 = vadd.xlane.f32.xlu0 %v366
    %v368 = vpop.xlane.xlu0 %367
    %v369 = vsel %vm335, %v26, 0.0
    %370 = vadd.xlane.f32.xlu0 %v369
    %v371 = vpop.xlane.xlu0 %370
    %v372 = vsel %vm335, %v27, 0.0
    %373 = vadd.xlane.f32.xlu0 %v372
    %v374 = vpop.xlane.xlu0 %373
    %v375 = vsel %vm335, %v28, 0.0
    %376 = vadd.xlane.f32.xlu0 %v375
    %v377 = vpop.xlane.xlu0 %376
    %v378 = vsel %vm335, %v29, 0.0
    %379 = vadd.xlane.f32.xlu0 %v378
    %v380 = vpop.xlane.xlu0 %379
    %v381 = vsel %vm335, %v30, 0.0
    %382 = vadd.xlane.f32.xlu0 %v381
    %v383 = vpop.xlane.xlu0 %382
    %v384 = vsel %vm335, %v31, 0.0
    %385 = vadd.xlane.f32.xlu0 %v384
    %v386 = vpop.xlane.xlu0 %385
    %v387 = vsel %vm335, %v32, 0.0
    %388 = vadd.xlane.f32.xlu0 %v387
    %v389 = vpop.xlane.xlu0 %388
    %v390 = vsel %vm335, %v33, 0.0
    %391 = vadd.xlane.f32.xlu0 %v390
    %v392 = vpop.xlane.xlu0 %391
    %v393 = vsel %vm335, %v34, 0.0
    %394 = vadd.xlane.f32.xlu0 %v393
    %v395 = vpop.xlane.xlu0 %394
    %v396 = vsel %vm335, %v35, 0.0
    %397 = vadd.xlane.f32.xlu0 %v396
    %v398 = vpop.xlane.xlu0 %397
    %v399 = vsel %vm335, %v36, 0.0
    %400 = vadd.xlane.f32.xlu0 %v399
    %v401 = vpop.xlane.xlu0 %400
    %v402 = vsel %vm335, %v37, 0.0
    %403 = vadd.xlane.f32.xlu0 %v402
    %v404 = vpop.xlane.xlu0 %403
    %v405 = vsel %vm335, %v38, 0.0
    %406 = vadd.xlane.f32.xlu0 %v405
    %v407 = vpop.xlane.xlu0 %406
    %v408 = vsel %vm335, %v39, 0.0
    %409 = vadd.xlane.f32.xlu0 %v408
    %v410 = vpop.xlane.xlu0 %409
    %v411 = vsel %vm335, %v40, 0.0
    %412 = vadd.xlane.f32.xlu0 %v411
    %v413 = vpop.xlane.xlu0 %412
    %v414 = vsel %vm335, %v41, 0.0
    %415 = vadd.xlane.f32.xlu0 %v414
    %v416 = vpop.xlane.xlu0 %415
    %v417 = vsel %vm335, %v42, 0.0
    %418 = vadd.xlane.f32.xlu0 %v417
    %v419 = vpop.xlane.xlu0 %418
    %v420 = vsel %vm335, %v43, 0.0
    %421 = vadd.xlane.f32.xlu0 %v420
    %v422 = vpop.xlane.xlu0 %421
    %v423 = vsel %vm335, %v44, 0.0
    %424 = vadd.xlane.f32.xlu0 %v423
    %v425 = vpop.xlane.xlu0 %424
    %v426 = vsel %vm335, %v45, 0.0
    %427 = vadd.xlane.f32.xlu0 %v426
    %v428 = vpop.xlane.xlu0 %427
    %v429 = vsel %vm335, %v46, 0.0
    %430 = vadd.xlane.f32.xlu0 %v429
    %v431 = vpop.xlane.xlu0 %430
    %v432 = vsel %vm335, %v47, 0.0
    %433 = vadd.xlane.f32.xlu0 %v432
    %v434 = vpop.xlane.xlu0 %433
    %v435 = vsel %vm335, %v48, 0.0
    %436 = vadd.xlane.f32.xlu0 %v435
    %v437 = vpop.xlane.xlu0 %436
    %v438 = vsel %vm335, %v49, 0.0
    %439 = vadd.xlane.f32.xlu0 %v438
    %v440 = vpop.xlane.xlu0 %439
    %v441 = vsel %vm335, %v50, 0.0
    %442 = vadd.xlane.f32.xlu0 %v441
    %v443 = vpop.xlane.xlu0 %442
    %v444 = vsel %vm335, %v51, 0.0
    %445 = vadd.xlane.f32.xlu0 %v444
    %v446 = vpop.xlane.xlu0 %445
    %v447 = vsel %vm335, %v52, 0.0
    %448 = vadd.xlane.f32.xlu0 %v447
    %v449 = vpop.xlane.xlu0 %448
    %v450 = vsel %vm335, %v53, 0.0
    %451 = vadd.xlane.f32.xlu0 %v450
    %v452 = vpop.xlane.xlu0 %451
    %v453 = vsel %vm335, %v54, 0.0
    %454 = vadd.xlane.f32.xlu0 %v453
    %v455 = vpop.xlane.xlu0 %454
    %v456 = vsel %vm335, %v55, 0.0
    %457 = vadd.xlane.f32.xlu0 %v456
    %v458 = vpop.xlane.xlu0 %457
    %v459 = vsel %vm335, %v56, 0.0
    %460 = vadd.xlane.f32.xlu0 %v459
    %v461 = vpop.xlane.xlu0 %460
    %v462 = vsel %vm335, %v57, 0.0
    %463 = vadd.xlane.f32.xlu0 %v462
    %v464 = vpop.xlane.xlu0 %463
    %v465 = vsel %vm335, %v58, 0.0
    %466 = vadd.xlane.f32.xlu0 %v465
    %v467 = vpop.xlane.xlu0 %466
    %v468 = vsel %vm335, %v59, 0.0
    %469 = vadd.xlane.f32.xlu0 %v468
    %v470 = vpop.xlane.xlu0 %469
    %v471 = vsel %vm335, %v60, 0.0
    %472 = vadd.xlane.f32.xlu0 %v471
    %v473 = vpop.xlane.xlu0 %472
    %v474 = vsel %vm335, %v61, 0.0
    %475 = vadd.xlane.f32.xlu0 %v474
    %v476 = vpop.xlane.xlu0 %475
    %v477 = vsel %vm335, %v62, 0.0
    %478 = vadd.xlane.f32.xlu0 %v477
    %v479 = vpop.xlane.xlu0 %478
    %v480 = vsel %vm335, %v63, 0.0
    %481 = vadd.xlane.f32.xlu0 %v480
    %v482 = vpop.xlane.xlu0 %481
    %v483 = vsel %vm335, %v64, 0.0
    %484 = vadd.xlane.f32.xlu0 %v483
    %v485 = vpop.xlane.xlu0 %484
    %v486 = vsel %vm335, %v65, 0.0
    %487 = vadd.xlane.f32.xlu0 %v486
    %v488 = vpop.xlane.xlu0 %487
    %v489 = vsel %vm335, %v66, 0.0
    %490 = vadd.xlane.f32.xlu0 %v489
    %v491 = vpop.xlane.xlu0 %490
    %v492 = vsel %vm335, %v67, 0.0
    %493 = vadd.xlane.f32.xlu0 %v492
    %v494 = vpop.xlane.xlu0 %493
    %v495 = vsel %vm335, %v68, 0.0
    %496 = vadd.xlane.f32.xlu0 %v495
    %v497 = vpop.xlane.xlu0 %496
    %v498 = vsel %vm335, %v69, 0.0
    %499 = vadd.xlane.f32.xlu0 %v498
    %v500 = vpop.xlane.xlu0 %499
    %v501 = vsel %vm335, %v70, 0.0
    %502 = vadd.xlane.f32.xlu0 %v501
    %v503 = vpop.xlane.xlu0 %502
    %v504 = vsel %vm335, %v71, 0.0
    %505 = vadd.xlane.f32.xlu0 %v504
    %v506 = vpop.xlane.xlu0 %505
    %v507 = vsel %vm335, %v72, 0.0
    %508 = vadd.xlane.f32.xlu0 %v507
    %v509 = vpop.xlane.xlu0 %508
    %v510 = vsel %vm335, %v73, 0.0
    %511 = vadd.xlane.f32.xlu0 %v510
    %v512 = vpop.xlane.xlu0 %511
    %v513 = vsel %vm335, %v74, 0.0
    %514 = vadd.xlane.f32.xlu0 %v513
    %v515 = vpop.xlane.xlu0 %514
    %v516 = vsel %vm335, %v75, 0.0
    %517 = vadd.xlane.f32.xlu0 %v516
    %v518 = vpop.xlane.xlu0 %517
    %v519 = vsel %vm335, %v76, 0.0
    %520 = vadd.xlane.f32.xlu0 %v519
    %v521 = vpop.xlane.xlu0 %520
    %v522 = vsel %vm335, %v77, 0.0
    %523 = vadd.xlane.f32.xlu0 %v522
    %v524 = vpop.xlane.xlu0 %523
    %v525 = vsel %vm335, %v78, 0.0
    %526 = vadd.xlane.f32.xlu0 %v525
    %v527 = vpop.xlane.xlu0 %526
    %v528 = vsel %vm335, %v79, 0.0
    %529 = vadd.xlane.f32.xlu0 %v528
    %v530 = vpop.xlane.xlu0 %529
    %v531 = vsel %vm335, %v80, 0.0
    %532 = vadd.xlane.f32.xlu0 %v531
    %v533 = vpop.xlane.xlu0 %532
    %v534 = vsel %vm335, %v81, 0.0
    %535 = vadd.xlane.f32.xlu0 %v534
    %v536 = vpop.xlane.xlu0 %535
    %v537 = vsel %vm335, %v82, 0.0
    %538 = vadd.xlane.f32.xlu0 %v537
    %v539 = vpop.xlane.xlu0 %538
    %v540 = vsel %vm335, %v83, 0.0
    %541 = vadd.xlane.f32.xlu0 %v540
    %v542 = vpop.xlane.xlu0 %541
    %v543 = vsel %vm335, %v84, 0.0
    %544 = vadd.xlane.f32.xlu0 %v543
    %v545 = vpop.xlane.xlu0 %544
    %v546 = vsel %vm335, %v85, 0.0
    %547 = vadd.xlane.f32.xlu0 %v546
    %v548 = vpop.xlane.xlu0 %547
    %v549 = vsel %vm335, %v86, 0.0
    %550 = vadd.xlane.f32.xlu0 %v549
    %v551 = vpop.xlane.xlu0 %550
    %v552 = vsel %vm335, %v87, 0.0
    %553 = vadd.xlane.f32.xlu0 %v552
    %v554 = vpop.xlane.xlu0 %553
    %v555 = vsel %vm335, %v88, 0.0
    %556 = vadd.xlane.f32.xlu0 %v555
    %v557 = vpop.xlane.xlu0 %556
    %v558 = vsel %vm335, %v89, 0.0
    %559 = vadd.xlane.f32.xlu0 %v558
    %v560 = vpop.xlane.xlu0 %559
    %v561 = vsel %vm335, %v90, 0.0
    %562 = vadd.xlane.f32.xlu0 %v561
    %v563 = vpop.xlane.xlu0 %562
    %v564 = vsel %vm335, %v91, 0.0
    %565 = vadd.xlane.f32.xlu0 %v564
    %v566 = vpop.xlane.xlu0 %565
    %v567 = vsel %vm335, %v92, 0.0
    %568 = vadd.xlane.f32.xlu0 %v567
    %v569 = vpop.xlane.xlu0 %568
    %v570 = vsel %vm335, %v93, 0.0
    %571 = vadd.xlane.f32.xlu0 %v570
    %v572 = vpop.xlane.xlu0 %571
    %v573 = vsel %vm335, %v94, 0.0
    %574 = vadd.xlane.f32.xlu0 %v573
    %v575 = vpop.xlane.xlu0 %574
    %v576 = vsel %vm335, %v95, 0.0
    %577 = vadd.xlane.f32.xlu0 %v576
    %v578 = vpop.xlane.xlu0 %577
    %v579 = vsel %vm335, %v96, 0.0
    %580 = vadd.xlane.f32.xlu0 %v579
    %v581 = vpop.xlane.xlu0 %580
    %v582 = vsel %vm335, %v97, 0.0
    %583 = vadd.xlane.f32.xlu0 %v582
    %v584 = vpop.xlane.xlu0 %583
    %v585 = vsel %vm335, %v98, 0.0
    %586 = vadd.xlane.f32.xlu0 %v585
    %v587 = vpop.xlane.xlu0 %586
    %v588 = vsel %vm335, %v99, 0.0
    %589 = vadd.xlane.f32.xlu0 %v588
    %v590 = vpop.xlane.xlu0 %589
    %v591 = vsel %vm335, %v100, 0.0
    %592 = vadd.xlane.f32.xlu0 %v591
    %v593 = vpop.xlane.xlu0 %592
    %v594 = vsel %vm335, %v101, 0.0
    %595 = vadd.xlane.f32.xlu0 %v594
    %v596 = vpop.xlane.xlu0 %595
    %v597 = vsel %vm335, %v102, 0.0
    %598 = vadd.xlane.f32.xlu0 %v597
    %v599 = vpop.xlane.xlu0 %598
    %v600 = vsel %vm335, %v103, 0.0
    %601 = vadd.xlane.f32.xlu0 %v600
    %v602 = vpop.xlane.xlu0 %601
    %v603 = vsel %vm335, %v104, 0.0
    %604 = vadd.xlane.f32.xlu0 %v603
    %v605 = vpop.xlane.xlu0 %604
    %v606 = vsel %vm335, %v105, 0.0
    %607 = vadd.xlane.f32.xlu0 %v606
    %v608 = vpop.xlane.xlu0 %607
    %v609 = vsel %vm335, %v106, 0.0
    %610 = vadd.xlane.f32.xlu0 %v609
    %v611 = vpop.xlane.xlu0 %610
    %v612 = vsel %vm335, %v107, 0.0
    %613 = vadd.xlane.f32.xlu0 %v612
    %v614 = vpop.xlane.xlu0 %613
    %v615 = vsel %vm335, %v108, 0.0
    %616 = vadd.xlane.f32.xlu0 %v615
    %v617 = vpop.xlane.xlu0 %616
    %v618 = vsel %vm335, %v109, 0.0
    %619 = vadd.xlane.f32.xlu0 %v618
    %v620 = vpop.xlane.xlu0 %619
    %v621 = vsel %vm335, %v110, 0.0
    %622 = vadd.xlane.f32.xlu0 %v621
    %v623 = vpop.xlane.xlu0 %622
    %v624 = vsel %vm335, %v111, 0.0
    %625 = vadd.xlane.f32.xlu0 %v624
    %v626 = vpop.xlane.xlu0 %625
    %v627 = vsel %vm335, %v112, 0.0
    %628 = vadd.xlane.f32.xlu0 %v627
    %v629 = vpop.xlane.xlu0 %628
    %v630 = vsel %vm335, %v113, 0.0
    %631 = vadd.xlane.f32.xlu0 %v630
    %v632 = vpop.xlane.xlu0 %631
    %v633 = vsel %vm335, %v114, 0.0
    %634 = vadd.xlane.f32.xlu0 %v633
    %v635 = vpop.xlane.xlu0 %634
    %v636 = vsel %vm335, %v115, 0.0
    %637 = vadd.xlane.f32.xlu0 %v636
    %v638 = vpop.xlane.xlu0 %637
    %v639 = vsel %vm335, %v116, 0.0
    %640 = vadd.xlane.f32.xlu0 %v639
    %v641 = vpop.xlane.xlu0 %640
    %v642 = vsel %vm335, %v117, 0.0
    %643 = vadd.xlane.f32.xlu0 %v642
    %v644 = vpop.xlane.xlu0 %643
    %v645 = vsel %vm335, %v118, 0.0
    %646 = vadd.xlane.f32.xlu0 %v645
    %v647 = vpop.xlane.xlu0 %646
    %v648 = vsel %vm335, %v119, 0.0
    %649 = vadd.xlane.f32.xlu0 %v648
    %v650 = vpop.xlane.xlu0 %649
    %v651 = vsel %vm335, %v120, 0.0
    %652 = vadd.xlane.f32.xlu0 %v651
    %v653 = vpop.xlane.xlu0 %652
    %v654 = vsel %vm335, %v121, 0.0
    %655 = vadd.xlane.f32.xlu0 %v654
    %v656 = vpop.xlane.xlu0 %655
    %v657 = vsel %vm335, %v122, 0.0
    %658 = vadd.xlane.f32.xlu0 %v657
    %v659 = vpop.xlane.xlu0 %658
    %v660 = vsel %vm335, %v123, 0.0
    %661 = vadd.xlane.f32.xlu0 %v660
    %v662 = vpop.xlane.xlu0 %661
    %v663 = vsel %vm335, %v124, 0.0
    %664 = vadd.xlane.f32.xlu0 %v663
    %v665 = vpop.xlane.xlu0 %664
    %v666 = vsel %vm335, %v125, 0.0
    %667 = vadd.xlane.f32.xlu0 %v666
    %v668 = vpop.xlane.xlu0 %667
    %v669 = vsel %vm335, %v126, 0.0
    %670 = vadd.xlane.f32.xlu0 %v669
    %v671 = vpop.xlane.xlu0 %670
    %v672 = vsel %vm335, %v127, 0.0
    %673 = vadd.xlane.f32.xlu0 %v672
    %v674 = vpop.xlane.xlu0 %673
    %v675 = vsel %vm335, %v128, 0.0
    %676 = vadd.xlane.f32.xlu0 %v675
    %v677 = vpop.xlane.xlu0 %676
    %v678 = vsel %vm335, %v129, 0.0
    %679 = vadd.xlane.f32.xlu0 %v678
    %v680 = vpop.xlane.xlu0 %679
    %v681 = vsel %vm335, %v130, 0.0
    %682 = vadd.xlane.f32.xlu0 %v681
    %v683 = vpop.xlane.xlu0 %682
    %v684 = vsel %vm335, %v131, 0.0
    %685 = vadd.xlane.f32.xlu0 %v684
    %v686 = vpop.xlane.xlu0 %685
    %v687 = vsel %vm335, %v132, 0.0
    %688 = vadd.xlane.f32.xlu0 %v687
    %v689 = vpop.xlane.xlu0 %688
    %v690 = vsel %vm335, %v133, 0.0
    %691 = vadd.xlane.f32.xlu0 %v690
    %v692 = vpop.xlane.xlu0 %691
    %v693 = vsel %vm335, %v134, 0.0
    %694 = vadd.xlane.f32.xlu0 %v693
    %v695 = vpop.xlane.xlu0 %694
    %v696 = vsel %vm335, %v135, 0.0
    %697 = vadd.xlane.f32.xlu0 %v696
    %v698 = vpop.xlane.xlu0 %697
    %v699 = vsel %vm335, %v136, 0.0
    %700 = vadd.xlane.f32.xlu0 %v699
    %v701 = vpop.xlane.xlu0 %700
    %v702 = vsel %vm335, %v137, 0.0
    %703 = vadd.xlane.f32.xlu0 %v702
    %v704 = vpop.xlane.xlu0 %703
    %v705 = vsel %vm335, %v138, 0.0
    %706 = vadd.xlane.f32.xlu0 %v705
    %v707 = vpop.xlane.xlu0 %706
    %v708 = vsel %vm335, %v139, 0.0
    %709 = vadd.xlane.f32.xlu0 %v708
    %v710 = vpop.xlane.xlu0 %709
    %v711 = vsel %vm335, %v140, 0.0
    %712 = vadd.xlane.f32.xlu0 %v711
    %v713 = vpop.xlane.xlu0 %712
    %v714 = vsel %vm335, %v141, 0.0
    %715 = vadd.xlane.f32.xlu0 %v714
    %v716 = vpop.xlane.xlu0 %715
    %v717 = vsel %vm335, %v142, 0.0
    %718 = vadd.xlane.f32.xlu0 %v717
    %v719 = vpop.xlane.xlu0 %718
    %v720 = vsel %vm335, %v143, 0.0
    %721 = vadd.xlane.f32.xlu0 %v720
    %v722 = vpop.xlane.xlu0 %721
    %v723 = vsel %vm335, %v144, 0.0
    %724 = vadd.xlane.f32.xlu0 %v723
    %v725 = vpop.xlane.xlu0 %724
    %v726 = vsel %vm335, %v145, 0.0
    %727 = vadd.xlane.f32.xlu0 %v726
    %v728 = vpop.xlane.xlu0 %727
    %v729 = vsel %vm335, %v146, 0.0
    %730 = vadd.xlane.f32.xlu0 %v729
    %v731 = vpop.xlane.xlu0 %730
    %v732 = vsel %vm335, %v147, 0.0
    %733 = vadd.xlane.f32.xlu0 %v732
    %v734 = vpop.xlane.xlu0 %733
    %v735 = vsel %vm335, %v148, 0.0
    %736 = vadd.xlane.f32.xlu0 %v735
    %v737 = vpop.xlane.xlu0 %736
    %v738 = vsel %vm335, %v149, 0.0
    %739 = vadd.xlane.f32.xlu0 %v738
    %v740 = vpop.xlane.xlu0 %739
    %v741 = vsel %vm335, %v150, 0.0
    %742 = vadd.xlane.f32.xlu0 %v741
    %v743 = vpop.xlane.xlu0 %742
    %v744 = vsel %vm335, %v151, 0.0
    %745 = vadd.xlane.f32.xlu0 %v744
    %v746 = vpop.xlane.xlu0 %745
    %v747 = vsel %vm335, %v152, 0.0
    %748 = vadd.xlane.f32.xlu0 %v747
    %v749 = vpop.xlane.xlu0 %748
    %v750 = vsel %vm335, %v153, 0.0
    %751 = vadd.xlane.f32.xlu0 %v750
    %v752 = vpop.xlane.xlu0 %751
    %v753 = vsel %vm335, %v154, 0.0
    %754 = vadd.xlane.f32.xlu0 %v753
    %v755 = vpop.xlane.xlu0 %754
    %v756 = vsel %vm335, %v155, 0.0
    %757 = vadd.xlane.f32.xlu0 %v756
    %v758 = vpop.xlane.xlu0 %757
    %v759 = vsel %vm335, %v156, 0.0
    %760 = vadd.xlane.f32.xlu0 %v759
    %v761 = vpop.xlane.xlu0 %760
    %v762 = vsel %vm335, %v157, 0.0
    %763 = vadd.xlane.f32.xlu0 %v762
    %v764 = vpop.xlane.xlu0 %763
    %v765 = vsel %vm335, %v158, 0.0
    %766 = vadd.xlane.f32.xlu0 %v765
    %v767 = vpop.xlane.xlu0 %766
    %v768 = vsel %vm335, %v159, 0.0
    %769 = vadd.xlane.f32.xlu0 %v768
    %v770 = vpop.xlane.xlu0 %769
    %v771 = vsel %vm335, %v160, 0.0
    %772 = vadd.xlane.f32.xlu0 %v771
    %v773 = vpop.xlane.xlu0 %772
    %v774 = vsel %vm335, %v161, 0.0
    %775 = vadd.xlane.f32.xlu0 %v774
    %v776 = vpop.xlane.xlu0 %775
    %v777 = vsel %vm335, %v162, 0.0
    %778 = vadd.xlane.f32.xlu0 %v777
    %v779 = vpop.xlane.xlu0 %778
    %v780 = vsel %vm335, %v163, 0.0
    %781 = vadd.xlane.f32.xlu0 %v780
    %v782 = vpop.xlane.xlu0 %781
    %v783 = vsel %vm335, %v164, 0.0
    %784 = vadd.xlane.f32.xlu0 %v783
    %v785 = vpop.xlane.xlu0 %784
    %v786 = vsel %vm335, %v165, 0.0
    %787 = vadd.xlane.f32.xlu0 %v786
    %v788 = vpop.xlane.xlu0 %787
    %v789 = vsel %vm335, %v166, 0.0
    %790 = vadd.xlane.f32.xlu0 %v789
    %v791 = vpop.xlane.xlu0 %790
    %v792 = vsel %vm335, %v167, 0.0
    %793 = vadd.xlane.f32.xlu0 %v792
    %v794 = vpop.xlane.xlu0 %793
    %v795 = vsel %vm335, %v168, 0.0
    %796 = vadd.xlane.f32.xlu0 %v795
    %v797 = vpop.xlane.xlu0 %796
    %v798 = vsel %vm335, %v169, 0.0
    %799 = vadd.xlane.f32.xlu0 %v798
    %v800 = vpop.xlane.xlu0 %799
    %v801 = vsel %vm335, %v170, 0.0
    %802 = vadd.xlane.f32.xlu0 %v801
    %v803 = vpop.xlane.xlu0 %802
    %v804 = vsel %vm335, %v171, 0.0
    %805 = vadd.xlane.f32.xlu0 %v804
    %v806 = vpop.xlane.xlu0 %805
    %v807 = vsel %vm335, %v172, 0.0
    %808 = vadd.xlane.f32.xlu0 %v807
    %v809 = vpop.xlane.xlu0 %808
    %v810 = vsel %vm335, %v173, 0.0
    %811 = vadd.xlane.f32.xlu0 %v810
    %v812 = vpop.xlane.xlu0 %811
    %v813 = vsel %vm335, %v174, 0.0
    %814 = vadd.xlane.f32.xlu0 %v813
    %v815 = vpop.xlane.xlu0 %814
    %v816 = vsel %vm335, %v175, 0.0
    %817 = vadd.xlane.f32.xlu0 %v816
    %v818 = vpop.xlane.xlu0 %817
    %v819 = vsel %vm335, %v176, 0.0
    %820 = vadd.xlane.f32.xlu0 %v819
    %v821 = vpop.xlane.xlu0 %820
    %v822 = vsel %vm335, %v177, 0.0
    %823 = vadd.xlane.f32.xlu0 %v822
    %v824 = vpop.xlane.xlu0 %823
    %v825 = vsel %vm335, %v178, 0.0
    %826 = vadd.xlane.f32.xlu0 %v825
    %v827 = vpop.xlane.xlu0 %826
    %v828 = vsel %vm335, %v179, 0.0
    %829 = vadd.xlane.f32.xlu0 %v828
    %v830 = vpop.xlane.xlu0 %829
    %v831 = vsel %vm335, %v180, 0.0
    %832 = vadd.xlane.f32.xlu0 %v831
    %v833 = vpop.xlane.xlu0 %832
    %v834 = vsel %vm335, %v181, 0.0
    %835 = vadd.xlane.f32.xlu0 %v834
    %v836 = vpop.xlane.xlu0 %835
    %v837 = vsel %vm335, %v182, 0.0
    %838 = vadd.xlane.f32.xlu0 %v837
    %v839 = vpop.xlane.xlu0 %838
    %v840 = vsel %vm335, %v183, 0.0
    %841 = vadd.xlane.f32.xlu0 %v840
    %v842 = vpop.xlane.xlu0 %841
    %v843 = vsel %vm335, %v184, 0.0
    %844 = vadd.xlane.f32.xlu0 %v843
    %v845 = vpop.xlane.xlu0 %844
    %v846 = vsel %vm335, %v185, 0.0
    %847 = vadd.xlane.f32.xlu0 %v846
    %v848 = vpop.xlane.xlu0 %847
    %v849 = vsel %vm335, %v186, 0.0
    %850 = vadd.xlane.f32.xlu0 %v849
    %v851 = vpop.xlane.xlu0 %850
    %v852 = vsel %vm335, %v187, 0.0
    %853 = vadd.xlane.f32.xlu0 %v852
    %v854 = vpop.xlane.xlu0 %853
    %v855 = vsel %vm335, %v188, 0.0
    %856 = vadd.xlane.f32.xlu0 %v855
    %v857 = vpop.xlane.xlu0 %856
    %v858 = vsel %vm335, %v189, 0.0
    %859 = vadd.xlane.f32.xlu0 %v858
    %v860 = vpop.xlane.xlu0 %859
    %v861 = vsel %vm335, %v190, 0.0
    %862 = vadd.xlane.f32.xlu0 %v861
    %v863 = vpop.xlane.xlu0 %862
    %v864 = vsel %vm335, %v191, 0.0
    %865 = vadd.xlane.f32.xlu0 %v864
    %v866 = vpop.xlane.xlu0 %865
    %v867 = vsel %vm335, %v192, 0.0
    %868 = vadd.xlane.f32.xlu0 %v867
    %v869 = vpop.xlane.xlu0 %868
    %v870 = vsel %vm335, %v193, 0.0
    %871 = vadd.xlane.f32.xlu0 %v870
    %v872 = vpop.xlane.xlu0 %871
    %v873 = vsel %vm335, %v194, 0.0
    %874 = vadd.xlane.f32.xlu0 %v873
    %v875 = vpop.xlane.xlu0 %874
    %v876 = vsel %vm335, %v195, 0.0
    %877 = vadd.xlane.f32.xlu0 %v876
    %v878 = vpop.xlane.xlu0 %877
    %v879 = vsel %vm335, %v196, 0.0
    %880 = vadd.xlane.f32.xlu0 %v879
    %v881 = vpop.xlane.xlu0 %880
    %v882 = vsel %vm335, %v197, 0.0
    %883 = vadd.xlane.f32.xlu0 %v882
    %v884 = vpop.xlane.xlu0 %883
    %v885 = vsel %vm335, %v198, 0.0
    %886 = vadd.xlane.f32.xlu0 %v885
    %v887 = vpop.xlane.xlu0 %886
    %v888 = vsel %vm335, %v199, 0.0
    %889 = vadd.xlane.f32.xlu0 %v888
    %v890 = vpop.xlane.xlu0 %889
    %v891 = vsel %vm335, %v200, 0.0
    %892 = vadd.xlane.f32.xlu0 %v891
    %v893 = vpop.xlane.xlu0 %892
    %v894 = vsel %vm335, %v201, 0.0
    %895 = vadd.xlane.f32.xlu0 %v894
    %v896 = vpop.xlane.xlu0 %895
    %v897 = vsel %vm335, %v202, 0.0
    %898 = vadd.xlane.f32.xlu0 %v897
    %v899 = vpop.xlane.xlu0 %898
    %v900 = vsel %vm335, %v203, 0.0
    %901 = vadd.xlane.f32.xlu0 %v900
    %v902 = vpop.xlane.xlu0 %901
    %v903 = vsel %vm335, %v204, 0.0
    %904 = vadd.xlane.f32.xlu0 %v903
    %v905 = vpop.xlane.xlu0 %904
    %v906 = vsel %vm335, %v205, 0.0
    %907 = vadd.xlane.f32.xlu0 %v906
    %v908 = vpop.xlane.xlu0 %907
    %v909 = vsel %vm335, %v206, 0.0
    %910 = vadd.xlane.f32.xlu0 %v909
    %v911 = vpop.xlane.xlu0 %910
    %v912 = vsel %vm335, %v207, 0.0
    %913 = vadd.xlane.f32.xlu0 %v912
    %v914 = vpop.xlane.xlu0 %913
    %v915 = vsel %vm335, %v208, 0.0
    %916 = vadd.xlane.f32.xlu0 %v915
    %v917 = vpop.xlane.xlu0 %916
    %v918 = vsel %vm335, %v209, 0.0
    %919 = vadd.xlane.f32.xlu0 %v918
    %v920 = vpop.xlane.xlu0 %919
    %v921 = vsel %vm335, %v210, 0.0
    %922 = vadd.xlane.f32.xlu0 %v921
    %v923 = vpop.xlane.xlu0 %922
    %v924 = vsel %vm335, %v211, 0.0
    %925 = vadd.xlane.f32.xlu0 %v924
    %v926 = vpop.xlane.xlu0 %925
    %v927 = vsel %vm335, %v212, 0.0
    %928 = vadd.xlane.f32.xlu0 %v927
    %v929 = vpop.xlane.xlu0 %928
    %v930 = vsel %vm335, %v213, 0.0
    %931 = vadd.xlane.f32.xlu0 %v930
    %v932 = vpop.xlane.xlu0 %931
    %v933 = vsel %vm335, %v214, 0.0
    %934 = vadd.xlane.f32.xlu0 %v933
    %v935 = vpop.xlane.xlu0 %934
    %v936 = vsel %vm335, %v215, 0.0
    %937 = vadd.xlane.f32.xlu0 %v936
    %v938 = vpop.xlane.xlu0 %937
    %v939 = vsel %vm335, %v216, 0.0
    %940 = vadd.xlane.f32.xlu0 %v939
    %v941 = vpop.xlane.xlu0 %940
    %v942 = vsel %vm335, %v217, 0.0
    %943 = vadd.xlane.f32.xlu0 %v942
    %v944 = vpop.xlane.xlu0 %943
    %v945 = vsel %vm335, %v218, 0.0
    %946 = vadd.xlane.f32.xlu0 %v945
    %v947 = vpop.xlane.xlu0 %946
    %v948 = vsel %vm335, %v219, 0.0
    %949 = vadd.xlane.f32.xlu0 %v948
    %v950 = vpop.xlane.xlu0 %949
    %v951 = vsel %vm335, %v220, 0.0
    %952 = vadd.xlane.f32.xlu0 %v951
    %v953 = vpop.xlane.xlu0 %952
    %v954 = vsel %vm335, %v221, 0.0
    %955 = vadd.xlane.f32.xlu0 %v954
    %v956 = vpop.xlane.xlu0 %955
    %v957 = vsel %vm335, %v222, 0.0
    %958 = vadd.xlane.f32.xlu0 %v957
    %v959 = vpop.xlane.xlu0 %958
    %v960 = vsel %vm335, %v223, 0.0
    %961 = vadd.xlane.f32.xlu0 %v960
    %v962 = vpop.xlane.xlu0 %961
    %v963 = vsel %vm335, %v224, 0.0
    %964 = vadd.xlane.f32.xlu0 %v963
    %v965 = vpop.xlane.xlu0 %964
    %v966 = vsel %vm335, %v225, 0.0
    %967 = vadd.xlane.f32.xlu0 %v966
    %v968 = vpop.xlane.xlu0 %967
    %v969 = vsel %vm335, %v226, 0.0
    %970 = vadd.xlane.f32.xlu0 %v969
    %v971 = vpop.xlane.xlu0 %970
    %v972 = vsel %vm335, %v227, 0.0
    %973 = vadd.xlane.f32.xlu0 %v972
    %v974 = vpop.xlane.xlu0 %973
    %v975 = vsel %vm335, %v228, 0.0
    %976 = vadd.xlane.f32.xlu0 %v975
    %v977 = vpop.xlane.xlu0 %976
    %v978 = vsel %vm335, %v229, 0.0
    %979 = vadd.xlane.f32.xlu0 %v978
    %v980 = vpop.xlane.xlu0 %979
    %v981 = vsel %vm335, %v230, 0.0
    %982 = vadd.xlane.f32.xlu0 %v981
    %v983 = vpop.xlane.xlu0 %982
    %v984 = vsel %vm335, %v231, 0.0
    %985 = vadd.xlane.f32.xlu0 %v984
    %v986 = vpop.xlane.xlu0 %985
    %v987 = vsel %vm335, %v232, 0.0
    %988 = vadd.xlane.f32.xlu0 %v987
    %v989 = vpop.xlane.xlu0 %988
    %v990 = vsel %vm335, %v233, 0.0
    %991 = vadd.xlane.f32.xlu0 %v990
    %v992 = vpop.xlane.xlu0 %991
    %v993 = vsel %vm335, %v234, 0.0
    %994 = vadd.xlane.f32.xlu0 %v993
    %v995 = vpop.xlane.xlu0 %994
    %v996 = vsel %vm335, %v235, 0.0
    %997 = vadd.xlane.f32.xlu0 %v996
    %v998 = vpop.xlane.xlu0 %997
    %v999 = vsel %vm335, %v236, 0.0
    %1000 = vadd.xlane.f32.xlu0 %v999
    %v1001 = vpop.xlane.xlu0 %1000
    %v1002 = vsel %vm335, %v237, 0.0
    %1003 = vadd.xlane.f32.xlu0 %v1002
    %v1004 = vpop.xlane.xlu0 %1003
    %v1005 = vsel %vm335, %v238, 0.0
    %1006 = vadd.xlane.f32.xlu0 %v1005
    %v1007 = vpop.xlane.xlu0 %1006
    %v1008 = vsel %vm335, %v239, 0.0
    %1009 = vadd.xlane.f32.xlu0 %v1008
    %v1010 = vpop.xlane.xlu0 %1009
    %v1011 = vsel %vm335, %v240, 0.0
    %1012 = vadd.xlane.f32.xlu0 %v1011
    %v1013 = vpop.xlane.xlu0 %1012
    %v1014 = vsel %vm335, %v241, 0.0
    %1015 = vadd.xlane.f32.xlu0 %v1014
    %v1016 = vpop.xlane.xlu0 %1015
    %v1017 = vsel %vm335, %v242, 0.0
    %1018 = vadd.xlane.f32.xlu0 %v1017
    %v1019 = vpop.xlane.xlu0 %1018
    %v1020 = vsel %vm335, %v243, 0.0
    %1021 = vadd.xlane.f32.xlu0 %v1020
    %v1022 = vpop.xlane.xlu0 %1021
    %v1023 = vsel %vm335, %v244, 0.0
    %1024 = vadd.xlane.f32.xlu0 %v1023
    %v1025 = vpop.xlane.xlu0 %1024
    %v1026 = vsel %vm335, %v245, 0.0
    %1027 = vadd.xlane.f32.xlu0 %v1026
    %v1028 = vpop.xlane.xlu0 %1027
    %v1029 = vsel %vm335, %v246, 0.0
    %1030 = vadd.xlane.f32.xlu0 %v1029
    %v1031 = vpop.xlane.xlu0 %1030
    %v1032 = vsel %vm335, %v247, 0.0
    %1033 = vadd.xlane.f32.xlu0 %v1032
    %v1034 = vpop.xlane.xlu0 %1033
    %v1035 = vsel %vm335, %v248, 0.0
    %1036 = vadd.xlane.f32.xlu0 %v1035
    %v1037 = vpop.xlane.xlu0 %1036
    %v1038 = vsel %vm335, %v249, 0.0
    %1039 = vadd.xlane.f32.xlu0 %v1038
    %v1040 = vpop.xlane.xlu0 %1039
    %v1041 = vsel %vm335, %v250, 0.0
    %1042 = vadd.xlane.f32.xlu0 %v1041
    %v1043 = vpop.xlane.xlu0 %1042
    %v1044 = vsel %vm335, %v251, 0.0
    %1045 = vadd.xlane.f32.xlu0 %v1044
    %v1046 = vpop.xlane.xlu0 %1045
    %v1047 = vsel %vm335, %v252, 0.0
    %1048 = vadd.xlane.f32.xlu0 %v1047
    %v1049 = vpop.xlane.xlu0 %1048
    %v1050 = vsel %vm335, %v253, 0.0
    %1051 = vadd.xlane.f32.xlu0 %v1050
    %v1052 = vpop.xlane.xlu0 %1051
    %v1053 = vsel %vm335, %v254, 0.0
    %1054 = vadd.xlane.f32.xlu0 %v1053
    %v1055 = vpop.xlane.xlu0 %1054
    %v1056 = vsel %vm335, %v255, 0.0
    %1057 = vadd.xlane.f32.xlu0 %v1056
    %v1058 = vpop.xlane.xlu0 %1057
    %v1059 = vsel %vm335, %v256, 0.0
    %1060 = vadd.xlane.f32.xlu0 %v1059
    %v1061 = vpop.xlane.xlu0 %1060
    %v1062 = vsel %vm335, %v257, 0.0
    %1063 = vadd.xlane.f32.xlu0 %v1062
    %v1064 = vpop.xlane.xlu0 %1063
    %v1065 = vsel %vm335, %v258, 0.0
    %1066 = vadd.xlane.f32.xlu0 %v1065
    %v1067 = vpop.xlane.xlu0 %1066
    %v1068 = vsel %vm335, %v259, 0.0
    %1069 = vadd.xlane.f32.xlu0 %v1068
    %v1070 = vpop.xlane.xlu0 %1069
    %v1071 = vsel %vm335, %v260, 0.0
    %1072 = vadd.xlane.f32.xlu0 %v1071
    %v1073 = vpop.xlane.xlu0 %1072
    %v1074 = vsel %vm335, %v261, 0.0
    %1075 = vadd.xlane.f32.xlu0 %v1074
    %v1076 = vpop.xlane.xlu0 %1075
    %v1077 = vsel %vm335, %v262, 0.0
    %1078 = vadd.xlane.f32.xlu0 %v1077
    %v1079 = vpop.xlane.xlu0 %1078
    %v1080 = vsel %vm335, %v263, 0.0
    %1081 = vadd.xlane.f32.xlu0 %v1080
    %v1082 = vpop.xlane.xlu0 %1081
    %v1083 = vsel %vm335, %v264, 0.0
    %1084 = vadd.xlane.f32.xlu0 %v1083
    %v1085 = vpop.xlane.xlu0 %1084
    %v1086 = vsel %vm335, %v265, 0.0
    %1087 = vadd.xlane.f32.xlu0 %v1086
    %v1088 = vpop.xlane.xlu0 %1087
    %v1089 = vsel %vm335, %v266, 0.0
    %1090 = vadd.xlane.f32.xlu0 %v1089
    %v1091 = vpop.xlane.xlu0 %1090
    %v1092 = vsel %vm335, %v267, 0.0
    %1093 = vadd.xlane.f32.xlu0 %v1092
    %v1094 = vpop.xlane.xlu0 %1093
    %v1095 = vsel %vm335, %v268, 0.0
    %1096 = vadd.xlane.f32.xlu0 %v1095
    %v1097 = vpop.xlane.xlu0 %1096
    %v1098 = vsel %vm335, %v269, 0.0
    %1099 = vadd.xlane.f32.xlu0 %v1098
    %v1100 = vpop.xlane.xlu0 %1099
    %v1101 = vsel %vm335, %v270, 0.0
    %1102 = vadd.xlane.f32.xlu0 %v1101
    %v1103 = vpop.xlane.xlu0 %1102
    %v1104 = vsel %vm335, %v271, 0.0
    %1105 = vadd.xlane.f32.xlu0 %v1104
    %v1106 = vpop.xlane.xlu0 %1105
    %v1107 = vsel %vm335, %v272, 0.0
    %1108 = vadd.xlane.f32.xlu0 %v1107
    %v1109 = vpop.xlane.xlu0 %1108
    %v1110 = vsel %vm335, %v273, 0.0
    %1111 = vadd.xlane.f32.xlu0 %v1110
    %v1112 = vpop.xlane.xlu0 %1111
    %v1113 = vsel %vm335, %v274, 0.0
    %1114 = vadd.xlane.f32.xlu0 %v1113
    %v1115 = vpop.xlane.xlu0 %1114
    %v1116 = vsel %vm335, %v275, 0.0
    %1117 = vadd.xlane.f32.xlu0 %v1116
    %v1118 = vpop.xlane.xlu0 %1117
    %v1119 = vsel %vm335, %v276, 0.0
    %1120 = vadd.xlane.f32.xlu0 %v1119
    %v1121 = vpop.xlane.xlu0 %1120
    %v1122 = vsel %vm335, %v277, 0.0
    %1123 = vadd.xlane.f32.xlu0 %v1122
    %v1124 = vpop.xlane.xlu0 %1123
    %v1125 = vsel %vm335, %v278, 0.0
    %1126 = vadd.xlane.f32.xlu0 %v1125
    %v1127 = vpop.xlane.xlu0 %1126
    %v1128 = vsel %vm335, %v279, 0.0
    %1129 = vadd.xlane.f32.xlu0 %v1128
    %v1130 = vpop.xlane.xlu0 %1129
    %v1131 = vsel %vm335, %v280, 0.0
    %1132 = vadd.xlane.f32.xlu0 %v1131
    %v1133 = vpop.xlane.xlu0 %1132
    %v1134 = vsel %vm335, %v281, 0.0
    %1135 = vadd.xlane.f32.xlu0 %v1134
    %v1136 = vpop.xlane.xlu0 %1135
    %v1137 = vsel %vm335, %v282, 0.0
    %1138 = vadd.xlane.f32.xlu0 %v1137
    %v1139 = vpop.xlane.xlu0 %1138
    %v1140 = vsel %vm335, %v283, 0.0
    %1141 = vadd.xlane.f32.xlu0 %v1140
    %v1142 = vpop.xlane.xlu0 %1141
    %v1143 = vsel %vm335, %v284, 0.0
    %1144 = vadd.xlane.f32.xlu0 %v1143
    %v1145 = vpop.xlane.xlu0 %1144
    %v1146 = vsel %vm335, %v285, 0.0
    %1147 = vadd.xlane.f32.xlu0 %v1146
    %v1148 = vpop.xlane.xlu0 %1147
    %v1149 = vsel %vm335, %v286, 0.0
    %1150 = vadd.xlane.f32.xlu0 %v1149
    %v1151 = vpop.xlane.xlu0 %1150
    %v1152 = vsel %vm335, %v287, 0.0
    %1153 = vadd.xlane.f32.xlu0 %v1152
    %v1154 = vpop.xlane.xlu0 %1153
    %v1155 = vsel %vm335, %v288, 0.0
    %1156 = vadd.xlane.f32.xlu0 %v1155
    %v1157 = vpop.xlane.xlu0 %1156
    %v1158 = vsel %vm335, %v289, 0.0
    %1159 = vadd.xlane.f32.xlu0 %v1158
    %v1160 = vpop.xlane.xlu0 %1159
    %v1161 = vsel %vm335, %v290, 0.0
    %1162 = vadd.xlane.f32.xlu0 %v1161
    %v1163 = vpop.xlane.xlu0 %1162
    %v1164 = vsel %vm335, %v291, 0.0
    %1165 = vadd.xlane.f32.xlu0 %v1164
    %v1166 = vpop.xlane.xlu0 %1165
    %v1167 = vsel %vm335, %v292, 0.0
    %1168 = vadd.xlane.f32.xlu0 %v1167
    %v1169 = vpop.xlane.xlu0 %1168
    %v1170 = vsel %vm335, %v293, 0.0
    %1171 = vadd.xlane.f32.xlu0 %v1170
    %v1172 = vpop.xlane.xlu0 %1171
    %v1173 = vsel %vm335, %v294, 0.0
    %1174 = vadd.xlane.f32.xlu0 %v1173
    %v1175 = vpop.xlane.xlu0 %1174
    %v1176 = vsel %vm335, %v295, 0.0
    %1177 = vadd.xlane.f32.xlu0 %v1176
    %v1178 = vpop.xlane.xlu0 %1177
    %v1179 = vsel %vm335, %v296, 0.0
    %1180 = vadd.xlane.f32.xlu0 %v1179
    %v1181 = vpop.xlane.xlu0 %1180
    %v1182 = vsel %vm335, %v297, 0.0
    %1183 = vadd.xlane.f32.xlu0 %v1182
    %v1184 = vpop.xlane.xlu0 %1183
    %v1185 = vsel %vm335, %v298, 0.0
    %1186 = vadd.xlane.f32.xlu0 %v1185
    %v1187 = vpop.xlane.xlu0 %1186
    %v1188 = vsel %vm335, %v299, 0.0
    %1189 = vadd.xlane.f32.xlu0 %v1188
    %v1190 = vpop.xlane.xlu0 %1189
    %v1191 = vsel %vm335, %v300, 0.0
    %1192 = vadd.xlane.f32.xlu0 %v1191
    %v1193 = vpop.xlane.xlu0 %1192
    %v1194 = vsel %vm335, %v301, 0.0
    %1195 = vadd.xlane.f32.xlu0 %v1194
    %v1196 = vpop.xlane.xlu0 %1195
    %v1197 = vsel %vm335, %v302, 0.0
    %1198 = vadd.xlane.f32.xlu0 %v1197
    %v1199 = vpop.xlane.xlu0 %1198
    %v1200 = vsel %vm335, %v303, 0.0
    %1201 = vadd.xlane.f32.xlu0 %v1200
    %v1202 = vpop.xlane.xlu0 %1201
    %v1203 = vsel %vm335, %v304, 0.0
    %1204 = vadd.xlane.f32.xlu0 %v1203
    %v1205 = vpop.xlane.xlu0 %1204
    %v1206 = vsel %vm335, %v305, 0.0
    %1207 = vadd.xlane.f32.xlu0 %v1206
    %v1208 = vpop.xlane.xlu0 %1207
    %v1209 = vsel %vm335, %v306, 0.0
    %1210 = vadd.xlane.f32.xlu0 %v1209
    %v1211 = vpop.xlane.xlu0 %1210
    %v1212 = vsel %vm335, %v307, 0.0
    %1213 = vadd.xlane.f32.xlu0 %v1212
    %v1214 = vpop.xlane.xlu0 %1213
    %v1215 = vsel %vm335, %v308, 0.0
    %1216 = vadd.xlane.f32.xlu0 %v1215
    %v1217 = vpop.xlane.xlu0 %1216
    %v1218 = vsel %vm335, %v309, 0.0
    %1219 = vadd.xlane.f32.xlu0 %v1218
    %v1220 = vpop.xlane.xlu0 %1219
    %v1221 = vsel %vm335, %v310, 0.0
    %1222 = vadd.xlane.f32.xlu0 %v1221
    %v1223 = vpop.xlane.xlu0 %1222
    %v1224 = vsel %vm335, %v311, 0.0
    %1225 = vadd.xlane.f32.xlu0 %v1224
    %v1226 = vpop.xlane.xlu0 %1225
    %v1227 = vsel %vm335, %v312, 0.0
    %1228 = vadd.xlane.f32.xlu0 %v1227
    %v1229 = vpop.xlane.xlu0 %1228
    %v1230 = vsel %vm335, %v313, 0.0
    %1231 = vadd.xlane.f32.xlu0 %v1230
    %v1232 = vpop.xlane.xlu0 %1231
    %v1233 = vsel %vm335, %v314, 0.0
    %1234 = vadd.xlane.f32.xlu0 %v1233
    %v1235 = vpop.xlane.xlu0 %1234
    %v1236 = vsel %vm335, %v315, 0.0
    %1237 = vadd.xlane.f32.xlu0 %v1236
    %v1238 = vpop.xlane.xlu0 %1237
    %v1239 = vsel %vm335, %v316, 0.0
    %1240 = vadd.xlane.f32.xlu0 %v1239
    %v1241 = vpop.xlane.xlu0 %1240
    %v1242 = vsel %vm335, %v317, 0.0
    %1243 = vadd.xlane.f32.xlu0 %v1242
    %v1244 = vpop.xlane.xlu0 %1243
    %v1245 = vsel %vm335, %v318, 0.0
    %1246 = vadd.xlane.f32.xlu0 %v1245
    %v1247 = vpop.xlane.xlu0 %1246
    %v1248 = vsel %vm335, %v319, 0.0
    %1249 = vadd.xlane.f32.xlu0 %v1248
    %v1250 = vpop.xlane.xlu0 %1249
    %v1251 = vsel %vm335, %v320, 0.0
    %1252 = vadd.xlane.f32.xlu0 %v1251
    %v1253 = vpop.xlane.xlu0 %1252
    %v1254 = vsel %vm335, %v321, 0.0
    %1255 = vadd.xlane.f32.xlu0 %v1254
    %v1256 = vpop.xlane.xlu0 %1255
    %v1257 = vsel %vm335, %v322, 0.0
    %1258 = vadd.xlane.f32.xlu0 %v1257
    %v1259 = vpop.xlane.xlu0 %1258
    %v1260 = vsel %vm335, %v323, 0.0
    %1261 = vadd.xlane.f32.xlu0 %v1260
    %v1262 = vpop.xlane.xlu0 %1261
    %v1263 = vsel %vm335, %v324, 0.0
    %1264 = vadd.xlane.f32.xlu0 %v1263
    %v1265 = vpop.xlane.xlu0 %1264
    %v1266 = vsel %vm335, %v325, 0.0
    %1267 = vadd.xlane.f32.xlu0 %v1266
    %v1268 = vpop.xlane.xlu0 %1267
    %v1269 = vsel %vm335, %v326, 0.0
    %1270 = vadd.xlane.f32.xlu0 %v1269
    %v1271 = vpop.xlane.xlu0 %1270
    %v1272 = vsel %vm335, %v327, 0.0
    %1273 = vadd.xlane.f32.xlu0 %v1272
    %v1274 = vpop.xlane.xlu0 %1273
    %v1275 = vsel %vm335, %v328, 0.0
    %1276 = vadd.xlane.f32.xlu0 %v1275
    %v1277 = vpop.xlane.xlu0 %1276
    %v1278 = vsel %vm335, %v329, 0.0
    %1279 = vadd.xlane.f32.xlu0 %v1278
    %v1280 = vpop.xlane.xlu0 %1279
    %v1281 = vsel %vm335, %v330, 0.0
    %1282 = vadd.xlane.f32.xlu0 %v1281
    %v1283 = vpop.xlane.xlu0 %1282
    %v1284 = vsel %vm335, %v331, 0.0
    %1285 = vadd.xlane.f32.xlu0 %v1284
    %v1286 = vpop.xlane.xlu0 %1285
    %v1287 = vsel %vm335, %v332, 0.0
    %1288 = vadd.xlane.f32.xlu0 %v1287
    %v1289 = vpop.xlane.xlu0 %1288
    %v1290 = vsel %vm335, %v333, 0.0
    %1291 = vadd.xlane.f32.xlu0 %v1290
    %v1292 = vpop.xlane.xlu0 %1291
    %v1293 = vsel %vm335, %v334, 0.0
    %1294 = vadd.xlane.f32.xlu0 %v1293
    %v1295 = vpop.xlane.xlu0 %1294
    %v1296 = vld [vmem:[%s1] sm:$0xff]
    %v1297 = vld [vmem:[%s1 + $0x8] sm:$0xff]
    %v1298 = vld [vmem:[%s1 + $0x10] sm:$0xff]
    %v1299 = vld [vmem:[%s1 + $0x18] sm:$0xff]
    %v1300 = vld [vmem:[%s1 + $0x20] sm:$0xff]
    %v1301 = vld [vmem:[%s1 + $0x28] sm:$0xff]
    %v1302 = vld [vmem:[%s1 + $0x30] sm:$0xff]
    %v1303 = vld [vmem:[%s1 + $0x38] sm:$0xff]
    %v1304 = vld [vmem:[%s1 + $0x40] sm:$0xff]
    %v1305 = vld [vmem:[%s1 + $0x48] sm:$0xff]
    %v1306 = vld [vmem:[%s1 + $0x50] sm:$0xff]
    %v1307 = vld [vmem:[%s1 + $0x58] sm:$0xff]
    %v1308 = vld [vmem:[%s1 + $0x60] sm:$0xff]
    %v1309 = vld [vmem:[%s1 + $0x68] sm:$0xff]
    %v1310 = vld [vmem:[%s1 + $0x70] sm:$0xff]
    %v1311 = vld [vmem:[%s1 + $0x78] sm:$0xff]
    %v1312 = vld [vmem:[%s1 + $0x80] sm:$0xff]
    %v1313 = vld [vmem:[%s1 + $0x88] sm:$0xff]
    %v1314 = vld [vmem:[%s1 + $0x90] sm:$0xff]
    %v1315 = vld [vmem:[%s1 + $0x98] sm:$0xff]
    %v1316 = vld [vmem:[%s1 + $0xa0] sm:$0xff]
    %v1317 = vld [vmem:[%s1 + $0xa8] sm:$0xff]
    %v1318 = vld [vmem:[%s1 + $0xb0] sm:$0xff]
    %v1319 = vld [vmem:[%s1 + $0xb8] sm:$0xff]
    %v1320 = vld [vmem:[%s1 + $0xc0] sm:$0xff]
    %v1321 = vld [vmem:[%s1 + $0xc8] sm:$0xff]
    %v1322 = vld [vmem:[%s1 + $0xd0] sm:$0xff]
    %v1323 = vld [vmem:[%s1 + $0xd8] sm:$0xff]
    %v1324 = vld [vmem:[%s1 + $0xe0] sm:$0xff]
    %v1325 = vld [vmem:[%s1 + $0xe8] sm:$0xff]
    %v1326 = vld [vmem:[%s1 + $0xf0] sm:$0xff]
    %v1327 = vld [vmem:[%s1 + $0xf8] sm:$0xff]
    %v1328 = vld [vmem:[%s1 + $0x100] sm:$0xff]
    %v1329 = vld [vmem:[%s1 + $0x108] sm:$0xff]
    %v1330 = vld [vmem:[%s1 + $0x110] sm:$0xff]
    %v1331 = vld [vmem:[%s1 + $0x118] sm:$0xff]
    %v1332 = vld [vmem:[%s1 + $0x120] sm:$0xff]
    %v1333 = vld [vmem:[%s1 + $0x128] sm:$0xff]
    %v1334 = vld [vmem:[%s1 + $0x130] sm:$0xff]
    %v1335 = vld [vmem:[%s1 + $0x138] sm:$0xff]
    %v1336 = vld [vmem:[%s1 + $0x140] sm:$0xff]
    %v1337 = vld [vmem:[%s1 + $0x148] sm:$0xff]
    %v1338 = vld [vmem:[%s1 + $0x150] sm:$0xff]
    %v1339 = vld [vmem:[%s1 + $0x158] sm:$0xff]
    %v1340 = vld [vmem:[%s1 + $0x160] sm:$0xff]
    %v1341 = vld [vmem:[%s1 + $0x168] sm:$0xff]
    %v1342 = vld [vmem:[%s1 + $0x170] sm:$0xff]
    %v1343 = vld [vmem:[%s1 + $0x178] sm:$0xff]
    %v1344 = vld [vmem:[%s1 + $0x180] sm:$0xff]
    %v1345 = vld [vmem:[%s1 + $0x188] sm:$0xff]
    %v1346 = vld [vmem:[%s1 + $0x190] sm:$0xff]
    %v1347 = vld [vmem:[%s1 + $0x198] sm:$0xff]
    %v1348 = vld [vmem:[%s1 + $0x1a0] sm:$0xff]
    %v1349 = vld [vmem:[%s1 + $0x1a8] sm:$0xff]
    %v1350 = vld [vmem:[%s1 + $0x1b0] sm:$0xff]
    %v1351 = vld [vmem:[%s1 + $0x1b8] sm:$0xff]
    %v1352 = vld [vmem:[%s1 + $0x1c0] sm:$0xff]
    %v1353 = vld [vmem:[%s1 + $0x1c8] sm:$0xff]
    %v1354 = vld [vmem:[%s1 + $0x1d0] sm:$0xff]
    %v1355 = vld [vmem:[%s1 + $0x1d8] sm:$0xff]
    %v1356 = vld [vmem:[%s1 + $0x1e0] sm:$0xff]
    %v1357 = vld [vmem:[%s1 + $0x1e8] sm:$0xff]
    %v1358 = vld [vmem:[%s1 + $0x1f0] sm:$0xff]
    %v1359 = vld [vmem:[%s1 + $0x1f8] sm:$0xff]
    %v1360 = vld [vmem:[%s1 + $0x200] sm:$0xff]
    %v1361 = vld [vmem:[%s1 + $0x208] sm:$0xff]
    %v1362 = vld [vmem:[%s1 + $0x210] sm:$0xff]
    %v1363 = vld [vmem:[%s1 + $0x218] sm:$0xff]
    %v1364 = vld [vmem:[%s1 + $0x220] sm:$0xff]
    %v1365 = vld [vmem:[%s1 + $0x228] sm:$0xff]
    %v1366 = vld [vmem:[%s1 + $0x230] sm:$0xff]
    %v1367 = vld [vmem:[%s1 + $0x238] sm:$0xff]
    %v1368 = vld [vmem:[%s1 + $0x240] sm:$0xff]
    %v1369 = vld [vmem:[%s1 + $0x248] sm:$0xff]
    %v1370 = vld [vmem:[%s1 + $0x250] sm:$0xff]
    %v1371 = vld [vmem:[%s1 + $0x258] sm:$0xff]
    %v1372 = vld [vmem:[%s1 + $0x260] sm:$0xff]
    %v1373 = vld [vmem:[%s1 + $0x268] sm:$0xff]
    %v1374 = vld [vmem:[%s1 + $0x270] sm:$0xff]
    %v1375 = vld [vmem:[%s1 + $0x278] sm:$0xff]
    %v1376 = vld [vmem:[%s1 + $0x280] sm:$0xff]
    %v1377 = vld [vmem:[%s1 + $0x288] sm:$0xff]
    %v1378 = vld [vmem:[%s1 + $0x290] sm:$0xff]
    %v1379 = vld [vmem:[%s1 + $0x298] sm:$0xff]
    %v1380 = vld [vmem:[%s1 + $0x2a0] sm:$0xff]
    %v1381 = vld [vmem:[%s1 + $0x2a8] sm:$0xff]
    %v1382 = vld [vmem:[%s1 + $0x2b0] sm:$0xff]
    %v1383 = vld [vmem:[%s1 + $0x2b8] sm:$0xff]
    %v1384 = vld [vmem:[%s1 + $0x2c0] sm:$0xff]
    %v1385 = vld [vmem:[%s1 + $0x2c8] sm:$0xff]
    %v1386 = vld [vmem:[%s1 + $0x2d0] sm:$0xff]
    %v1387 = vld [vmem:[%s1 + $0x2d8] sm:$0xff]
    %v1388 = vld [vmem:[%s1 + $0x2e0] sm:$0xff]
    %v1389 = vld [vmem:[%s1 + $0x2e8] sm:$0xff]
    %v1390 = vld [vmem:[%s1 + $0x2f0] sm:$0xff]
    %v1391 = vld [vmem:[%s1 + $0x2f8] sm:$0xff]
    %v1392 = vld [vmem:[%s1 + $0x300] sm:$0xff]
    %v1393 = vld [vmem:[%s1 + $0x308] sm:$0xff]
    %v1394 = vld [vmem:[%s1 + $0x310] sm:$0xff]
    %v1395 = vld [vmem:[%s1 + $0x318] sm:$0xff]
    %v1396 = vld [vmem:[%s1 + $0x320] sm:$0xff]
    %v1397 = vld [vmem:[%s1 + $0x328] sm:$0xff]
    %v1398 = vld [vmem:[%s1 + $0x330] sm:$0xff]
    %v1399 = vld [vmem:[%s1 + $0x338] sm:$0xff]
    %v1400 = vld [vmem:[%s1 + $0x340] sm:$0xff]
    %v1401 = vld [vmem:[%s1 + $0x348] sm:$0xff]
    %v1402 = vld [vmem:[%s1 + $0x350] sm:$0xff]
    %v1403 = vld [vmem:[%s1 + $0x358] sm:$0xff]
    %v1404 = vld [vmem:[%s1 + $0x360] sm:$0xff]
    %v1405 = vld [vmem:[%s1 + $0x368] sm:$0xff]
    %v1406 = vld [vmem:[%s1 + $0x370] sm:$0xff]
    %v1407 = vld [vmem:[%s1 + $0x378] sm:$0xff]
    %v1408 = vld [vmem:[%s1 + $0x380] sm:$0xff]
    %v1409 = vld [vmem:[%s1 + $0x388] sm:$0xff]
    %v1410 = vld [vmem:[%s1 + $0x390] sm:$0xff]
    %v1411 = vld [vmem:[%s1 + $0x398] sm:$0xff]
    %v1412 = vld [vmem:[%s1 + $0x3a0] sm:$0xff]
    %v1413 = vld [vmem:[%s1 + $0x3a8] sm:$0xff]
    %v1414 = vld [vmem:[%s1 + $0x3b0] sm:$0xff]
    %v1415 = vld [vmem:[%s1 + $0x3b8] sm:$0xff]
    %v1416 = vld [vmem:[%s1 + $0x3c0] sm:$0xff]
    %v1417 = vld [vmem:[%s1 + $0x3c8] sm:$0xff]
    %v1418 = vld [vmem:[%s1 + $0x3d0] sm:$0xff]
    %v1419 = vld [vmem:[%s1 + $0x3d8] sm:$0xff]
    %v1420 = vld [vmem:[%s1 + $0x3e0] sm:$0xff]
    %v1421 = vld [vmem:[%s1 + $0x3e8] sm:$0xff]
    %v1422 = vld [vmem:[%s1 + $0x3f0] sm:$0xff]
    %v1423 = vld [vmem:[%s1 + $0x3f8] sm:$0xff]
    %v1424 = vld [vmem:[%s1 + $0x400] sm:$0xff]
    %v1425 = vld [vmem:[%s1 + $0x408] sm:$0xff]
    %v1426 = vld [vmem:[%s1 + $0x410] sm:$0xff]
    %v1427 = vld [vmem:[%s1 + $0x418] sm:$0xff]
    %v1428 = vld [vmem:[%s1 + $0x420] sm:$0xff]
    %v1429 = vld [vmem:[%s1 + $0x428] sm:$0xff]
    %v1430 = vld [vmem:[%s1 + $0x430] sm:$0xff]
    %v1431 = vld [vmem:[%s1 + $0x438] sm:$0xff]
    %v1432 = vld [vmem:[%s1 + $0x440] sm:$0xff]
    %v1433 = vld [vmem:[%s1 + $0x448] sm:$0xff]
    %v1434 = vld [vmem:[%s1 + $0x450] sm:$0xff]
    %v1435 = vld [vmem:[%s1 + $0x458] sm:$0xff]
    %v1436 = vld [vmem:[%s1 + $0x460] sm:$0xff]
    %v1437 = vld [vmem:[%s1 + $0x468] sm:$0xff]
    %v1438 = vld [vmem:[%s1 + $0x470] sm:$0xff]
    %v1439 = vld [vmem:[%s1 + $0x478] sm:$0xff]
    %v1440 = vld [vmem:[%s1 + $0x480] sm:$0xff]
    %v1441 = vld [vmem:[%s1 + $0x488] sm:$0xff]
    %v1442 = vld [vmem:[%s1 + $0x490] sm:$0xff]
    %v1443 = vld [vmem:[%s1 + $0x498] sm:$0xff]
    %v1444 = vld [vmem:[%s1 + $0x4a0] sm:$0xff]
    %v1445 = vld [vmem:[%s1 + $0x4a8] sm:$0xff]
    %v1446 = vld [vmem:[%s1 + $0x4b0] sm:$0xff]
    %v1447 = vld [vmem:[%s1 + $0x4b8] sm:$0xff]
    %v1448 = vld [vmem:[%s1 + $0x4c0] sm:$0xff]
    %v1449 = vld [vmem:[%s1 + $0x4c8] sm:$0xff]
    %v1450 = vld [vmem:[%s1 + $0x4d0] sm:$0xff]
    %v1451 = vld [vmem:[%s1 + $0x4d8] sm:$0xff]
    %v1452 = vld [vmem:[%s1 + $0x4e0] sm:$0xff]
    %v1453 = vld [vmem:[%s1 + $0x4e8] sm:$0xff]
    %v1454 = vld [vmem:[%s1 + $0x4f0] sm:$0xff]
    %v1455 = vld [vmem:[%s1 + $0x4f8] sm:$0xff]
    %v1456 = vld [vmem:[%s2] sm:$0x1]
    %v1458 = vlaneseq
    %v1459 = vshrl.u32 %v1458, 7
    %v1460 = vsub.s32 0, %v1459
    %v1461 = vrot.slane %v1456, %v1460
    %v1783 = vlaneseq
    %v1784 = vand.u32 %v1783, 127
    %v1785 = vlaneseq
    %v1786 = vshrl.u32 %v1785, 7
    %v1787 = vsub.s32 %v1784, %v1786
    %v1788 = vrot.slane %v338, %v1787
    %v1789 = vadd.s32 %v1784, 4294967288
    %v1790 = vlaneseq
    %v1791 = vshrl.u32 %v1790, 7
    %v1792 = vsub.s32 %v1789, %v1791
    %v1793 = vrot.slane %v341, %v1792
    %vm1794 = vcmask 130112
    %v1795 = vsel %vm1794, %v1793, %v1788
    %v1796 = vadd.s32 %v1784, 4294967280
    %v1797 = vlaneseq
    %v1798 = vshrl.u32 %v1797, 7
    %v1799 = vsub.s32 %v1796, %v1798
    %v1800 = vrot.slane %v344, %v1799
    %vm1801 = vcmask 195712
    %v1802 = vsel %vm1801, %v1800, %v1795
    %v1803 = vadd.s32 %v1784, 4294967272
    %v1804 = vlaneseq
    %v1805 = vshrl.u32 %v1804, 7
    %v1806 = vsub.s32 %v1803, %v1805
    %v1807 = vrot.slane %v347, %v1806
    %vm1808 = vcmask 261312
    %v1809 = vsel %vm1808, %v1807, %v1802
    %v1810 = vadd.s32 %v1784, 4294967264
    %v1811 = vlaneseq
    %v1812 = vshrl.u32 %v1811, 7
    %v1813 = vsub.s32 %v1810, %v1812
    %v1814 = vrot.slane %v350, %v1813
    %vm1815 = vcmask 326912
    %v1816 = vsel %vm1815, %v1814, %v1809
    %v1817 = vadd.s32 %v1784, 4294967256
    %v1818 = vlaneseq
    %v1819 = vshrl.u32 %v1818, 7
    %v1820 = vsub.s32 %v1817, %v1819
    %v1821 = vrot.slane %v353, %v1820
    %vm1822 = vcmask 392512
    %v1823 = vsel %vm1822, %v1821, %v1816
    %v1824 = vadd.s32 %v1784, 4294967248
    %v1825 = vlaneseq
    %v1826 = vshrl.u32 %v1825, 7
    %v1827 = vsub.s32 %v1824, %v1826
    %v1828 = vrot.slane %v356, %v1827
    %vm1829 = vcmask 458112
    %v1830 = vsel %vm1829, %v1828, %v1823
    %v1831 = vadd.s32 %v1784, 4294967240
    %v1832 = vlaneseq
    %v1833 = vshrl.u32 %v1832, 7
    %v1834 = vsub.s32 %v1831, %v1833
    %v1835 = vrot.slane %v359, %v1834
    %vm1836 = vcmask 523712
    %v1837 = vsel %vm1836, %v1835, %v1830
    %v1838 = vadd.s32 %v1784, 4294967232
    %v1839 = vlaneseq
    %v1840 = vshrl.u32 %v1839, 7
    %v1841 = vsub.s32 %v1838, %v1840
    %v1842 = vrot.slane %v362, %v1841
    %vm1843 = vcmask 589312
    %v1844 = vsel %vm1843, %v1842, %v1837
    %v1845 = vadd.s32 %v1784, 4294967224
    %v1846 = vlaneseq
    %v1847 = vshrl.u32 %v1846, 7
    %v1848 = vsub.s32 %v1845, %v1847
    %v1849 = vrot.slane %v365, %v1848
    %vm1850 = vcmask 654912
    %v1851 = vsel %vm1850, %v1849, %v1844
    %v1852 = vadd.s32 %v1784, 4294967216
    %v1853 = vlaneseq
    %v1854 = vshrl.u32 %v1853, 7
    %v1855 = vsub.s32 %v1852, %v1854
    %v1856 = vrot.slane %v368, %v1855
    %vm1857 = vcmask 720512
    %v1858 = vsel %vm1857, %v1856, %v1851
    %v1859 = vadd.s32 %v1784, 4294967208
    %v1860 = vlaneseq
    %v1861 = vshrl.u32 %v1860, 7
    %v1862 = vsub.s32 %v1859, %v1861
    %v1863 = vrot.slane %v371, %v1862
    %vm1864 = vcmask 786112
    %v1865 = vsel %vm1864, %v1863, %v1858
    %v1866 = vadd.s32 %v1784, 4294967200
    %v1867 = vlaneseq
    %v1868 = vshrl.u32 %v1867, 7
    %v1869 = vsub.s32 %v1866, %v1868
    %v1870 = vrot.slane %v374, %v1869
    %vm1871 = vcmask 851712
    %v1872 = vsel %vm1871, %v1870, %v1865
    %v1873 = vadd.s32 %v1784, 4294967192
    %v1874 = vlaneseq
    %v1875 = vshrl.u32 %v1874, 7
    %v1876 = vsub.s32 %v1873, %v1875
    %v1877 = vrot.slane %v377, %v1876
    %vm1878 = vcmask 917312
    %v1879 = vsel %vm1878, %v1877, %v1872
    %v1880 = vadd.s32 %v1784, 4294967184
    %v1881 = vlaneseq
    %v1882 = vshrl.u32 %v1881, 7
    %v1883 = vsub.s32 %v1880, %v1882
    %v1884 = vrot.slane %v380, %v1883
    %vm1885 = vcmask 982912
    %v1886 = vsel %vm1885, %v1884, %v1879
    %v1887 = vadd.s32 %v1784, 4294967176
    %v1888 = vlaneseq
    %v1889 = vshrl.u32 %v1888, 7
    %v1890 = vsub.s32 %v1887, %v1889
    %v1891 = vrot.slane %v383, %v1890
    %vm1892 = vcmask 1048512
    %v1893 = vsel %vm1892, %v1891, %v1886
    %v1894 = vlaneseq
    %v1895 = vshrl.u32 %v1894, 7
    %v1896 = vsub.s32 %v1784, %v1895
    %v1897 = vrot.slane %v386, %v1896
    %v1898 = vlaneseq
    %v1899 = vshrl.u32 %v1898, 7
    %v1900 = vsub.s32 %v1789, %v1899
    %v1901 = vrot.slane %v389, %v1900
    %v1902 = vsel %vm1794, %v1901, %v1897
    %v1903 = vlaneseq
    %v1904 = vshrl.u32 %v1903, 7
    %v1905 = vsub.s32 %v1796, %v1904
    %v1906 = vrot.slane %v392, %v1905
    %v1907 = vsel %vm1801, %v1906, %v1902
    %v1908 = vlaneseq
    %v1909 = vshrl.u32 %v1908, 7
    %v1910 = vsub.s32 %v1803, %v1909
    %v1911 = vrot.slane %v395, %v1910
    %v1912 = vsel %vm1808, %v1911, %v1907
    %v1913 = vlaneseq
    %v1914 = vshrl.u32 %v1913, 7
    %v1915 = vsub.s32 %v1810, %v1914
    %v1916 = vrot.slane %v398, %v1915
    %v1917 = vsel %vm1815, %v1916, %v1912
    %v1918 = vlaneseq
    %v1919 = vshrl.u32 %v1918, 7
    %v1920 = vsub.s32 %v1817, %v1919
    %v1921 = vrot.slane %v401, %v1920
    %v1922 = vsel %vm1822, %v1921, %v1917
    %v1923 = vlaneseq
    %v1924 = vshrl.u32 %v1923, 7
    %v1925 = vsub.s32 %v1824, %v1924
    %v1926 = vrot.slane %v404, %v1925
    %v1927 = vsel %vm1829, %v1926, %v1922
    %v1928 = vlaneseq
    %v1929 = vshrl.u32 %v1928, 7
    %v1930 = vsub.s32 %v1831, %v1929
    %v1931 = vrot.slane %v407, %v1930
    %v1932 = vsel %vm1836, %v1931, %v1927
    %v1933 = vlaneseq
    %v1934 = vshrl.u32 %v1933, 7
    %v1935 = vsub.s32 %v1838, %v1934
    %v1936 = vrot.slane %v410, %v1935
    %v1937 = vsel %vm1843, %v1936, %v1932
    %v1938 = vlaneseq
    %v1939 = vshrl.u32 %v1938, 7
    %v1940 = vsub.s32 %v1845, %v1939
    %v1941 = vrot.slane %v413, %v1940
    %v1942 = vsel %vm1850, %v1941, %v1937
    %v1943 = vlaneseq
    %v1944 = vshrl.u32 %v1943, 7
    %v1945 = vsub.s32 %v1852, %v1944
    %v1946 = vrot.slane %v416, %v1945
    %v1947 = vsel %vm1857, %v1946, %v1942
    %v1948 = vlaneseq
    %v1949 = vshrl.u32 %v1948, 7
    %v1950 = vsub.s32 %v1859, %v1949
    %v1951 = vrot.slane %v419, %v1950
    %v1952 = vsel %vm1864, %v1951, %v1947
    %v1953 = vlaneseq
    %v1954 = vshrl.u32 %v1953, 7
    %v1955 = vsub.s32 %v1866, %v1954
    %v1956 = vrot.slane %v422, %v1955
    %v1957 = vsel %vm1871, %v1956, %v1952
    %v1958 = vlaneseq
    %v1959 = vshrl.u32 %v1958, 7
    %v1960 = vsub.s32 %v1873, %v1959
    %v1961 = vrot.slane %v425, %v1960
    %v1962 = vsel %vm1878, %v1961, %v1957
    %v1963 = vlaneseq
    %v1964 = vshrl.u32 %v1963, 7
    %v1965 = vsub.s32 %v1880, %v1964
    %v1966 = vrot.slane %v428, %v1965
    %v1967 = vsel %vm1885, %v1966, %v1962
    %v1968 = vlaneseq
    %v1969 = vshrl.u32 %v1968, 7
    %v1970 = vsub.s32 %v1887, %v1969
    %v1971 = vrot.slane %v431, %v1970
    %v1972 = vsel %vm1892, %v1971, %v1967
    %v1973 = vlaneseq
    %v1974 = vshrl.u32 %v1973, 7
    %v1975 = vsub.s32 %v1784, %v1974
    %v1976 = vrot.slane %v434, %v1975
    %v1977 = vlaneseq
    %v1978 = vshrl.u32 %v1977, 7
    %v1979 = vsub.s32 %v1789, %v1978
    %v1980 = vrot.slane %v437, %v1979
    %v1981 = vsel %vm1794, %v1980, %v1976
    %v1982 = vlaneseq
    %v1983 = vshrl.u32 %v1982, 7
    %v1984 = vsub.s32 %v1796, %v1983
    %v1985 = vrot.slane %v440, %v1984
    %v1986 = vsel %vm1801, %v1985, %v1981
    %v1987 = vlaneseq
    %v1988 = vshrl.u32 %v1987, 7
    %v1989 = vsub.s32 %v1803, %v1988
    %v1990 = vrot.slane %v443, %v1989
    %v1991 = vsel %vm1808, %v1990, %v1986
    %v1992 = vlaneseq
    %v1993 = vshrl.u32 %v1992, 7
    %v1994 = vsub.s32 %v1810, %v1993
    %v1995 = vrot.slane %v446, %v1994
    %v1996 = vsel %vm1815, %v1995, %v1991
    %v1997 = vlaneseq
    %v1998 = vshrl.u32 %v1997, 7
    %v1999 = vsub.s32 %v1817, %v1998
    %v2000 = vrot.slane %v449, %v1999
    %v2001 = vsel %vm1822, %v2000, %v1996
    %v2002 = vlaneseq
    %v2003 = vshrl.u32 %v2002, 7
    %v2004 = vsub.s32 %v1824, %v2003
    %v2005 = vrot.slane %v452, %v2004
    %v2006 = vsel %vm1829, %v2005, %v2001
    %v2007 = vlaneseq
    %v2008 = vshrl.u32 %v2007, 7
    %v2009 = vsub.s32 %v1831, %v2008
    %v2010 = vrot.slane %v455, %v2009
    %v2011 = vsel %vm1836, %v2010, %v2006
    %v2012 = vlaneseq
    %v2013 = vshrl.u32 %v2012, 7
    %v2014 = vsub.s32 %v1838, %v2013
    %v2015 = vrot.slane %v458, %v2014
    %v2016 = vsel %vm1843, %v2015, %v2011
    %v2017 = vlaneseq
    %v2018 = vshrl.u32 %v2017, 7
    %v2019 = vsub.s32 %v1845, %v2018
    %v2020 = vrot.slane %v461, %v2019
    %v2021 = vsel %vm1850, %v2020, %v2016
    %v2022 = vlaneseq
    %v2023 = vshrl.u32 %v2022, 7
    %v2024 = vsub.s32 %v1852, %v2023
    %v2025 = vrot.slane %v464, %v2024
    %v2026 = vsel %vm1857, %v2025, %v2021
    %v2027 = vlaneseq
    %v2028 = vshrl.u32 %v2027, 7
    %v2029 = vsub.s32 %v1859, %v2028
    %v2030 = vrot.slane %v467, %v2029
    %v2031 = vsel %vm1864, %v2030, %v2026
    %v2032 = vlaneseq
    %v2033 = vshrl.u32 %v2032, 7
    %v2034 = vsub.s32 %v1866, %v2033
    %v2035 = vrot.slane %v470, %v2034
    %v2036 = vsel %vm1871, %v2035, %v2031
    %v2037 = vlaneseq
    %v2038 = vshrl.u32 %v2037, 7
    %v2039 = vsub.s32 %v1873, %v2038
    %v2040 = vrot.slane %v473, %v2039
    %v2041 = vsel %vm1878, %v2040, %v2036
    %v2042 = vlaneseq
    %v2043 = vshrl.u32 %v2042, 7
    %v2044 = vsub.s32 %v1880, %v2043
    %v2045 = vrot.slane %v476, %v2044
    %v2046 = vsel %vm1885, %v2045, %v2041
    %v2047 = vlaneseq
    %v2048 = vshrl.u32 %v2047, 7
    %v2049 = vsub.s32 %v1887, %v2048
    %v2050 = vrot.slane %v479, %v2049
    %v2051 = vsel %vm1892, %v2050, %v2046
    %v2052 = vlaneseq
    %v2053 = vshrl.u32 %v2052, 7
    %v2054 = vsub.s32 %v1784, %v2053
    %v2055 = vrot.slane %v482, %v2054
    %v2056 = vlaneseq
    %v2057 = vshrl.u32 %v2056, 7
    %v2058 = vsub.s32 %v1789, %v2057
    %v2059 = vrot.slane %v485, %v2058
    %v2060 = vsel %vm1794, %v2059, %v2055
    %v2061 = vlaneseq
    %v2062 = vshrl.u32 %v2061, 7
    %v2063 = vsub.s32 %v1796, %v2062
    %v2064 = vrot.slane %v488, %v2063
    %v2065 = vsel %vm1801, %v2064, %v2060
    %v2066 = vlaneseq
    %v2067 = vshrl.u32 %v2066, 7
    %v2068 = vsub.s32 %v1803, %v2067
    %v2069 = vrot.slane %v491, %v2068
    %v2070 = vsel %vm1808, %v2069, %v2065
    %v2071 = vlaneseq
    %v2072 = vshrl.u32 %v2071, 7
    %v2073 = vsub.s32 %v1810, %v2072
    %v2074 = vrot.slane %v494, %v2073
    %v2075 = vsel %vm1815, %v2074, %v2070
    %v2076 = vlaneseq
    %v2077 = vshrl.u32 %v2076, 7
    %v2078 = vsub.s32 %v1817, %v2077
    %v2079 = vrot.slane %v497, %v2078
    %v2080 = vsel %vm1822, %v2079, %v2075
    %v2081 = vlaneseq
    %v2082 = vshrl.u32 %v2081, 7
    %v2083 = vsub.s32 %v1824, %v2082
    %v2084 = vrot.slane %v500, %v2083
    %v2085 = vsel %vm1829, %v2084, %v2080
    %v2086 = vlaneseq
    %v2087 = vshrl.u32 %v2086, 7
    %v2088 = vsub.s32 %v1831, %v2087
    %v2089 = vrot.slane %v503, %v2088
    %v2090 = vsel %vm1836, %v2089, %v2085
    %v2091 = vlaneseq
    %v2092 = vshrl.u32 %v2091, 7
    %v2093 = vsub.s32 %v1838, %v2092
    %v2094 = vrot.slane %v506, %v2093
    %v2095 = vsel %vm1843, %v2094, %v2090
    %v2096 = vlaneseq
    %v2097 = vshrl.u32 %v2096, 7
    %v2098 = vsub.s32 %v1845, %v2097
    %v2099 = vrot.slane %v509, %v2098
    %v2100 = vsel %vm1850, %v2099, %v2095
    %v2101 = vlaneseq
    %v2102 = vshrl.u32 %v2101, 7
    %v2103 = vsub.s32 %v1852, %v2102
    %v2104 = vrot.slane %v512, %v2103
    %v2105 = vsel %vm1857, %v2104, %v2100
    %v2106 = vlaneseq
    %v2107 = vshrl.u32 %v2106, 7
    %v2108 = vsub.s32 %v1859, %v2107
    %v2109 = vrot.slane %v515, %v2108
    %v2110 = vsel %vm1864, %v2109, %v2105
    %v2111 = vlaneseq
    %v2112 = vshrl.u32 %v2111, 7
    %v2113 = vsub.s32 %v1866, %v2112
    %v2114 = vrot.slane %v518, %v2113
    %v2115 = vsel %vm1871, %v2114, %v2110
    %v2116 = vlaneseq
    %v2117 = vshrl.u32 %v2116, 7
    %v2118 = vsub.s32 %v1873, %v2117
    %v2119 = vrot.slane %v521, %v2118
    %v2120 = vsel %vm1878, %v2119, %v2115
    %v2121 = vlaneseq
    %v2122 = vshrl.u32 %v2121, 7
    %v2123 = vsub.s32 %v1880, %v2122
    %v2124 = vrot.slane %v524, %v2123
    %v2125 = vsel %vm1885, %v2124, %v2120
    %v2126 = vlaneseq
    %v2127 = vshrl.u32 %v2126, 7
    %v2128 = vsub.s32 %v1887, %v2127
    %v2129 = vrot.slane %v527, %v2128
    %v2130 = vsel %vm1892, %v2129, %v2125
    %v2131 = vlaneseq
    %v2132 = vshrl.u32 %v2131, 7
    %v2133 = vsub.s32 %v1784, %v2132
    %v2134 = vrot.slane %v530, %v2133
    %v2135 = vlaneseq
    %v2136 = vshrl.u32 %v2135, 7
    %v2137 = vsub.s32 %v1789, %v2136
    %v2138 = vrot.slane %v533, %v2137
    %v2139 = vsel %vm1794, %v2138, %v2134
    %v2140 = vlaneseq
    %v2141 = vshrl.u32 %v2140, 7
    %v2142 = vsub.s32 %v1796, %v2141
    %v2143 = vrot.slane %v536, %v2142
    %v2144 = vsel %vm1801, %v2143, %v2139
    %v2145 = vlaneseq
    %v2146 = vshrl.u32 %v2145, 7
    %v2147 = vsub.s32 %v1803, %v2146
    %v2148 = vrot.slane %v539, %v2147
    %v2149 = vsel %vm1808, %v2148, %v2144
    %v2150 = vlaneseq
    %v2151 = vshrl.u32 %v2150, 7
    %v2152 = vsub.s32 %v1810, %v2151
    %v2153 = vrot.slane %v542, %v2152
    %v2154 = vsel %vm1815, %v2153, %v2149
    %v2155 = vlaneseq
    %v2156 = vshrl.u32 %v2155, 7
    %v2157 = vsub.s32 %v1817, %v2156
    %v2158 = vrot.slane %v545, %v2157
    %v2159 = vsel %vm1822, %v2158, %v2154
    %v2160 = vlaneseq
    %v2161 = vshrl.u32 %v2160, 7
    %v2162 = vsub.s32 %v1824, %v2161
    %v2163 = vrot.slane %v548, %v2162
    %v2164 = vsel %vm1829, %v2163, %v2159
    %v2165 = vlaneseq
    %v2166 = vshrl.u32 %v2165, 7
    %v2167 = vsub.s32 %v1831, %v2166
    %v2168 = vrot.slane %v551, %v2167
    %v2169 = vsel %vm1836, %v2168, %v2164
    %v2170 = vlaneseq
    %v2171 = vshrl.u32 %v2170, 7
    %v2172 = vsub.s32 %v1838, %v2171
    %v2173 = vrot.slane %v554, %v2172
    %v2174 = vsel %vm1843, %v2173, %v2169
    %v2175 = vlaneseq
    %v2176 = vshrl.u32 %v2175, 7
    %v2177 = vsub.s32 %v1845, %v2176
    %v2178 = vrot.slane %v557, %v2177
    %v2179 = vsel %vm1850, %v2178, %v2174
    %v2180 = vlaneseq
    %v2181 = vshrl.u32 %v2180, 7
    %v2182 = vsub.s32 %v1852, %v2181
    %v2183 = vrot.slane %v560, %v2182
    %v2184 = vsel %vm1857, %v2183, %v2179
    %v2185 = vlaneseq
    %v2186 = vshrl.u32 %v2185, 7
    %v2187 = vsub.s32 %v1859, %v2186
    %v2188 = vrot.slane %v563, %v2187
    %v2189 = vsel %vm1864, %v2188, %v2184
    %v2190 = vlaneseq
    %v2191 = vshrl.u32 %v2190, 7
    %v2192 = vsub.s32 %v1866, %v2191
    %v2193 = vrot.slane %v566, %v2192
    %v2194 = vsel %vm1871, %v2193, %v2189
    %v2195 = vlaneseq
    %v2196 = vshrl.u32 %v2195, 7
    %v2197 = vsub.s32 %v1873, %v2196
    %v2198 = vrot.slane %v569, %v2197
    %v2199 = vsel %vm1878, %v2198, %v2194
    %v2200 = vlaneseq
    %v2201 = vshrl.u32 %v2200, 7
    %v2202 = vsub.s32 %v1880, %v2201
    %v2203 = vrot.slane %v572, %v2202
    %v2204 = vsel %vm1885, %v2203, %v2199
    %v2205 = vlaneseq
    %v2206 = vshrl.u32 %v2205, 7
    %v2207 = vsub.s32 %v1887, %v2206
    %v2208 = vrot.slane %v575, %v2207
    %v2209 = vsel %vm1892, %v2208, %v2204
    %v2210 = vlaneseq
    %v2211 = vshrl.u32 %v2210, 7
    %v2212 = vsub.s32 %v1784, %v2211
    %v2213 = vrot.slane %v578, %v2212
    %v2214 = vlaneseq
    %v2215 = vshrl.u32 %v2214, 7
    %v2216 = vsub.s32 %v1789, %v2215
    %v2217 = vrot.slane %v581, %v2216
    %v2218 = vsel %vm1794, %v2217, %v2213
    %v2219 = vlaneseq
    %v2220 = vshrl.u32 %v2219, 7
    %v2221 = vsub.s32 %v1796, %v2220
    %v2222 = vrot.slane %v584, %v2221
    %v2223 = vsel %vm1801, %v2222, %v2218
    %v2224 = vlaneseq
    %v2225 = vshrl.u32 %v2224, 7
    %v2226 = vsub.s32 %v1803, %v2225
    %v2227 = vrot.slane %v587, %v2226
    %v2228 = vsel %vm1808, %v2227, %v2223
    %v2229 = vlaneseq
    %v2230 = vshrl.u32 %v2229, 7
    %v2231 = vsub.s32 %v1810, %v2230
    %v2232 = vrot.slane %v590, %v2231
    %v2233 = vsel %vm1815, %v2232, %v2228
    %v2234 = vlaneseq
    %v2235 = vshrl.u32 %v2234, 7
    %v2236 = vsub.s32 %v1817, %v2235
    %v2237 = vrot.slane %v593, %v2236
    %v2238 = vsel %vm1822, %v2237, %v2233
    %v2239 = vlaneseq
    %v2240 = vshrl.u32 %v2239, 7
    %v2241 = vsub.s32 %v1824, %v2240
    %v2242 = vrot.slane %v596, %v2241
    %v2243 = vsel %vm1829, %v2242, %v2238
    %v2244 = vlaneseq
    %v2245 = vshrl.u32 %v2244, 7
    %v2246 = vsub.s32 %v1831, %v2245
    %v2247 = vrot.slane %v599, %v2246
    %v2248 = vsel %vm1836, %v2247, %v2243
    %v2249 = vlaneseq
    %v2250 = vshrl.u32 %v2249, 7
    %v2251 = vsub.s32 %v1838, %v2250
    %v2252 = vrot.slane %v602, %v2251
    %v2253 = vsel %vm1843, %v2252, %v2248
    %v2254 = vlaneseq
    %v2255 = vshrl.u32 %v2254, 7
    %v2256 = vsub.s32 %v1845, %v2255
    %v2257 = vrot.slane %v605, %v2256
    %v2258 = vsel %vm1850, %v2257, %v2253
    %v2259 = vlaneseq
    %v2260 = vshrl.u32 %v2259, 7
    %v2261 = vsub.s32 %v1852, %v2260
    %v2262 = vrot.slane %v608, %v2261
    %v2263 = vsel %vm1857, %v2262, %v2258
    %v2264 = vlaneseq
    %v2265 = vshrl.u32 %v2264, 7
    %v2266 = vsub.s32 %v1859, %v2265
    %v2267 = vrot.slane %v611, %v2266
    %v2268 = vsel %vm1864, %v2267, %v2263
    %v2269 = vlaneseq
    %v2270 = vshrl.u32 %v2269, 7
    %v2271 = vsub.s32 %v1866, %v2270
    %v2272 = vrot.slane %v614, %v2271
    %v2273 = vsel %vm1871, %v2272, %v2268
    %v2274 = vlaneseq
    %v2275 = vshrl.u32 %v2274, 7
    %v2276 = vsub.s32 %v1873, %v2275
    %v2277 = vrot.slane %v617, %v2276
    %v2278 = vsel %vm1878, %v2277, %v2273
    %v2279 = vlaneseq
    %v2280 = vshrl.u32 %v2279, 7
    %v2281 = vsub.s32 %v1880, %v2280
    %v2282 = vrot.slane %v620, %v2281
    %v2283 = vsel %vm1885, %v2282, %v2278
    %v2284 = vlaneseq
    %v2285 = vshrl.u32 %v2284, 7
    %v2286 = vsub.s32 %v1887, %v2285
    %v2287 = vrot.slane %v623, %v2286
    %v2288 = vsel %vm1892, %v2287, %v2283
    %v2289 = vlaneseq
    %v2290 = vshrl.u32 %v2289, 7
    %v2291 = vsub.s32 %v1784, %v2290
    %v2292 = vrot.slane %v626, %v2291
    %v2293 = vlaneseq
    %v2294 = vshrl.u32 %v2293, 7
    %v2295 = vsub.s32 %v1789, %v2294
    %v2296 = vrot.slane %v629, %v2295
    %v2297 = vsel %vm1794, %v2296, %v2292
    %v2298 = vlaneseq
    %v2299 = vshrl.u32 %v2298, 7
    %v2300 = vsub.s32 %v1796, %v2299
    %v2301 = vrot.slane %v632, %v2300
    %v2302 = vsel %vm1801, %v2301, %v2297
    %v2303 = vlaneseq
    %v2304 = vshrl.u32 %v2303, 7
    %v2305 = vsub.s32 %v1803, %v2304
    %v2306 = vrot.slane %v635, %v2305
    %v2307 = vsel %vm1808, %v2306, %v2302
    %v2308 = vlaneseq
    %v2309 = vshrl.u32 %v2308, 7
    %v2310 = vsub.s32 %v1810, %v2309
    %v2311 = vrot.slane %v638, %v2310
    %v2312 = vsel %vm1815, %v2311, %v2307
    %v2313 = vlaneseq
    %v2314 = vshrl.u32 %v2313, 7
    %v2315 = vsub.s32 %v1817, %v2314
    %v2316 = vrot.slane %v641, %v2315
    %v2317 = vsel %vm1822, %v2316, %v2312
    %v2318 = vlaneseq
    %v2319 = vshrl.u32 %v2318, 7
    %v2320 = vsub.s32 %v1824, %v2319
    %v2321 = vrot.slane %v644, %v2320
    %v2322 = vsel %vm1829, %v2321, %v2317
    %v2323 = vlaneseq
    %v2324 = vshrl.u32 %v2323, 7
    %v2325 = vsub.s32 %v1831, %v2324
    %v2326 = vrot.slane %v647, %v2325
    %v2327 = vsel %vm1836, %v2326, %v2322
    %v2328 = vlaneseq
    %v2329 = vshrl.u32 %v2328, 7
    %v2330 = vsub.s32 %v1838, %v2329
    %v2331 = vrot.slane %v650, %v2330
    %v2332 = vsel %vm1843, %v2331, %v2327
    %v2333 = vlaneseq
    %v2334 = vshrl.u32 %v2333, 7
    %v2335 = vsub.s32 %v1845, %v2334
    %v2336 = vrot.slane %v653, %v2335
    %v2337 = vsel %vm1850, %v2336, %v2332
    %v2338 = vlaneseq
    %v2339 = vshrl.u32 %v2338, 7
    %v2340 = vsub.s32 %v1852, %v2339
    %v2341 = vrot.slane %v656, %v2340
    %v2342 = vsel %vm1857, %v2341, %v2337
    %v2343 = vlaneseq
    %v2344 = vshrl.u32 %v2343, 7
    %v2345 = vsub.s32 %v1859, %v2344
    %v2346 = vrot.slane %v659, %v2345
    %v2347 = vsel %vm1864, %v2346, %v2342
    %v2348 = vlaneseq
    %v2349 = vshrl.u32 %v2348, 7
    %v2350 = vsub.s32 %v1866, %v2349
    %v2351 = vrot.slane %v662, %v2350
    %v2352 = vsel %vm1871, %v2351, %v2347
    %v2353 = vlaneseq
    %v2354 = vshrl.u32 %v2353, 7
    %v2355 = vsub.s32 %v1873, %v2354
    %v2356 = vrot.slane %v665, %v2355
    %v2357 = vsel %vm1878, %v2356, %v2352
    %v2358 = vlaneseq
    %v2359 = vshrl.u32 %v2358, 7
    %v2360 = vsub.s32 %v1880, %v2359
    %v2361 = vrot.slane %v668, %v2360
    %v2362 = vsel %vm1885, %v2361, %v2357
    %v2363 = vlaneseq
    %v2364 = vshrl.u32 %v2363, 7
    %v2365 = vsub.s32 %v1887, %v2364
    %v2366 = vrot.slane %v671, %v2365
    %v2367 = vsel %vm1892, %v2366, %v2362
    %v2368 = vlaneseq
    %v2369 = vshrl.u32 %v2368, 7
    %v2370 = vsub.s32 %v1784, %v2369
    %v2371 = vrot.slane %v674, %v2370
    %v2372 = vlaneseq
    %v2373 = vshrl.u32 %v2372, 7
    %v2374 = vsub.s32 %v1789, %v2373
    %v2375 = vrot.slane %v677, %v2374
    %v2376 = vsel %vm1794, %v2375, %v2371
    %v2377 = vlaneseq
    %v2378 = vshrl.u32 %v2377, 7
    %v2379 = vsub.s32 %v1796, %v2378
    %v2380 = vrot.slane %v680, %v2379
    %v2381 = vsel %vm1801, %v2380, %v2376
    %v2382 = vlaneseq
    %v2383 = vshrl.u32 %v2382, 7
    %v2384 = vsub.s32 %v1803, %v2383
    %v2385 = vrot.slane %v683, %v2384
    %v2386 = vsel %vm1808, %v2385, %v2381
    %v2387 = vlaneseq
    %v2388 = vshrl.u32 %v2387, 7
    %v2389 = vsub.s32 %v1810, %v2388
    %v2390 = vrot.slane %v686, %v2389
    %v2391 = vsel %vm1815, %v2390, %v2386
    %v2392 = vlaneseq
    %v2393 = vshrl.u32 %v2392, 7
    %v2394 = vsub.s32 %v1817, %v2393
    %v2395 = vrot.slane %v689, %v2394
    %v2396 = vsel %vm1822, %v2395, %v2391
    %v2397 = vlaneseq
    %v2398 = vshrl.u32 %v2397, 7
    %v2399 = vsub.s32 %v1824, %v2398
    %v2400 = vrot.slane %v692, %v2399
    %v2401 = vsel %vm1829, %v2400, %v2396
    %v2402 = vlaneseq
    %v2403 = vshrl.u32 %v2402, 7
    %v2404 = vsub.s32 %v1831, %v2403
    %v2405 = vrot.slane %v695, %v2404
    %v2406 = vsel %vm1836, %v2405, %v2401
    %v2407 = vlaneseq
    %v2408 = vshrl.u32 %v2407, 7
    %v2409 = vsub.s32 %v1838, %v2408
    %v2410 = vrot.slane %v698, %v2409
    %v2411 = vsel %vm1843, %v2410, %v2406
    %v2412 = vlaneseq
    %v2413 = vshrl.u32 %v2412, 7
    %v2414 = vsub.s32 %v1845, %v2413
    %v2415 = vrot.slane %v701, %v2414
    %v2416 = vsel %vm1850, %v2415, %v2411
    %v2417 = vlaneseq
    %v2418 = vshrl.u32 %v2417, 7
    %v2419 = vsub.s32 %v1852, %v2418
    %v2420 = vrot.slane %v704, %v2419
    %v2421 = vsel %vm1857, %v2420, %v2416
    %v2422 = vlaneseq
    %v2423 = vshrl.u32 %v2422, 7
    %v2424 = vsub.s32 %v1859, %v2423
    %v2425 = vrot.slane %v707, %v2424
    %v2426 = vsel %vm1864, %v2425, %v2421
    %v2427 = vlaneseq
    %v2428 = vshrl.u32 %v2427, 7
    %v2429 = vsub.s32 %v1866, %v2428
    %v2430 = vrot.slane %v710, %v2429
    %v2431 = vsel %vm1871, %v2430, %v2426
    %v2432 = vlaneseq
    %v2433 = vshrl.u32 %v2432, 7
    %v2434 = vsub.s32 %v1873, %v2433
    %v2435 = vrot.slane %v713, %v2434
    %v2436 = vsel %vm1878, %v2435, %v2431
    %v2437 = vlaneseq
    %v2438 = vshrl.u32 %v2437, 7
    %v2439 = vsub.s32 %v1880, %v2438
    %v2440 = vrot.slane %v716, %v2439
    %v2441 = vsel %vm1885, %v2440, %v2436
    %v2442 = vlaneseq
    %v2443 = vshrl.u32 %v2442, 7
    %v2444 = vsub.s32 %v1887, %v2443
    %v2445 = vrot.slane %v719, %v2444
    %v2446 = vsel %vm1892, %v2445, %v2441
    %v2447 = vlaneseq
    %v2448 = vshrl.u32 %v2447, 7
    %v2449 = vsub.s32 %v1784, %v2448
    %v2450 = vrot.slane %v722, %v2449
    %v2451 = vlaneseq
    %v2452 = vshrl.u32 %v2451, 7
    %v2453 = vsub.s32 %v1789, %v2452
    %v2454 = vrot.slane %v725, %v2453
    %v2455 = vsel %vm1794, %v2454, %v2450
    %v2456 = vlaneseq
    %v2457 = vshrl.u32 %v2456, 7
    %v2458 = vsub.s32 %v1796, %v2457
    %v2459 = vrot.slane %v728, %v2458
    %v2460 = vsel %vm1801, %v2459, %v2455
    %v2461 = vlaneseq
    %v2462 = vshrl.u32 %v2461, 7
    %v2463 = vsub.s32 %v1803, %v2462
    %v2464 = vrot.slane %v731, %v2463
    %v2465 = vsel %vm1808, %v2464, %v2460
    %v2466 = vlaneseq
    %v2467 = vshrl.u32 %v2466, 7
    %v2468 = vsub.s32 %v1810, %v2467
    %v2469 = vrot.slane %v734, %v2468
    %v2470 = vsel %vm1815, %v2469, %v2465
    %v2471 = vlaneseq
    %v2472 = vshrl.u32 %v2471, 7
    %v2473 = vsub.s32 %v1817, %v2472
    %v2474 = vrot.slane %v737, %v2473
    %v2475 = vsel %vm1822, %v2474, %v2470
    %v2476 = vlaneseq
    %v2477 = vshrl.u32 %v2476, 7
    %v2478 = vsub.s32 %v1824, %v2477
    %v2479 = vrot.slane %v740, %v2478
    %v2480 = vsel %vm1829, %v2479, %v2475
    %v2481 = vlaneseq
    %v2482 = vshrl.u32 %v2481, 7
    %v2483 = vsub.s32 %v1831, %v2482
    %v2484 = vrot.slane %v743, %v2483
    %v2485 = vsel %vm1836, %v2484, %v2480
    %v2486 = vlaneseq
    %v2487 = vshrl.u32 %v2486, 7
    %v2488 = vsub.s32 %v1838, %v2487
    %v2489 = vrot.slane %v746, %v2488
    %v2490 = vsel %vm1843, %v2489, %v2485
    %v2491 = vlaneseq
    %v2492 = vshrl.u32 %v2491, 7
    %v2493 = vsub.s32 %v1845, %v2492
    %v2494 = vrot.slane %v749, %v2493
    %v2495 = vsel %vm1850, %v2494, %v2490
    %v2496 = vlaneseq
    %v2497 = vshrl.u32 %v2496, 7
    %v2498 = vsub.s32 %v1852, %v2497
    %v2499 = vrot.slane %v752, %v2498
    %v2500 = vsel %vm1857, %v2499, %v2495
    %v2501 = vlaneseq
    %v2502 = vshrl.u32 %v2501, 7
    %v2503 = vsub.s32 %v1859, %v2502
    %v2504 = vrot.slane %v755, %v2503
    %v2505 = vsel %vm1864, %v2504, %v2500
    %v2506 = vlaneseq
    %v2507 = vshrl.u32 %v2506, 7
    %v2508 = vsub.s32 %v1866, %v2507
    %v2509 = vrot.slane %v758, %v2508
    %v2510 = vsel %vm1871, %v2509, %v2505
    %v2511 = vlaneseq
    %v2512 = vshrl.u32 %v2511, 7
    %v2513 = vsub.s32 %v1873, %v2512
    %v2514 = vrot.slane %v761, %v2513
    %v2515 = vsel %vm1878, %v2514, %v2510
    %v2516 = vlaneseq
    %v2517 = vshrl.u32 %v2516, 7
    %v2518 = vsub.s32 %v1880, %v2517
    %v2519 = vrot.slane %v764, %v2518
    %v2520 = vsel %vm1885, %v2519, %v2515
    %v2521 = vlaneseq
    %v2522 = vshrl.u32 %v2521, 7
    %v2523 = vsub.s32 %v1887, %v2522
    %v2524 = vrot.slane %v767, %v2523
    %v2525 = vsel %vm1892, %v2524, %v2520
    %v2526 = vlaneseq
    %v2527 = vshrl.u32 %v2526, 7
    %v2528 = vsub.s32 %v1784, %v2527
    %v2529 = vrot.slane %v770, %v2528
    %v2530 = vlaneseq
    %v2531 = vshrl.u32 %v2530, 7
    %v2532 = vsub.s32 %v1789, %v2531
    %v2533 = vrot.slane %v773, %v2532
    %v2534 = vsel %vm1794, %v2533, %v2529
    %v2535 = vlaneseq
    %v2536 = vshrl.u32 %v2535, 7
    %v2537 = vsub.s32 %v1796, %v2536
    %v2538 = vrot.slane %v776, %v2537
    %v2539 = vsel %vm1801, %v2538, %v2534
    %v2540 = vlaneseq
    %v2541 = vshrl.u32 %v2540, 7
    %v2542 = vsub.s32 %v1803, %v2541
    %v2543 = vrot.slane %v779, %v2542
    %v2544 = vsel %vm1808, %v2543, %v2539
    %v2545 = vlaneseq
    %v2546 = vshrl.u32 %v2545, 7
    %v2547 = vsub.s32 %v1810, %v2546
    %v2548 = vrot.slane %v782, %v2547
    %v2549 = vsel %vm1815, %v2548, %v2544
    %v2550 = vlaneseq
    %v2551 = vshrl.u32 %v2550, 7
    %v2552 = vsub.s32 %v1817, %v2551
    %v2553 = vrot.slane %v785, %v2552
    %v2554 = vsel %vm1822, %v2553, %v2549
    %v2555 = vlaneseq
    %v2556 = vshrl.u32 %v2555, 7
    %v2557 = vsub.s32 %v1824, %v2556
    %v2558 = vrot.slane %v788, %v2557
    %v2559 = vsel %vm1829, %v2558, %v2554
    %v2560 = vlaneseq
    %v2561 = vshrl.u32 %v2560, 7
    %v2562 = vsub.s32 %v1831, %v2561
    %v2563 = vrot.slane %v791, %v2562
    %v2564 = vsel %vm1836, %v2563, %v2559
    %v2565 = vlaneseq
    %v2566 = vshrl.u32 %v2565, 7
    %v2567 = vsub.s32 %v1838, %v2566
    %v2568 = vrot.slane %v794, %v2567
    %v2569 = vsel %vm1843, %v2568, %v2564
    %v2570 = vlaneseq
    %v2571 = vshrl.u32 %v2570, 7
    %v2572 = vsub.s32 %v1845, %v2571
    %v2573 = vrot.slane %v797, %v2572
    %v2574 = vsel %vm1850, %v2573, %v2569
    %v2575 = vlaneseq
    %v2576 = vshrl.u32 %v2575, 7
    %v2577 = vsub.s32 %v1852, %v2576
    %v2578 = vrot.slane %v800, %v2577
    %v2579 = vsel %vm1857, %v2578, %v2574
    %v2580 = vlaneseq
    %v2581 = vshrl.u32 %v2580, 7
    %v2582 = vsub.s32 %v1859, %v2581
    %v2583 = vrot.slane %v803, %v2582
    %v2584 = vsel %vm1864, %v2583, %v2579
    %v2585 = vlaneseq
    %v2586 = vshrl.u32 %v2585, 7
    %v2587 = vsub.s32 %v1866, %v2586
    %v2588 = vrot.slane %v806, %v2587
    %v2589 = vsel %vm1871, %v2588, %v2584
    %v2590 = vlaneseq
    %v2591 = vshrl.u32 %v2590, 7
    %v2592 = vsub.s32 %v1873, %v2591
    %v2593 = vrot.slane %v809, %v2592
    %v2594 = vsel %vm1878, %v2593, %v2589
    %v2595 = vlaneseq
    %v2596 = vshrl.u32 %v2595, 7
    %v2597 = vsub.s32 %v1880, %v2596
    %v2598 = vrot.slane %v812, %v2597
    %v2599 = vsel %vm1885, %v2598, %v2594
    %v2600 = vlaneseq
    %v2601 = vshrl.u32 %v2600, 7
    %v2602 = vsub.s32 %v1887, %v2601
    %v2603 = vrot.slane %v815, %v2602
    %v2604 = vsel %vm1892, %v2603, %v2599
    %v2605 = vlaneseq
    %v2606 = vshrl.u32 %v2605, 7
    %v2607 = vsub.s32 %v1784, %v2606
    %v2608 = vrot.slane %v818, %v2607
    %v2609 = vlaneseq
    %v2610 = vshrl.u32 %v2609, 7
    %v2611 = vsub.s32 %v1789, %v2610
    %v2612 = vrot.slane %v821, %v2611
    %v2613 = vsel %vm1794, %v2612, %v2608
    %v2614 = vlaneseq
    %v2615 = vshrl.u32 %v2614, 7
    %v2616 = vsub.s32 %v1796, %v2615
    %v2617 = vrot.slane %v824, %v2616
    %v2618 = vsel %vm1801, %v2617, %v2613
    %v2619 = vlaneseq
    %v2620 = vshrl.u32 %v2619, 7
    %v2621 = vsub.s32 %v1803, %v2620
    %v2622 = vrot.slane %v827, %v2621
    %v2623 = vsel %vm1808, %v2622, %v2618
    %v2624 = vlaneseq
    %v2625 = vshrl.u32 %v2624, 7
    %v2626 = vsub.s32 %v1810, %v2625
    %v2627 = vrot.slane %v830, %v2626
    %v2628 = vsel %vm1815, %v2627, %v2623
    %v2629 = vlaneseq
    %v2630 = vshrl.u32 %v2629, 7
    %v2631 = vsub.s32 %v1817, %v2630
    %v2632 = vrot.slane %v833, %v2631
    %v2633 = vsel %vm1822, %v2632, %v2628
    %v2634 = vlaneseq
    %v2635 = vshrl.u32 %v2634, 7
    %v2636 = vsub.s32 %v1824, %v2635
    %v2637 = vrot.slane %v836, %v2636
    %v2638 = vsel %vm1829, %v2637, %v2633
    %v2639 = vlaneseq
    %v2640 = vshrl.u32 %v2639, 7
    %v2641 = vsub.s32 %v1831, %v2640
    %v2642 = vrot.slane %v839, %v2641
    %v2643 = vsel %vm1836, %v2642, %v2638
    %v2644 = vlaneseq
    %v2645 = vshrl.u32 %v2644, 7
    %v2646 = vsub.s32 %v1838, %v2645
    %v2647 = vrot.slane %v842, %v2646
    %v2648 = vsel %vm1843, %v2647, %v2643
    %v2649 = vlaneseq
    %v2650 = vshrl.u32 %v2649, 7
    %v2651 = vsub.s32 %v1845, %v2650
    %v2652 = vrot.slane %v845, %v2651
    %v2653 = vsel %vm1850, %v2652, %v2648
    %v2654 = vlaneseq
    %v2655 = vshrl.u32 %v2654, 7
    %v2656 = vsub.s32 %v1852, %v2655
    %v2657 = vrot.slane %v848, %v2656
    %v2658 = vsel %vm1857, %v2657, %v2653
    %v2659 = vlaneseq
    %v2660 = vshrl.u32 %v2659, 7
    %v2661 = vsub.s32 %v1859, %v2660
    %v2662 = vrot.slane %v851, %v2661
    %v2663 = vsel %vm1864, %v2662, %v2658
    %v2664 = vlaneseq
    %v2665 = vshrl.u32 %v2664, 7
    %v2666 = vsub.s32 %v1866, %v2665
    %v2667 = vrot.slane %v854, %v2666
    %v2668 = vsel %vm1871, %v2667, %v2663
    %v2669 = vlaneseq
    %v2670 = vshrl.u32 %v2669, 7
    %v2671 = vsub.s32 %v1873, %v2670
    %v2672 = vrot.slane %v857, %v2671
    %v2673 = vsel %vm1878, %v2672, %v2668
    %v2674 = vlaneseq
    %v2675 = vshrl.u32 %v2674, 7
    %v2676 = vsub.s32 %v1880, %v2675
    %v2677 = vrot.slane %v860, %v2676
    %v2678 = vsel %vm1885, %v2677, %v2673
    %v2679 = vlaneseq
    %v2680 = vshrl.u32 %v2679, 7
    %v2681 = vsub.s32 %v1887, %v2680
    %v2682 = vrot.slane %v863, %v2681
    %v2683 = vsel %vm1892, %v2682, %v2678
    %v2684 = vlaneseq
    %v2685 = vshrl.u32 %v2684, 7
    %v2686 = vsub.s32 %v1784, %v2685
    %v2687 = vrot.slane %v866, %v2686
    %v2688 = vlaneseq
    %v2689 = vshrl.u32 %v2688, 7
    %v2690 = vsub.s32 %v1789, %v2689
    %v2691 = vrot.slane %v869, %v2690
    %v2692 = vsel %vm1794, %v2691, %v2687
    %v2693 = vlaneseq
    %v2694 = vshrl.u32 %v2693, 7
    %v2695 = vsub.s32 %v1796, %v2694
    %v2696 = vrot.slane %v872, %v2695
    %v2697 = vsel %vm1801, %v2696, %v2692
    %v2698 = vlaneseq
    %v2699 = vshrl.u32 %v2698, 7
    %v2700 = vsub.s32 %v1803, %v2699
    %v2701 = vrot.slane %v875, %v2700
    %v2702 = vsel %vm1808, %v2701, %v2697
    %v2703 = vlaneseq
    %v2704 = vshrl.u32 %v2703, 7
    %v2705 = vsub.s32 %v1810, %v2704
    %v2706 = vrot.slane %v878, %v2705
    %v2707 = vsel %vm1815, %v2706, %v2702
    %v2708 = vlaneseq
    %v2709 = vshrl.u32 %v2708, 7
    %v2710 = vsub.s32 %v1817, %v2709
    %v2711 = vrot.slane %v881, %v2710
    %v2712 = vsel %vm1822, %v2711, %v2707
    %v2713 = vlaneseq
    %v2714 = vshrl.u32 %v2713, 7
    %v2715 = vsub.s32 %v1824, %v2714
    %v2716 = vrot.slane %v884, %v2715
    %v2717 = vsel %vm1829, %v2716, %v2712
    %v2718 = vlaneseq
    %v2719 = vshrl.u32 %v2718, 7
    %v2720 = vsub.s32 %v1831, %v2719
    %v2721 = vrot.slane %v887, %v2720
    %v2722 = vsel %vm1836, %v2721, %v2717
    %v2723 = vlaneseq
    %v2724 = vshrl.u32 %v2723, 7
    %v2725 = vsub.s32 %v1838, %v2724
    %v2726 = vrot.slane %v890, %v2725
    %v2727 = vsel %vm1843, %v2726, %v2722
    %v2728 = vlaneseq
    %v2729 = vshrl.u32 %v2728, 7
    %v2730 = vsub.s32 %v1845, %v2729
    %v2731 = vrot.slane %v893, %v2730
    %v2732 = vsel %vm1850, %v2731, %v2727
    %v2733 = vlaneseq
    %v2734 = vshrl.u32 %v2733, 7
    %v2735 = vsub.s32 %v1852, %v2734
    %v2736 = vrot.slane %v896, %v2735
    %v2737 = vsel %vm1857, %v2736, %v2732
    %v2738 = vlaneseq
    %v2739 = vshrl.u32 %v2738, 7
    %v2740 = vsub.s32 %v1859, %v2739
    %v2741 = vrot.slane %v899, %v2740
    %v2742 = vsel %vm1864, %v2741, %v2737
    %v2743 = vlaneseq
    %v2744 = vshrl.u32 %v2743, 7
    %v2745 = vsub.s32 %v1866, %v2744
    %v2746 = vrot.slane %v902, %v2745
    %v2747 = vsel %vm1871, %v2746, %v2742
    %v2748 = vlaneseq
    %v2749 = vshrl.u32 %v2748, 7
    %v2750 = vsub.s32 %v1873, %v2749
    %v2751 = vrot.slane %v905, %v2750
    %v2752 = vsel %vm1878, %v2751, %v2747
    %v2753 = vlaneseq
    %v2754 = vshrl.u32 %v2753, 7
    %v2755 = vsub.s32 %v1880, %v2754
    %v2756 = vrot.slane %v908, %v2755
    %v2757 = vsel %vm1885, %v2756, %v2752
    %v2758 = vlaneseq
    %v2759 = vshrl.u32 %v2758, 7
    %v2760 = vsub.s32 %v1887, %v2759
    %v2761 = vrot.slane %v911, %v2760
    %v2762 = vsel %vm1892, %v2761, %v2757
    %v2763 = vlaneseq
    %v2764 = vshrl.u32 %v2763, 7
    %v2765 = vsub.s32 %v1784, %v2764
    %v2766 = vrot.slane %v914, %v2765
    %v2767 = vlaneseq
    %v2768 = vshrl.u32 %v2767, 7
    %v2769 = vsub.s32 %v1789, %v2768
    %v2770 = vrot.slane %v917, %v2769
    %v2771 = vsel %vm1794, %v2770, %v2766
    %v2772 = vlaneseq
    %v2773 = vshrl.u32 %v2772, 7
    %v2774 = vsub.s32 %v1796, %v2773
    %v2775 = vrot.slane %v920, %v2774
    %v2776 = vsel %vm1801, %v2775, %v2771
    %v2777 = vlaneseq
    %v2778 = vshrl.u32 %v2777, 7
    %v2779 = vsub.s32 %v1803, %v2778
    %v2780 = vrot.slane %v923, %v2779
    %v2781 = vsel %vm1808, %v2780, %v2776
    %v2782 = vlaneseq
    %v2783 = vshrl.u32 %v2782, 7
    %v2784 = vsub.s32 %v1810, %v2783
    %v2785 = vrot.slane %v926, %v2784
    %v2786 = vsel %vm1815, %v2785, %v2781
    %v2787 = vlaneseq
    %v2788 = vshrl.u32 %v2787, 7
    %v2789 = vsub.s32 %v1817, %v2788
    %v2790 = vrot.slane %v929, %v2789
    %v2791 = vsel %vm1822, %v2790, %v2786
    %v2792 = vlaneseq
    %v2793 = vshrl.u32 %v2792, 7
    %v2794 = vsub.s32 %v1824, %v2793
    %v2795 = vrot.slane %v932, %v2794
    %v2796 = vsel %vm1829, %v2795, %v2791
    %v2797 = vlaneseq
    %v2798 = vshrl.u32 %v2797, 7
    %v2799 = vsub.s32 %v1831, %v2798
    %v2800 = vrot.slane %v935, %v2799
    %v2801 = vsel %vm1836, %v2800, %v2796
    %v2802 = vlaneseq
    %v2803 = vshrl.u32 %v2802, 7
    %v2804 = vsub.s32 %v1838, %v2803
    %v2805 = vrot.slane %v938, %v2804
    %v2806 = vsel %vm1843, %v2805, %v2801
    %v2807 = vlaneseq
    %v2808 = vshrl.u32 %v2807, 7
    %v2809 = vsub.s32 %v1845, %v2808
    %v2810 = vrot.slane %v941, %v2809
    %v2811 = vsel %vm1850, %v2810, %v2806
    %v2812 = vlaneseq
    %v2813 = vshrl.u32 %v2812, 7
    %v2814 = vsub.s32 %v1852, %v2813
    %v2815 = vrot.slane %v944, %v2814
    %v2816 = vsel %vm1857, %v2815, %v2811
    %v2817 = vlaneseq
    %v2818 = vshrl.u32 %v2817, 7
    %v2819 = vsub.s32 %v1859, %v2818
    %v2820 = vrot.slane %v947, %v2819
    %v2821 = vsel %vm1864, %v2820, %v2816
    %v2822 = vlaneseq
    %v2823 = vshrl.u32 %v2822, 7
    %v2824 = vsub.s32 %v1866, %v2823
    %v2825 = vrot.slane %v950, %v2824
    %v2826 = vsel %vm1871, %v2825, %v2821
    %v2827 = vlaneseq
    %v2828 = vshrl.u32 %v2827, 7
    %v2829 = vsub.s32 %v1873, %v2828
    %v2830 = vrot.slane %v953, %v2829
    %v2831 = vsel %vm1878, %v2830, %v2826
    %v2832 = vlaneseq
    %v2833 = vshrl.u32 %v2832, 7
    %v2834 = vsub.s32 %v1880, %v2833
    %v2835 = vrot.slane %v956, %v2834
    %v2836 = vsel %vm1885, %v2835, %v2831
    %v2837 = vlaneseq
    %v2838 = vshrl.u32 %v2837, 7
    %v2839 = vsub.s32 %v1887, %v2838
    %v2840 = vrot.slane %v959, %v2839
    %v2841 = vsel %vm1892, %v2840, %v2836
    %v2842 = vlaneseq
    %v2843 = vshrl.u32 %v2842, 7
    %v2844 = vsub.s32 %v1784, %v2843
    %v2845 = vrot.slane %v962, %v2844
    %v2846 = vlaneseq
    %v2847 = vshrl.u32 %v2846, 7
    %v2848 = vsub.s32 %v1789, %v2847
    %v2849 = vrot.slane %v965, %v2848
    %v2850 = vsel %vm1794, %v2849, %v2845
    %v2851 = vlaneseq
    %v2852 = vshrl.u32 %v2851, 7
    %v2853 = vsub.s32 %v1796, %v2852
    %v2854 = vrot.slane %v968, %v2853
    %v2855 = vsel %vm1801, %v2854, %v2850
    %v2856 = vlaneseq
    %v2857 = vshrl.u32 %v2856, 7
    %v2858 = vsub.s32 %v1803, %v2857
    %v2859 = vrot.slane %v971, %v2858
    %v2860 = vsel %vm1808, %v2859, %v2855
    %v2861 = vlaneseq
    %v2862 = vshrl.u32 %v2861, 7
    %v2863 = vsub.s32 %v1810, %v2862
    %v2864 = vrot.slane %v974, %v2863
    %v2865 = vsel %vm1815, %v2864, %v2860
    %v2866 = vlaneseq
    %v2867 = vshrl.u32 %v2866, 7
    %v2868 = vsub.s32 %v1817, %v2867
    %v2869 = vrot.slane %v977, %v2868
    %v2870 = vsel %vm1822, %v2869, %v2865
    %v2871 = vlaneseq
    %v2872 = vshrl.u32 %v2871, 7
    %v2873 = vsub.s32 %v1824, %v2872
    %v2874 = vrot.slane %v980, %v2873
    %v2875 = vsel %vm1829, %v2874, %v2870
    %v2876 = vlaneseq
    %v2877 = vshrl.u32 %v2876, 7
    %v2878 = vsub.s32 %v1831, %v2877
    %v2879 = vrot.slane %v983, %v2878
    %v2880 = vsel %vm1836, %v2879, %v2875
    %v2881 = vlaneseq
    %v2882 = vshrl.u32 %v2881, 7
    %v2883 = vsub.s32 %v1838, %v2882
    %v2884 = vrot.slane %v986, %v2883
    %v2885 = vsel %vm1843, %v2884, %v2880
    %v2886 = vlaneseq
    %v2887 = vshrl.u32 %v2886, 7
    %v2888 = vsub.s32 %v1845, %v2887
    %v2889 = vrot.slane %v989, %v2888
    %v2890 = vsel %vm1850, %v2889, %v2885
    %v2891 = vlaneseq
    %v2892 = vshrl.u32 %v2891, 7
    %v2893 = vsub.s32 %v1852, %v2892
    %v2894 = vrot.slane %v992, %v2893
    %v2895 = vsel %vm1857, %v2894, %v2890
    %v2896 = vlaneseq
    %v2897 = vshrl.u32 %v2896, 7
    %v2898 = vsub.s32 %v1859, %v2897
    %v2899 = vrot.slane %v995, %v2898
    %v2900 = vsel %vm1864, %v2899, %v2895
    %v2901 = vlaneseq
    %v2902 = vshrl.u32 %v2901, 7
    %v2903 = vsub.s32 %v1866, %v2902
    %v2904 = vrot.slane %v998, %v2903
    %v2905 = vsel %vm1871, %v2904, %v2900
    %v2906 = vlaneseq
    %v2907 = vshrl.u32 %v2906, 7
    %v2908 = vsub.s32 %v1873, %v2907
    %v2909 = vrot.slane %v1001, %v2908
    %v2910 = vsel %vm1878, %v2909, %v2905
    %v2911 = vlaneseq
    %v2912 = vshrl.u32 %v2911, 7
    %v2913 = vsub.s32 %v1880, %v2912
    %v2914 = vrot.slane %v1004, %v2913
    %v2915 = vsel %vm1885, %v2914, %v2910
    %v2916 = vlaneseq
    %v2917 = vshrl.u32 %v2916, 7
    %v2918 = vsub.s32 %v1887, %v2917
    %v2919 = vrot.slane %v1007, %v2918
    %v2920 = vsel %vm1892, %v2919, %v2915
    %v2921 = vlaneseq
    %v2922 = vshrl.u32 %v2921, 7
    %v2923 = vsub.s32 %v1784, %v2922
    %v2924 = vrot.slane %v1010, %v2923
    %v2925 = vlaneseq
    %v2926 = vshrl.u32 %v2925, 7
    %v2927 = vsub.s32 %v1789, %v2926
    %v2928 = vrot.slane %v1013, %v2927
    %v2929 = vsel %vm1794, %v2928, %v2924
    %v2930 = vlaneseq
    %v2931 = vshrl.u32 %v2930, 7
    %v2932 = vsub.s32 %v1796, %v2931
    %v2933 = vrot.slane %v1016, %v2932
    %v2934 = vsel %vm1801, %v2933, %v2929
    %v2935 = vlaneseq
    %v2936 = vshrl.u32 %v2935, 7
    %v2937 = vsub.s32 %v1803, %v2936
    %v2938 = vrot.slane %v1019, %v2937
    %v2939 = vsel %vm1808, %v2938, %v2934
    %v2940 = vlaneseq
    %v2941 = vshrl.u32 %v2940, 7
    %v2942 = vsub.s32 %v1810, %v2941
    %v2943 = vrot.slane %v1022, %v2942
    %v2944 = vsel %vm1815, %v2943, %v2939
    %v2945 = vlaneseq
    %v2946 = vshrl.u32 %v2945, 7
    %v2947 = vsub.s32 %v1817, %v2946
    %v2948 = vrot.slane %v1025, %v2947
    %v2949 = vsel %vm1822, %v2948, %v2944
    %v2950 = vlaneseq
    %v2951 = vshrl.u32 %v2950, 7
    %v2952 = vsub.s32 %v1824, %v2951
    %v2953 = vrot.slane %v1028, %v2952
    %v2954 = vsel %vm1829, %v2953, %v2949
    %v2955 = vlaneseq
    %v2956 = vshrl.u32 %v2955, 7
    %v2957 = vsub.s32 %v1831, %v2956
    %v2958 = vrot.slane %v1031, %v2957
    %v2959 = vsel %vm1836, %v2958, %v2954
    %v2960 = vlaneseq
    %v2961 = vshrl.u32 %v2960, 7
    %v2962 = vsub.s32 %v1838, %v2961
    %v2963 = vrot.slane %v1034, %v2962
    %v2964 = vsel %vm1843, %v2963, %v2959
    %v2965 = vlaneseq
    %v2966 = vshrl.u32 %v2965, 7
    %v2967 = vsub.s32 %v1845, %v2966
    %v2968 = vrot.slane %v1037, %v2967
    %v2969 = vsel %vm1850, %v2968, %v2964
    %v2970 = vlaneseq
    %v2971 = vshrl.u32 %v2970, 7
    %v2972 = vsub.s32 %v1852, %v2971
    %v2973 = vrot.slane %v1040, %v2972
    %v2974 = vsel %vm1857, %v2973, %v2969
    %v2975 = vlaneseq
    %v2976 = vshrl.u32 %v2975, 7
    %v2977 = vsub.s32 %v1859, %v2976
    %v2978 = vrot.slane %v1043, %v2977
    %v2979 = vsel %vm1864, %v2978, %v2974
    %v2980 = vlaneseq
    %v2981 = vshrl.u32 %v2980, 7
    %v2982 = vsub.s32 %v1866, %v2981
    %v2983 = vrot.slane %v1046, %v2982
    %v2984 = vsel %vm1871, %v2983, %v2979
    %v2985 = vlaneseq
    %v2986 = vshrl.u32 %v2985, 7
    %v2987 = vsub.s32 %v1873, %v2986
    %v2988 = vrot.slane %v1049, %v2987
    %v2989 = vsel %vm1878, %v2988, %v2984
    %v2990 = vlaneseq
    %v2991 = vshrl.u32 %v2990, 7
    %v2992 = vsub.s32 %v1880, %v2991
    %v2993 = vrot.slane %v1052, %v2992
    %v2994 = vsel %vm1885, %v2993, %v2989
    %v2995 = vlaneseq
    %v2996 = vshrl.u32 %v2995, 7
    %v2997 = vsub.s32 %v1887, %v2996
    %v2998 = vrot.slane %v1055, %v2997
    %v2999 = vsel %vm1892, %v2998, %v2994
    %v3000 = vlaneseq
    %v3001 = vshrl.u32 %v3000, 7
    %v3002 = vsub.s32 %v1784, %v3001
    %v3003 = vrot.slane %v1058, %v3002
    %v3004 = vlaneseq
    %v3005 = vshrl.u32 %v3004, 7
    %v3006 = vsub.s32 %v1789, %v3005
    %v3007 = vrot.slane %v1061, %v3006
    %v3008 = vsel %vm1794, %v3007, %v3003
    %v3009 = vlaneseq
    %v3010 = vshrl.u32 %v3009, 7
    %v3011 = vsub.s32 %v1796, %v3010
    %v3012 = vrot.slane %v1064, %v3011
    %v3013 = vsel %vm1801, %v3012, %v3008
    %v3014 = vlaneseq
    %v3015 = vshrl.u32 %v3014, 7
    %v3016 = vsub.s32 %v1803, %v3015
    %v3017 = vrot.slane %v1067, %v3016
    %v3018 = vsel %vm1808, %v3017, %v3013
    %v3019 = vlaneseq
    %v3020 = vshrl.u32 %v3019, 7
    %v3021 = vsub.s32 %v1810, %v3020
    %v3022 = vrot.slane %v1070, %v3021
    %v3023 = vsel %vm1815, %v3022, %v3018
    %v3024 = vlaneseq
    %v3025 = vshrl.u32 %v3024, 7
    %v3026 = vsub.s32 %v1817, %v3025
    %v3027 = vrot.slane %v1073, %v3026
    %v3028 = vsel %vm1822, %v3027, %v3023
    %v3029 = vlaneseq
    %v3030 = vshrl.u32 %v3029, 7
    %v3031 = vsub.s32 %v1824, %v3030
    %v3032 = vrot.slane %v1076, %v3031
    %v3033 = vsel %vm1829, %v3032, %v3028
    %v3034 = vlaneseq
    %v3035 = vshrl.u32 %v3034, 7
    %v3036 = vsub.s32 %v1831, %v3035
    %v3037 = vrot.slane %v1079, %v3036
    %v3038 = vsel %vm1836, %v3037, %v3033
    %v3039 = vlaneseq
    %v3040 = vshrl.u32 %v3039, 7
    %v3041 = vsub.s32 %v1838, %v3040
    %v3042 = vrot.slane %v1082, %v3041
    %v3043 = vsel %vm1843, %v3042, %v3038
    %v3044 = vlaneseq
    %v3045 = vshrl.u32 %v3044, 7
    %v3046 = vsub.s32 %v1845, %v3045
    %v3047 = vrot.slane %v1085, %v3046
    %v3048 = vsel %vm1850, %v3047, %v3043
    %v3049 = vlaneseq
    %v3050 = vshrl.u32 %v3049, 7
    %v3051 = vsub.s32 %v1852, %v3050
    %v3052 = vrot.slane %v1088, %v3051
    %v3053 = vsel %vm1857, %v3052, %v3048
    %v3054 = vlaneseq
    %v3055 = vshrl.u32 %v3054, 7
    %v3056 = vsub.s32 %v1859, %v3055
    %v3057 = vrot.slane %v1091, %v3056
    %v3058 = vsel %vm1864, %v3057, %v3053
    %v3059 = vlaneseq
    %v3060 = vshrl.u32 %v3059, 7
    %v3061 = vsub.s32 %v1866, %v3060
    %v3062 = vrot.slane %v1094, %v3061
    %v3063 = vsel %vm1871, %v3062, %v3058
    %v3064 = vlaneseq
    %v3065 = vshrl.u32 %v3064, 7
    %v3066 = vsub.s32 %v1873, %v3065
    %v3067 = vrot.slane %v1097, %v3066
    %v3068 = vsel %vm1878, %v3067, %v3063
    %v3069 = vlaneseq
    %v3070 = vshrl.u32 %v3069, 7
    %v3071 = vsub.s32 %v1880, %v3070
    %v3072 = vrot.slane %v1100, %v3071
    %v3073 = vsel %vm1885, %v3072, %v3068
    %v3074 = vlaneseq
    %v3075 = vshrl.u32 %v3074, 7
    %v3076 = vsub.s32 %v1887, %v3075
    %v3077 = vrot.slane %v1103, %v3076
    %v3078 = vsel %vm1892, %v3077, %v3073
    %v3079 = vlaneseq
    %v3080 = vshrl.u32 %v3079, 7
    %v3081 = vsub.s32 %v1784, %v3080
    %v3082 = vrot.slane %v1106, %v3081
    %v3083 = vlaneseq
    %v3084 = vshrl.u32 %v3083, 7
    %v3085 = vsub.s32 %v1789, %v3084
    %v3086 = vrot.slane %v1109, %v3085
    %v3087 = vsel %vm1794, %v3086, %v3082
    %v3088 = vlaneseq
    %v3089 = vshrl.u32 %v3088, 7
    %v3090 = vsub.s32 %v1796, %v3089
    %v3091 = vrot.slane %v1112, %v3090
    %v3092 = vsel %vm1801, %v3091, %v3087
    %v3093 = vlaneseq
    %v3094 = vshrl.u32 %v3093, 7
    %v3095 = vsub.s32 %v1803, %v3094
    %v3096 = vrot.slane %v1115, %v3095
    %v3097 = vsel %vm1808, %v3096, %v3092
    %v3098 = vlaneseq
    %v3099 = vshrl.u32 %v3098, 7
    %v3100 = vsub.s32 %v1810, %v3099
    %v3101 = vrot.slane %v1118, %v3100
    %v3102 = vsel %vm1815, %v3101, %v3097
    %v3103 = vlaneseq
    %v3104 = vshrl.u32 %v3103, 7
    %v3105 = vsub.s32 %v1817, %v3104
    %v3106 = vrot.slane %v1121, %v3105
    %v3107 = vsel %vm1822, %v3106, %v3102
    %v3108 = vlaneseq
    %v3109 = vshrl.u32 %v3108, 7
    %v3110 = vsub.s32 %v1824, %v3109
    %v3111 = vrot.slane %v1124, %v3110
    %v3112 = vsel %vm1829, %v3111, %v3107
    %v3113 = vlaneseq
    %v3114 = vshrl.u32 %v3113, 7
    %v3115 = vsub.s32 %v1831, %v3114
    %v3116 = vrot.slane %v1127, %v3115
    %v3117 = vsel %vm1836, %v3116, %v3112
    %v3118 = vlaneseq
    %v3119 = vshrl.u32 %v3118, 7
    %v3120 = vsub.s32 %v1838, %v3119
    %v3121 = vrot.slane %v1130, %v3120
    %v3122 = vsel %vm1843, %v3121, %v3117
    %v3123 = vlaneseq
    %v3124 = vshrl.u32 %v3123, 7
    %v3125 = vsub.s32 %v1845, %v3124
    %v3126 = vrot.slane %v1133, %v3125
    %v3127 = vsel %vm1850, %v3126, %v3122
    %v3128 = vlaneseq
    %v3129 = vshrl.u32 %v3128, 7
    %v3130 = vsub.s32 %v1852, %v3129
    %v3131 = vrot.slane %v1136, %v3130
    %v3132 = vsel %vm1857, %v3131, %v3127
    %v3133 = vlaneseq
    %v3134 = vshrl.u32 %v3133, 7
    %v3135 = vsub.s32 %v1859, %v3134
    %v3136 = vrot.slane %v1139, %v3135
    %v3137 = vsel %vm1864, %v3136, %v3132
    %v3138 = vlaneseq
    %v3139 = vshrl.u32 %v3138, 7
    %v3140 = vsub.s32 %v1866, %v3139
    %v3141 = vrot.slane %v1142, %v3140
    %v3142 = vsel %vm1871, %v3141, %v3137
    %v3143 = vlaneseq
    %v3144 = vshrl.u32 %v3143, 7
    %v3145 = vsub.s32 %v1873, %v3144
    %v3146 = vrot.slane %v1145, %v3145
    %v3147 = vsel %vm1878, %v3146, %v3142
    %v3148 = vlaneseq
    %v3149 = vshrl.u32 %v3148, 7
    %v3150 = vsub.s32 %v1880, %v3149
    %v3151 = vrot.slane %v1148, %v3150
    %v3152 = vsel %vm1885, %v3151, %v3147
    %v3153 = vlaneseq
    %v3154 = vshrl.u32 %v3153, 7
    %v3155 = vsub.s32 %v1887, %v3154
    %v3156 = vrot.slane %v1151, %v3155
    %v3157 = vsel %vm1892, %v3156, %v3152
    %v3158 = vlaneseq
    %v3159 = vshrl.u32 %v3158, 7
    %v3160 = vsub.s32 %v1784, %v3159
    %v3161 = vrot.slane %v1154, %v3160
    %v3162 = vlaneseq
    %v3163 = vshrl.u32 %v3162, 7
    %v3164 = vsub.s32 %v1789, %v3163
    %v3165 = vrot.slane %v1157, %v3164
    %v3166 = vsel %vm1794, %v3165, %v3161
    %v3167 = vlaneseq
    %v3168 = vshrl.u32 %v3167, 7
    %v3169 = vsub.s32 %v1796, %v3168
    %v3170 = vrot.slane %v1160, %v3169
    %v3171 = vsel %vm1801, %v3170, %v3166
    %v3172 = vlaneseq
    %v3173 = vshrl.u32 %v3172, 7
    %v3174 = vsub.s32 %v1803, %v3173
    %v3175 = vrot.slane %v1163, %v3174
    %v3176 = vsel %vm1808, %v3175, %v3171
    %v3177 = vlaneseq
    %v3178 = vshrl.u32 %v3177, 7
    %v3179 = vsub.s32 %v1810, %v3178
    %v3180 = vrot.slane %v1166, %v3179
    %v3181 = vsel %vm1815, %v3180, %v3176
    %v3182 = vlaneseq
    %v3183 = vshrl.u32 %v3182, 7
    %v3184 = vsub.s32 %v1817, %v3183
    %v3185 = vrot.slane %v1169, %v3184
    %v3186 = vsel %vm1822, %v3185, %v3181
    %v3187 = vlaneseq
    %v3188 = vshrl.u32 %v3187, 7
    %v3189 = vsub.s32 %v1824, %v3188
    %v3190 = vrot.slane %v1172, %v3189
    %v3191 = vsel %vm1829, %v3190, %v3186
    %v3192 = vlaneseq
    %v3193 = vshrl.u32 %v3192, 7
    %v3194 = vsub.s32 %v1831, %v3193
    %v3195 = vrot.slane %v1175, %v3194
    %v3196 = vsel %vm1836, %v3195, %v3191
    %v3197 = vlaneseq
    %v3198 = vshrl.u32 %v3197, 7
    %v3199 = vsub.s32 %v1838, %v3198
    %v3200 = vrot.slane %v1178, %v3199
    %v3201 = vsel %vm1843, %v3200, %v3196
    %v3202 = vlaneseq
    %v3203 = vshrl.u32 %v3202, 7
    %v3204 = vsub.s32 %v1845, %v3203
    %v3205 = vrot.slane %v1181, %v3204
    %v3206 = vsel %vm1850, %v3205, %v3201
    %v3207 = vlaneseq
    %v3208 = vshrl.u32 %v3207, 7
    %v3209 = vsub.s32 %v1852, %v3208
    %v3210 = vrot.slane %v1184, %v3209
    %v3211 = vsel %vm1857, %v3210, %v3206
    %v3212 = vlaneseq
    %v3213 = vshrl.u32 %v3212, 7
    %v3214 = vsub.s32 %v1859, %v3213
    %v3215 = vrot.slane %v1187, %v3214
    %v3216 = vsel %vm1864, %v3215, %v3211
    %v3217 = vlaneseq
    %v3218 = vshrl.u32 %v3217, 7
    %v3219 = vsub.s32 %v1866, %v3218
    %v3220 = vrot.slane %v1190, %v3219
    %v3221 = vsel %vm1871, %v3220, %v3216
    %v3222 = vlaneseq
    %v3223 = vshrl.u32 %v3222, 7
    %v3224 = vsub.s32 %v1873, %v3223
    %v3225 = vrot.slane %v1193, %v3224
    %v3226 = vsel %vm1878, %v3225, %v3221
    %v3227 = vlaneseq
    %v3228 = vshrl.u32 %v3227, 7
    %v3229 = vsub.s32 %v1880, %v3228
    %v3230 = vrot.slane %v1196, %v3229
    %v3231 = vsel %vm1885, %v3230, %v3226
    %v3232 = vlaneseq
    %v3233 = vshrl.u32 %v3232, 7
    %v3234 = vsub.s32 %v1887, %v3233
    %v3235 = vrot.slane %v1199, %v3234
    %v3236 = vsel %vm1892, %v3235, %v3231
    %v3237 = vlaneseq
    %v3238 = vshrl.u32 %v3237, 7
    %v3239 = vsub.s32 %v1784, %v3238
    %v3240 = vrot.slane %v1202, %v3239
    %v3241 = vlaneseq
    %v3242 = vshrl.u32 %v3241, 7
    %v3243 = vsub.s32 %v1789, %v3242
    %v3244 = vrot.slane %v1205, %v3243
    %v3245 = vsel %vm1794, %v3244, %v3240
    %v3246 = vlaneseq
    %v3247 = vshrl.u32 %v3246, 7
    %v3248 = vsub.s32 %v1796, %v3247
    %v3249 = vrot.slane %v1208, %v3248
    %v3250 = vsel %vm1801, %v3249, %v3245
    %v3251 = vlaneseq
    %v3252 = vshrl.u32 %v3251, 7
    %v3253 = vsub.s32 %v1803, %v3252
    %v3254 = vrot.slane %v1211, %v3253
    %v3255 = vsel %vm1808, %v3254, %v3250
    %v3256 = vlaneseq
    %v3257 = vshrl.u32 %v3256, 7
    %v3258 = vsub.s32 %v1810, %v3257
    %v3259 = vrot.slane %v1214, %v3258
    %v3260 = vsel %vm1815, %v3259, %v3255
    %v3261 = vlaneseq
    %v3262 = vshrl.u32 %v3261, 7
    %v3263 = vsub.s32 %v1817, %v3262
    %v3264 = vrot.slane %v1217, %v3263
    %v3265 = vsel %vm1822, %v3264, %v3260
    %v3266 = vlaneseq
    %v3267 = vshrl.u32 %v3266, 7
    %v3268 = vsub.s32 %v1824, %v3267
    %v3269 = vrot.slane %v1220, %v3268
    %v3270 = vsel %vm1829, %v3269, %v3265
    %v3271 = vlaneseq
    %v3272 = vshrl.u32 %v3271, 7
    %v3273 = vsub.s32 %v1831, %v3272
    %v3274 = vrot.slane %v1223, %v3273
    %v3275 = vsel %vm1836, %v3274, %v3270
    %v3276 = vlaneseq
    %v3277 = vshrl.u32 %v3276, 7
    %v3278 = vsub.s32 %v1838, %v3277
    %v3279 = vrot.slane %v1226, %v3278
    %v3280 = vsel %vm1843, %v3279, %v3275
    %v3281 = vlaneseq
    %v3282 = vshrl.u32 %v3281, 7
    %v3283 = vsub.s32 %v1845, %v3282
    %v3284 = vrot.slane %v1229, %v3283
    %v3285 = vsel %vm1850, %v3284, %v3280
    %v3286 = vlaneseq
    %v3287 = vshrl.u32 %v3286, 7
    %v3288 = vsub.s32 %v1852, %v3287
    %v3289 = vrot.slane %v1232, %v3288
    %v3290 = vsel %vm1857, %v3289, %v3285
    %v3291 = vlaneseq
    %v3292 = vshrl.u32 %v3291, 7
    %v3293 = vsub.s32 %v1859, %v3292
    %v3294 = vrot.slane %v1235, %v3293
    %v3295 = vsel %vm1864, %v3294, %v3290
    %v3296 = vlaneseq
    %v3297 = vshrl.u32 %v3296, 7
    %v3298 = vsub.s32 %v1866, %v3297
    %v3299 = vrot.slane %v1238, %v3298
    %v3300 = vsel %vm1871, %v3299, %v3295
    %v3301 = vlaneseq
    %v3302 = vshrl.u32 %v3301, 7
    %v3303 = vsub.s32 %v1873, %v3302
    %v3304 = vrot.slane %v1241, %v3303
    %v3305 = vsel %vm1878, %v3304, %v3300
    %v3306 = vlaneseq
    %v3307 = vshrl.u32 %v3306, 7
    %v3308 = vsub.s32 %v1880, %v3307
    %v3309 = vrot.slane %v1244, %v3308
    %v3310 = vsel %vm1885, %v3309, %v3305
    %v3311 = vlaneseq
    %v3312 = vshrl.u32 %v3311, 7
    %v3313 = vsub.s32 %v1887, %v3312
    %v3314 = vrot.slane %v1247, %v3313
    %v3315 = vsel %vm1892, %v3314, %v3310
    %v3316 = vlaneseq
    %v3317 = vshrl.u32 %v3316, 7
    %v3318 = vsub.s32 %v1784, %v3317
    %v3319 = vrot.slane %v1250, %v3318
    %v3320 = vlaneseq
    %v3321 = vshrl.u32 %v3320, 7
    %v3322 = vsub.s32 %v1789, %v3321
    %v3323 = vrot.slane %v1253, %v3322
    %v3324 = vsel %vm1794, %v3323, %v3319
    %v3325 = vlaneseq
    %v3326 = vshrl.u32 %v3325, 7
    %v3327 = vsub.s32 %v1796, %v3326
    %v3328 = vrot.slane %v1256, %v3327
    %v3329 = vsel %vm1801, %v3328, %v3324
    %v3330 = vlaneseq
    %v3331 = vshrl.u32 %v3330, 7
    %v3332 = vsub.s32 %v1803, %v3331
    %v3333 = vrot.slane %v1259, %v3332
    %v3334 = vsel %vm1808, %v3333, %v3329
    %v3335 = vlaneseq
    %v3336 = vshrl.u32 %v3335, 7
    %v3337 = vsub.s32 %v1810, %v3336
    %v3338 = vrot.slane %v1262, %v3337
    %v3339 = vsel %vm1815, %v3338, %v3334
    %v3340 = vlaneseq
    %v3341 = vshrl.u32 %v3340, 7
    %v3342 = vsub.s32 %v1817, %v3341
    %v3343 = vrot.slane %v1265, %v3342
    %v3344 = vsel %vm1822, %v3343, %v3339
    %v3345 = vlaneseq
    %v3346 = vshrl.u32 %v3345, 7
    %v3347 = vsub.s32 %v1824, %v3346
    %v3348 = vrot.slane %v1268, %v3347
    %v3349 = vsel %vm1829, %v3348, %v3344
    %v3350 = vlaneseq
    %v3351 = vshrl.u32 %v3350, 7
    %v3352 = vsub.s32 %v1831, %v3351
    %v3353 = vrot.slane %v1271, %v3352
    %v3354 = vsel %vm1836, %v3353, %v3349
    %v3355 = vlaneseq
    %v3356 = vshrl.u32 %v3355, 7
    %v3357 = vsub.s32 %v1838, %v3356
    %v3358 = vrot.slane %v1274, %v3357
    %v3359 = vsel %vm1843, %v3358, %v3354
    %v3360 = vlaneseq
    %v3361 = vshrl.u32 %v3360, 7
    %v3362 = vsub.s32 %v1845, %v3361
    %v3363 = vrot.slane %v1277, %v3362
    %v3364 = vsel %vm1850, %v3363, %v3359
    %v3365 = vlaneseq
    %v3366 = vshrl.u32 %v3365, 7
    %v3367 = vsub.s32 %v1852, %v3366
    %v3368 = vrot.slane %v1280, %v3367
    %v3369 = vsel %vm1857, %v3368, %v3364
    %v3370 = vlaneseq
    %v3371 = vshrl.u32 %v3370, 7
    %v3372 = vsub.s32 %v1859, %v3371
    %v3373 = vrot.slane %v1283, %v3372
    %v3374 = vsel %vm1864, %v3373, %v3369
    %v3375 = vlaneseq
    %v3376 = vshrl.u32 %v3375, 7
    %v3377 = vsub.s32 %v1866, %v3376
    %v3378 = vrot.slane %v1286, %v3377
    %v3379 = vsel %vm1871, %v3378, %v3374
    %v3380 = vlaneseq
    %v3381 = vshrl.u32 %v3380, 7
    %v3382 = vsub.s32 %v1873, %v3381
    %v3383 = vrot.slane %v1289, %v3382
    %v3384 = vsel %vm1878, %v3383, %v3379
    %v3385 = vlaneseq
    %v3386 = vshrl.u32 %v3385, 7
    %v3387 = vsub.s32 %v1880, %v3386
    %v3388 = vrot.slane %v1292, %v3387
    %v3389 = vsel %vm1885, %v3388, %v3384
    %v3390 = vlaneseq
    %v3391 = vshrl.u32 %v3390, 7
    %v3392 = vsub.s32 %v1887, %v3391
    %v3393 = vrot.slane %v1295, %v3392
    %v3394 = vsel %vm1892, %v3393, %v3389
    %vm3395 = vcmask 1041409
    %v3396 = vsel %vm3395, %v2683, %v1893
    %v3397 = vsel %vm3395, %v2762, %v1972
    %v3398 = vsel %vm3395, %v2841, %v2051
    %v3399 = vsel %vm3395, %v2920, %v2130
    %v3400 = vsel %vm3395, %v2999, %v2209
    %v3401 = vsel %vm3395, %v3078, %v2288
    %v3402 = vsel %vm3395, %v3157, %v2367
    %v3403 = vsel %vm3395, %v3236, %v2446
    %v3404 = vsel %vm3395, %v3315, %v2525
    %v3405 = vsel %vm3395, %v3394, %v2604
    %3416 = vmatprep.subr.mxu0 0.0
    %3417 = vmatpush1.msra.mxu0 %v1296
    %3418 = vmatprep.subr.mxu0 0.0
    %3419 = vmatpush1.msra.mxu0 %v1297
    %3420 = vmatprep.subr.mxu0 0.0
    %3421 = vmatpush1.msra.mxu0 %v1298
    %3422 = vmatprep.subr.mxu0 0.0
    %3423 = vmatpush1.msra.mxu0 %v1299
    %3424 = vmatprep.subr.mxu0 0.0
    %3425 = vmatpush1.msra.mxu0 %v1300
    %3426 = vmatprep.subr.mxu0 0.0
    %3427 = vmatpush1.msra.mxu0 %v1301
    %3428 = vmatprep.subr.mxu0 0.0
    %3429 = vmatpush1.msra.mxu0 %v1302
    %3430 = vmatprep.subr.mxu0 0.0
    %3431 = vmatpush1.msra.mxu0 %v1303
    %3432 = vmatprep.subr.mxu0 0.0
    %3433 = vmatpush1.msra.mxu0 %v1304
    %3434 = vmatprep.subr.mxu0 0.0
    %3435 = vmatpush1.msra.mxu0 %v1305
    %3436 = vmatprep.subr.mxu0 0.0
    %3437 = vmatpush1.msra.mxu0 %v1306
    %3438 = vmatprep.subr.mxu0 0.0
    %3439 = vmatpush1.msra.mxu0 %v1307
    %3440 = vmatprep.subr.mxu0 0.0
    %3441 = vmatpush1.msra.mxu0 %v1308
    %3442 = vmatprep.subr.mxu0 0.0
    %3443 = vmatpush1.msra.mxu0 %v1309
    %3444 = vmatprep.subr.mxu0 0.0
    %3445 = vmatpush1.msra.mxu0 %v1310
    %3446 = vmatprep.subr.mxu0 0.0
    %3447 = vmatpush1.msra.mxu0 %v1311
    %3448 = vmatprep.subr.mxu0 0.0
    %3449 = vmatpush1.msra.mxu0 %v1312
    %3450 = vmatprep.subr.mxu0 0.0
    %3451 = vmatpush1.msra.mxu0 %v1313
    %3452 = vmatprep.subr.mxu0 0.0
    %3453 = vmatpush1.msra.mxu0 %v1314
    %3454 = vmatprep.subr.mxu0 0.0
    %3455 = vmatpush1.msra.mxu0 %v1315
    %3456 = vmatprep.subr.mxu0 0.0
    %3457 = vmatpush1.msra.mxu0 %v1316
    %3458 = vmatprep.subr.mxu0 0.0
    %3459 = vmatpush1.msra.mxu0 %v1317
    %3460 = vmatprep.subr.mxu0 0.0
    %3461 = vmatpush1.msra.mxu0 %v1318
    %3462 = vmatprep.subr.mxu0 0.0
    %3463 = vmatpush1.msra.mxu0 %v1319
    %3464 = vmatprep.subr.mxu0 0.0
    %3465 = vmatpush1.msra.mxu0 %v1320
    %3466 = vmatprep.subr.mxu0 0.0
    %3467 = vmatpush1.msra.mxu0 %v1321
    %3468 = vmatprep.subr.mxu0 0.0
    %3469 = vmatpush1.msra.mxu0 %v1322
    %3470 = vmatprep.subr.mxu0 0.0
    %3471 = vmatpush1.msra.mxu0 %v1323
    %3472 = vmatprep.subr.mxu0 0.0
    %3473 = vmatpush1.msra.mxu0 %v1324
    %3474 = vmatprep.subr.mxu0 0.0
    %3475 = vmatpush1.msra.mxu0 %v1325
    %3476 = vmatprep.subr.mxu0 0.0
    %3477 = vmatpush1.msra.mxu0 %v1326
    %3478 = vmatprep.subr.mxu0 0.0
    %3479 = vmatpush1.msra.mxu0 %v1327
    %3480 = vmatprep.mubr.f32.mxu0 %v3397
    %3481 = vmatmul.mubr.f32.gmra.mrb[0].mxu0 %v3396
    %v3482 = vpop.f32.mrb[0].mxu0
    %v3483 = vadd.f32 %v1461, %v3482
    %v3484 = vpop.f32.mrb[0].mxu0
    %3485 = vdwg.mxu0
    %3486 = vmatprep.subr.mxu0 0.0
    %3487 = vmatpush1.msra.mxu0 %v1328
    %3488 = vmatprep.subr.mxu0 0.0
    %3489 = vmatpush1.msra.mxu0 %v1329
    %3490 = vmatprep.subr.mxu0 0.0
    %3491 = vmatpush1.msra.mxu0 %v1330
    %3492 = vmatprep.subr.mxu0 0.0
    %3493 = vmatpush1.msra.mxu0 %v1331
    %3494 = vmatprep.subr.mxu0 0.0
    %3495 = vmatpush1.msra.mxu0 %v1332
    %3496 = vmatprep.subr.mxu0 0.0
    %3497 = vmatpush1.msra.mxu0 %v1333
    %3498 = vmatprep.subr.mxu0 0.0
    %3499 = vmatpush1.msra.mxu0 %v1334
    %3500 = vmatprep.subr.mxu0 0.0
    %3501 = vmatpush1.msra.mxu0 %v1335
    %3502 = vmatprep.subr.mxu0 0.0
    %3503 = vmatpush1.msra.mxu0 %v1336
    %3504 = vmatprep.subr.mxu0 0.0
    %3505 = vmatpush1.msra.mxu0 %v1337
    %3506 = vmatprep.subr.mxu0 0.0
    %3507 = vmatpush1.msra.mxu0 %v1338
    %3508 = vmatprep.subr.mxu0 0.0
    %3509 = vmatpush1.msra.mxu0 %v1339
    %3510 = vmatprep.subr.mxu0 0.0
    %3511 = vmatpush1.msra.mxu0 %v1340
    %3512 = vmatprep.subr.mxu0 0.0
    %3513 = vmatpush1.msra.mxu0 %v1341
    %3514 = vmatprep.subr.mxu0 0.0
    %3515 = vmatpush1.msra.mxu0 %v1342
    %3516 = vmatprep.subr.mxu0 0.0
    %3517 = vmatpush1.msra.mxu0 %v1343
    %3518 = vmatprep.subr.mxu0 0.0
    %3519 = vmatpush1.msra.mxu0 %v1344
    %3520 = vmatprep.subr.mxu0 0.0
    %3521 = vmatpush1.msra.mxu0 %v1345
    %3522 = vmatprep.subr.mxu0 0.0
    %3523 = vmatpush1.msra.mxu0 %v1346
    %3524 = vmatprep.subr.mxu0 0.0
    %3525 = vmatpush1.msra.mxu0 %v1347
    %3526 = vmatprep.subr.mxu0 0.0
    %3527 = vmatpush1.msra.mxu0 %v1348
    %3528 = vmatprep.subr.mxu0 0.0
    %3529 = vmatpush1.msra.mxu0 %v1349
    %3530 = vmatprep.subr.mxu0 0.0
    %3531 = vmatpush1.msra.mxu0 %v1350
    %3532 = vmatprep.subr.mxu0 0.0
    %3533 = vmatpush1.msra.mxu0 %v1351
    %3534 = vmatprep.subr.mxu0 0.0
    %3535 = vmatpush1.msra.mxu0 %v1352
    %3536 = vmatprep.subr.mxu0 0.0
    %3537 = vmatpush1.msra.mxu0 %v1353
    %3538 = vmatprep.subr.mxu0 0.0
    %3539 = vmatpush1.msra.mxu0 %v1354
    %3540 = vmatprep.subr.mxu0 0.0
    %3541 = vmatpush1.msra.mxu0 %v1355
    %3542 = vmatprep.subr.mxu0 0.0
    %3543 = vmatpush1.msra.mxu0 %v1356
    %3544 = vmatprep.subr.mxu0 0.0
    %3545 = vmatpush1.msra.mxu0 %v1357
    %3546 = vmatprep.subr.mxu0 0.0
    %3547 = vmatpush1.msra.mxu0 %v1358
    %3548 = vmatprep.subr.mxu0 0.0
    %3549 = vmatpush1.msra.mxu0 %v1359
    %3550 = vmatprep.mubr.f32.mxu0 %v3399
    %3551 = vmatmul.mubr.f32.gmra.mrb[0].mxu0 %v3398
    %v3552 = vpop.f32.mrb[0].mxu0
    %v3553 = vadd.f32 %v3483, %v3552
    %v3554 = vpop.f32.mrb[0].mxu0
    %3555 = vdwg.mxu0
    %3556 = vmatprep.subr.mxu0 0.0
    %3557 = vmatpush1.msra.mxu0 %v1360
    %3558 = vmatprep.subr.mxu0 0.0
    %3559 = vmatpush1.msra.mxu0 %v1361
    %3560 = vmatprep.subr.mxu0 0.0
    %3561 = vmatpush1.msra.mxu0 %v1362
    %3562 = vmatprep.subr.mxu0 0.0
    %3563 = vmatpush1.msra.mxu0 %v1363
    %3564 = vmatprep.subr.mxu0 0.0
    %3565 = vmatpush1.msra.mxu0 %v1364
    %3566 = vmatprep.subr.mxu0 0.0
    %3567 = vmatpush1.msra.mxu0 %v1365
    %3568 = vmatprep.subr.mxu0 0.0
    %3569 = vmatpush1.msra.mxu0 %v1366
    %3570 = vmatprep.subr.mxu0 0.0
    %3571 = vmatpush1.msra.mxu0 %v1367
    %3572 = vmatprep.subr.mxu0 0.0
    %3573 = vmatpush1.msra.mxu0 %v1368
    %3574 = vmatprep.subr.mxu0 0.0
    %3575 = vmatpush1.msra.mxu0 %v1369
    %3576 = vmatprep.subr.mxu0 0.0
    %3577 = vmatpush1.msra.mxu0 %v1370
    %3578 = vmatprep.subr.mxu0 0.0
    %3579 = vmatpush1.msra.mxu0 %v1371
    %3580 = vmatprep.subr.mxu0 0.0
    %3581 = vmatpush1.msra.mxu0 %v1372
    %3582 = vmatprep.subr.mxu0 0.0
    %3583 = vmatpush1.msra.mxu0 %v1373
    %3584 = vmatprep.subr.mxu0 0.0
    %3585 = vmatpush1.msra.mxu0 %v1374
    %3586 = vmatprep.subr.mxu0 0.0
    %3587 = vmatpush1.msra.mxu0 %v1375
    %3588 = vmatprep.subr.mxu0 0.0
    %3589 = vmatpush1.msra.mxu0 %v1376
    %3590 = vmatprep.subr.mxu0 0.0
    %3591 = vmatpush1.msra.mxu0 %v1377
    %3592 = vmatprep.subr.mxu0 0.0
    %3593 = vmatpush1.msra.mxu0 %v1378
    %3594 = vmatprep.subr.mxu0 0.0
    %3595 = vmatpush1.msra.mxu0 %v1379
    %3596 = vmatprep.subr.mxu0 0.0
    %3597 = vmatpush1.msra.mxu0 %v1380
    %3598 = vmatprep.subr.mxu0 0.0
    %3599 = vmatpush1.msra.mxu0 %v1381
    %3600 = vmatprep.subr.mxu0 0.0
    %3601 = vmatpush1.msra.mxu0 %v1382
    %3602 = vmatprep.subr.mxu0 0.0
    %3603 = vmatpush1.msra.mxu0 %v1383
    %3604 = vmatprep.subr.mxu0 0.0
    %3605 = vmatpush1.msra.mxu0 %v1384
    %3606 = vmatprep.subr.mxu0 0.0
    %3607 = vmatpush1.msra.mxu0 %v1385
    %3608 = vmatprep.subr.mxu0 0.0
    %3609 = vmatpush1.msra.mxu0 %v1386
    %3610 = vmatprep.subr.mxu0 0.0
    %3611 = vmatpush1.msra.mxu0 %v1387
    %3612 = vmatprep.subr.mxu0 0.0
    %3613 = vmatpush1.msra.mxu0 %v1388
    %3614 = vmatprep.subr.mxu0 0.0
    %3615 = vmatpush1.msra.mxu0 %v1389
    %3616 = vmatprep.subr.mxu0 0.0
    %3617 = vmatpush1.msra.mxu0 %v1390
    %3618 = vmatprep.subr.mxu0 0.0
    %3619 = vmatpush1.msra.mxu0 %v1391
    %3620 = vmatprep.mubr.f32.mxu0 %v3401
    %3621 = vmatmul.mubr.f32.gmra.mrb[0].mxu0 %v3400
    %v3622 = vpop.f32.mrb[0].mxu0
    %v3623 = vadd.f32 %v3553, %v3622
    %v3624 = vpop.f32.mrb[0].mxu0
    %3625 = vdwg.mxu0
    %3626 = vmatprep.subr.mxu0 0.0
    %3627 = vmatpush1.msra.mxu0 %v1392
    %3628 = vmatprep.subr.mxu0 0.0
    %3629 = vmatpush1.msra.mxu0 %v1393
    %3630 = vmatprep.subr.mxu0 0.0
    %3631 = vmatpush1.msra.mxu0 %v1394
    %3632 = vmatprep.subr.mxu0 0.0
    %3633 = vmatpush1.msra.mxu0 %v1395
    %3634 = vmatprep.subr.mxu0 0.0
    %3635 = vmatpush1.msra.mxu0 %v1396
    %3636 = vmatprep.subr.mxu0 0.0
    %3637 = vmatpush1.msra.mxu0 %v1397
    %3638 = vmatprep.subr.mxu0 0.0
    %3639 = vmatpush1.msra.mxu0 %v1398
    %3640 = vmatprep.subr.mxu0 0.0
    %3641 = vmatpush1.msra.mxu0 %v1399
    %3642 = vmatprep.subr.mxu0 0.0
    %3643 = vmatpush1.msra.mxu0 %v1400
    %3644 = vmatprep.subr.mxu0 0.0
    %3645 = vmatpush1.msra.mxu0 %v1401
    %3646 = vmatprep.subr.mxu0 0.0
    %3647 = vmatpush1.msra.mxu0 %v1402
    %3648 = vmatprep.subr.mxu0 0.0
    %3649 = vmatpush1.msra.mxu0 %v1403
    %3650 = vmatprep.subr.mxu0 0.0
    %3651 = vmatpush1.msra.mxu0 %v1404
    %3652 = vmatprep.subr.mxu0 0.0
    %3653 = vmatpush1.msra.mxu0 %v1405
    %3654 = vmatprep.subr.mxu0 0.0
    %3655 = vmatpush1.msra.mxu0 %v1406
    %3656 = vmatprep.subr.mxu0 0.0
    %3657 = vmatpush1.msra.mxu0 %v1407
    %3658 = vmatprep.subr.mxu0 0.0
    %3659 = vmatpush1.msra.mxu0 %v1408
    %3660 = vmatprep.subr.mxu0 0.0
    %3661 = vmatpush1.msra.mxu0 %v1409
    %3662 = vmatprep.subr.mxu0 0.0
    %3663 = vmatpush1.msra.mxu0 %v1410
    %3664 = vmatprep.subr.mxu0 0.0
    %3665 = vmatpush1.msra.mxu0 %v1411
    %3666 = vmatprep.subr.mxu0 0.0
    %3667 = vmatpush1.msra.mxu0 %v1412
    %3668 = vmatprep.subr.mxu0 0.0
    %3669 = vmatpush1.msra.mxu0 %v1413
    %3670 = vmatprep.subr.mxu0 0.0
    %3671 = vmatpush1.msra.mxu0 %v1414
    %3672 = vmatprep.subr.mxu0 0.0
    %3673 = vmatpush1.msra.mxu0 %v1415
    %3674 = vmatprep.subr.mxu0 0.0
    %3675 = vmatpush1.msra.mxu0 %v1416
    %3676 = vmatprep.subr.mxu0 0.0
    %3677 = vmatpush1.msra.mxu0 %v1417
    %3678 = vmatprep.subr.mxu0 0.0
    %3679 = vmatpush1.msra.mxu0 %v1418
    %3680 = vmatprep.subr.mxu0 0.0
    %3681 = vmatpush1.msra.mxu0 %v1419
    %3682 = vmatprep.subr.mxu0 0.0
    %3683 = vmatpush1.msra.mxu0 %v1420
    %3684 = vmatprep.subr.mxu0 0.0
    %3685 = vmatpush1.msra.mxu0 %v1421
    %3686 = vmatprep.subr.mxu0 0.0
    %3687 = vmatpush1.msra.mxu0 %v1422
    %3688 = vmatprep.subr.mxu0 0.0
    %3689 = vmatpush1.msra.mxu0 %v1423
    %3690 = vmatprep.mubr.f32.mxu0 %v3403
    %3691 = vmatmul.mubr.f32.gmra.mrb[0].mxu0 %v3402
    %v3692 = vpop.f32.mrb[0].mxu0
    %v3693 = vadd.f32 %v3623, %v3692
    %v3694 = vpop.f32.mrb[0].mxu0
    %3695 = vdwg.mxu0
    %3696 = vmatprep.subr.mxu0 0.0
    %3697 = vmatpush1.msra.mxu0 %v1424
    %3698 = vmatprep.subr.mxu0 0.0
    %3699 = vmatpush1.msra.mxu0 %v1425
    %3700 = vmatprep.subr.mxu0 0.0
    %3701 = vmatpush1.msra.mxu0 %v1426
    %3702 = vmatprep.subr.mxu0 0.0
    %3703 = vmatpush1.msra.mxu0 %v1427
    %3704 = vmatprep.subr.mxu0 0.0
    %3705 = vmatpush1.msra.mxu0 %v1428
    %3706 = vmatprep.subr.mxu0 0.0
    %3707 = vmatpush1.msra.mxu0 %v1429
    %3708 = vmatprep.subr.mxu0 0.0
    %3709 = vmatpush1.msra.mxu0 %v1430
    %3710 = vmatprep.subr.mxu0 0.0
    %3711 = vmatpush1.msra.mxu0 %v1431
    %3712 = vmatprep.subr.mxu0 0.0
    %3713 = vmatpush1.msra.mxu0 %v1432
    %3714 = vmatprep.subr.mxu0 0.0
    %3715 = vmatpush1.msra.mxu0 %v1433
    %3716 = vmatprep.subr.mxu0 0.0
    %3717 = vmatpush1.msra.mxu0 %v1434
    %3718 = vmatprep.subr.mxu0 0.0
    %3719 = vmatpush1.msra.mxu0 %v1435
    %3720 = vmatprep.subr.mxu0 0.0
    %3721 = vmatpush1.msra.mxu0 %v1436
    %3722 = vmatprep.subr.mxu0 0.0
    %3723 = vmatpush1.msra.mxu0 %v1437
    %3724 = vmatprep.subr.mxu0 0.0
    %3725 = vmatpush1.msra.mxu0 %v1438
    %3726 = vmatprep.subr.mxu0 0.0
    %3727 = vmatpush1.msra.mxu0 %v1439
    %3728 = vmatprep.subr.mxu0 0.0
    %3729 = vmatpush1.msra.mxu0 %v1440
    %3730 = vmatprep.subr.mxu0 0.0
    %3731 = vmatpush1.msra.mxu0 %v1441
    %3732 = vmatprep.subr.mxu0 0.0
    %3733 = vmatpush1.msra.mxu0 %v1442
    %3734 = vmatprep.subr.mxu0 0.0
    %3735 = vmatpush1.msra.mxu0 %v1443
    %3736 = vmatprep.subr.mxu0 0.0
    %3737 = vmatpush1.msra.mxu0 %v1444
    %3738 = vmatprep.subr.mxu0 0.0
    %3739 = vmatpush1.msra.mxu0 %v1445
    %3740 = vmatprep.subr.mxu0 0.0
    %3741 = vmatpush1.msra.mxu0 %v1446
    %3742 = vmatprep.subr.mxu0 0.0
    %3743 = vmatpush1.msra.mxu0 %v1447
    %3744 = vmatprep.subr.mxu0 0.0
    %3745 = vmatpush1.msra.mxu0 %v1448
    %3746 = vmatprep.subr.mxu0 0.0
    %3747 = vmatpush1.msra.mxu0 %v1449
    %3748 = vmatprep.subr.mxu0 0.0
    %3749 = vmatpush1.msra.mxu0 %v1450
    %3750 = vmatprep.subr.mxu0 0.0
    %3751 = vmatpush1.msra.mxu0 %v1451
    %3752 = vmatprep.subr.mxu0 0.0
    %3753 = vmatpush1.msra.mxu0 %v1452
    %3754 = vmatprep.subr.mxu0 0.0
    %3755 = vmatpush1.msra.mxu0 %v1453
    %3756 = vmatprep.subr.mxu0 0.0
    %3757 = vmatpush1.msra.mxu0 %v1454
    %3758 = vmatprep.subr.mxu0 0.0
    %3759 = vmatpush1.msra.mxu0 %v1455
    %3760 = vmatprep.mubr.f32.mxu0 %v3405
    %3761 = vmatmul.mubr.f32.gmra.mrb[0].mxu0 %v3404
    %v3762 = vpop.f32.mrb[0].mxu0
    %v3763 = vadd.f32 %v3693, %v3762
    %v3764 = vpop.f32.mrb[0].mxu0
    %3765 = vdwg.mxu0
    %3766 = vst [vmem:[#allocation2] sm:$0x3] %v3763
    // Predicated region
    $region14: #{tpu_custom_call.1} parent=1 // pred_check
      _
    $region15: #{tpu_custom_call.1} parent=1 // pred_check_branch
      %3768 = sbr.rel (0) target = $region17
    $region16: #{tpu_custom_call.1} parent=1 // pred_region
      %s3770 = ssub.s32 32, 32
      %3771 = vsyncadd [#allocation3], %s3770
      %s3773 = sshll.u32 [#allocation2], 4
      %s3774 = int_to_ptr.vmem [resolvable:$true] %s3773
      %3776 = dma.vmem_to_hbm [thread:$0]  %s3774, 32, %s3, [#allocation3]
    $region17: #{tpu_custom_call.1} parent=1 // pred_fallthru
      _
    // Predicated region
    $region18: #{tpu_custom_call.1} parent=1 // pred_check
      _
    $region19: #{tpu_custom_call.1} parent=1 // pred_check_branch
      %3778 = sbr.rel (0) target = $region21
    $region20: #{tpu_custom_call.1} parent=1 // pred_region
      %3779 = dma.done [#allocation3], 32
    $region21: #{tpu_custom_call.1} parent=1 // pred_fallthru
      _
    %3780 = vsyncpa [#allocation3], 1

</llo_original>
